<compile_context>
chip_gen: v5e
topology: v5e:2x2
jax: 0.10.0
libtpu: 0.0.40
codegen_flags: <defaults>
</compile_context>

<pallas_src>
import math
from functools import partial

import jax
import jax.numpy as jnp
from jax.experimental import pallas as pl
from jax.experimental.pallas import tpu as pltpu


STATE_DIM = 8     # LunarLander-v2 observation_space.shape[0]
ACTION_DIM = 4    # LunarLander-v2 action_space.n
H1 = 128
H2 = 256


def actor_kernel(x_ref, w1_ref, b1_ref, w2_ref, b2_ref, w3_ref, b3_ref, probs_ref):
    # fc1 + relu  (bf16 MXU inputs, f32 accumulation; x arrives pre-cast to bf16)
    h1 = jnp.dot(x_ref[...], w1_ref[...],
                 preferred_element_type=jnp.float32) + b1_ref[...]        # [TB, 128]
    h1 = jnp.maximum(h1, 0.0)

    # fc2 + relu
    h2 = jnp.dot(h1.astype(jnp.bfloat16), w2_ref[...],
                 preferred_element_type=jnp.float32) + b2_ref[...]        # [TB, 256]
    h2 = jnp.maximum(h2, 0.0)

    # fc3 logits at natural width (ACTION_DIM=4 columns)
    logits = jnp.dot(h2.astype(jnp.bfloat16), w3_ref[...],
                     preferred_element_type=jnp.float32) + b3_ref[...]    # [TB, 4]

    # numerically-stable softmax over the last dim; exact division (tighter
    # sum-to-1 than approx reciprocal, same cost on a [TB, 4] slab)
    m = jnp.max(logits, axis=-1, keepdims=True)
    e = jnp.exp(logits - m)
    denom = jnp.sum(e, axis=-1, keepdims=True)
    probs_ref[...] = (e / denom).astype(probs_ref.dtype)


def _round_up(n, m):
    return ((n + m - 1) // m) * m


def _tensorcores_per_chip():
    """v7x exposes 2 TensorCores behind one device; v5e/v6e have one."""
    try:
        kind = jax.devices()[0].device_kind.lower()
    except Exception:
        return 1
    return 2 if "v7" in kind else 1


def prepare_params(params):
    """One-time param prep (do at init / after each optimizer step, NOT per forward):
    bf16 weights in [in, out] layout, f32 row-vector biases."""
    w1, b1, w2, b2, w3, b3 = params
    return (
        w1.astype(jnp.bfloat16), jnp.asarray(b1, jnp.float32).reshape(1, H1),
        w2.astype(jnp.bfloat16), jnp.asarray(b2, jnp.float32).reshape(1, H2),
        w3.astype(jnp.bfloat16), jnp.asarray(b3, jnp.float32).reshape(1, ACTION_DIM),
    )


@partial(jax.jit, static_argnames=("num_cores",))
def _actor_forward_impl(x, prepared, num_cores):
    w1b, b1, w2b, b2, w3b, b3 = prepared
    B = x.shape[0]

    # Tile selection:
    #  - single-TC chips (v5e/v6e): one tile for B <= 2048 (grid steps are a serial
    #    loop with ~0.35 us overhead each on a <0.1 us-compute kernel),
    #  - v7x (2 TCs): even tile count, tb <= ~512, so both cores get equal work.
    if num_cores <= 1:
        tb = _round_up(B, 8) if B <= 2048 else 512
    else:
        n = max(2, 2 * pl.cdiv(B, 2 * 512))
        tb = _round_up(pl.cdiv(B, n), 8)
    tb = max(tb, 8)

    n_tiles = pl.cdiv(B, tb)
    b_pad = n_tiles * tb

    # Cast x to bf16 here (fuses with the pad under jit): halves x DMA bytes and
    # removes the per-tile VPU cast inside the kernel.
    xb = x.astype(jnp.bfloat16)
    if b_pad != B:
        xb = jnp.pad(xb, ((0, b_pad - B), (0, 0)))

    const = lambda i: (0, 0)  # weights/biases: same block every tile -> VMEM-resident

    flops = 2 * b_pad * (STATE_DIM * H1 + H1 * H2 + H2 * ACTION_DIM)
    bytes_accessed = (
        b_pad * STATE_DIM * 2                                   # x (bf16)
        + (w1b.size + w2b.size + w3b.size) * 2                  # bf16 weights
        + (b1.size + b2.size + b3.size) * 4                     # f32 biases
        + b_pad * ACTION_DIM * 4                                # probs out (f32)
    )

    probs = pl.pallas_call(
        actor_kernel,
        out_shape=jax.ShapeDtypeStruct((b_pad, ACTION_DIM), jnp.float32),
        grid=(n_tiles,),
        in_specs=[
            pl.BlockSpec((tb, STATE_DIM), lambda i: (i, 0)),
            pl.BlockSpec((STATE_DIM, H1), const),
            pl.BlockSpec((1, H1), const),
            pl.BlockSpec((H1, H2), const),
            pl.BlockSpec((1, H2), const),
            pl.BlockSpec((H2, ACTION_DIM), const),
            pl.BlockSpec((1, ACTION_DIM), const),
        ],
        out_specs=pl.BlockSpec((tb, ACTION_DIM), lambda i: (i, 0)),
        compiler_params=pltpu.CompilerParams(
            # batch tiles are independent -> shard across v7x's 2 TensorCores
            dimension_semantics=("parallel",),
        ),
        cost_estimate=pl.CostEstimate(
            flops=flops,
            transcendentals=b_pad * ACTION_DIM,
            bytes_accessed=bytes_accessed,
        ),
    )(xb, w1b, b1, w2b, b2, w3b, b3)

    return probs[:B] if b_pad != B else probs


def actor_forward(x, prepared_params):
    """x: [B, STATE_DIM] float32 -> probs: [B, ACTION_DIM] float32."""
    return _actor_forward_impl(x, prepared_params, _tensorcores_per_chip())


def init_params(key):
    """Deterministic init mimicking torch.nn.Linear default: U(-1/sqrt(fan_in), +)."""
    def linear(key, fan_in, fan_out):
        kw, kb = jax.random.split(key)
        bound = 1.0 / math.sqrt(fan_in)
        w = jax.random.uniform(kw, (fan_in, fan_out), jnp.float32, -bound, bound)
        b = jax.random.uniform(kb, (1, fan_out), jnp.float32, -bound, bound)
        return w, b

    k1, k2, k3 = jax.random.split(key, 3)
    w1, b1 = linear(k1, STATE_DIM, H1)
    w2, b2 = linear(k2, H1, H2)
    w3, b3 = linear(k3, H2, ACTION_DIM)
    return (w1, b1, w2, b2, w3, b3)


def reference_forward(x, params):
    """Full-f32 reference (the module's exact math)."""
    w1, b1, w2, b2, w3, b3 = params
    h1 = jnp.maximum(x @ w1 + b1, 0.0)
    h2 = jnp.maximum(h1 @ w2 + b2, 0.0)
    logits = h2 @ w3 + b3
    return jax.nn.softmax(logits, axis=-1)


# TODO(synk): torch.distributions.Categorical (sampling/log_prob) is host-side RL
# plumbing with no Pallas equivalent; the kernel returns the softmax probabilities.

if __name__ == "__main__":
    key = jax.random.PRNGKey(0)
    kx, kp = jax.random.split(key)

    params = init_params(kp)
    prepared = prepare_params(params)   # one-time prep, outside the hot path

    # Large batch: fills the MXU, splits evenly across v7x's two TensorCores.
    B = 512
    x = jax.random.normal(kx, (B, STATE_DIM), jnp.float32)
    probs = jax.block_until_ready(actor_forward(x, prepared))
    ref = reference_forward(x, params)
    assert probs.shape == (B, ACTION_DIM)
    # bf16 weights/activations -> relaxed tolerance vs. the f32 reference.
    assert jnp.allclose(probs, ref, atol=1e-2, rtol=0.0)
    assert jnp.allclose(jnp.sum(probs, axis=-1), 1.0, atol=1e-4)

    # Small, ragged batch (exercises the padding + single-tile path).
    x_small = x[:5]
    probs_small = jax.block_until_ready(actor_forward(x_small, prepared))
    ref_small = reference_forward(x_small, params)
    assert probs_small.shape == (5, ACTION_DIM)
    assert jnp.allclose(probs_small, ref_small, atol=1e-2, rtol=0.0)
    assert jnp.allclose(jnp.sum(probs_small, axis=-1), 1.0, atol=1e-4)

    print("KERNEL_OK")
</pallas_src>

<mosaic_0001>
module attributes {stable_mosaic.version = 11 : i64} {
  func.func @actor_kernel(%arg0: i32, %arg1: memref<512x8xbf16, #tpu.memory_space<vmem>>, %arg2: memref<8x128xbf16, #tpu.memory_space<vmem>>, %arg3: memref<1x128xf32, #tpu.memory_space<vmem>>, %arg4: memref<128x256xbf16, #tpu.memory_space<vmem>>, %arg5: memref<1x256xf32, #tpu.memory_space<vmem>>, %arg6: memref<256x4xbf16, #tpu.memory_space<vmem>>, %arg7: memref<1x4xf32, #tpu.memory_space<vmem>>, %arg8: memref<512x4xf32, #tpu.memory_space<vmem>>) attributes {dimension_semantics = [#tpu.dimension_semantics<parallel>], iteration_bounds = array<i64: 1>, scalar_prefetch = 0 : i64, scratch_operands = 0 : i64, tpu.core_type = #tpu.core_type<tc>, window_params = [{transform_indices = @transform_0, window_bounds = array<i64: 512, 8>}, {pipeline_mode = #tpu.pipeline_mode<synchronous>, transform_indices = @transform_1, window_bounds = array<i64: 8, 128>}, {pipeline_mode = #tpu.pipeline_mode<synchronous>, transform_indices = @transform_2, window_bounds = array<i64: 1, 128>}, {pipeline_mode = #tpu.pipeline_mode<synchronous>, transform_indices = @transform_3, window_bounds = array<i64: 128, 256>}, {pipeline_mode = #tpu.pipeline_mode<synchronous>, transform_indices = @transform_4, window_bounds = array<i64: 1, 256>}, {pipeline_mode = #tpu.pipeline_mode<synchronous>, transform_indices = @transform_5, window_bounds = array<i64: 256, 4>}, {pipeline_mode = #tpu.pipeline_mode<synchronous>, transform_indices = @transform_6, window_bounds = array<i64: 1, 4>}, {transform_indices = @transform_7, window_bounds = array<i64: 512, 4>}]} {
    %c0 = arith.constant 0 : index
    %c0_0 = arith.constant 0 : index
    %0 = vector.load %arg1[%c0, %c0_0] : memref<512x8xbf16, #tpu.memory_space<vmem>>, vector<512x8xbf16>
    %c0_1 = arith.constant 0 : index
    %c0_2 = arith.constant 0 : index
    %1 = vector.load %arg2[%c0_1, %c0_2] : memref<8x128xbf16, #tpu.memory_space<vmem>>, vector<8x128xbf16>
    %cst = arith.constant dense<0.000000e+00> : vector<512x128xf32>
    %2 = tpu.matmul %0, %1, %cst {dimension_numbers = #tpu.dot_dimension_numbers<[1], [0], [0], [1], [0, 0, 1, 1], [], []>} : vector<512x8xbf16>, vector<8x128xbf16>, vector<512x128xf32> -> vector<512x128xf32>
    %c0_3 = arith.constant 0 : index
    %c0_4 = arith.constant 0 : index
    %3 = vector.load %arg3[%c0_3, %c0_4] : memref<1x128xf32, #tpu.memory_space<vmem>>, vector<1x128xf32>
    %4 = vector.broadcast %3 : vector<1x128xf32> to vector<512x128xf32>
    %5 = arith.addf %2, %4 : vector<512x128xf32>
    %cst_5 = arith.constant 0.000000e+00 : f32
    %6 = vector.broadcast %cst_5 : f32 to vector<512x128xf32>
    %7 = arith.maximumf %5, %6 : vector<512x128xf32>
    %8 = arith.truncf %7 : vector<512x128xf32> to vector<512x128xbf16>
    %c0_6 = arith.constant 0 : index
    %c0_7 = arith.constant 0 : index
    %9 = vector.load %arg4[%c0_6, %c0_7] : memref<128x256xbf16, #tpu.memory_space<vmem>>, vector<128x256xbf16>
    %cst_8 = arith.constant dense<0.000000e+00> : vector<512x256xf32>
    %10 = tpu.matmul %8, %9, %cst_8 {dimension_numbers = #tpu.dot_dimension_numbers<[1], [0], [0], [1], [0, 0, 1, 1], [], []>} : vector<512x128xbf16>, vector<128x256xbf16>, vector<512x256xf32> -> vector<512x256xf32>
    %c0_9 = arith.constant 0 : index
    %c0_10 = arith.constant 0 : index
    %11 = vector.load %arg5[%c0_9, %c0_10] : memref<1x256xf32, #tpu.memory_space<vmem>>, vector<1x256xf32>
    %12 = vector.broadcast %11 : vector<1x256xf32> to vector<512x256xf32>
    %13 = arith.addf %10, %12 : vector<512x256xf32>
    %cst_11 = arith.constant 0.000000e+00 : f32
    %14 = vector.broadcast %cst_11 : f32 to vector<512x256xf32>
    %15 = arith.maximumf %13, %14 : vector<512x256xf32>
    %16 = arith.truncf %15 : vector<512x256xf32> to vector<512x256xbf16>
    %c0_12 = arith.constant 0 : index
    %c0_13 = arith.constant 0 : index
    %17 = vector.load %arg6[%c0_12, %c0_13] : memref<256x4xbf16, #tpu.memory_space<vmem>>, vector<256x4xbf16>
    %cst_14 = arith.constant dense<0.000000e+00> : vector<512x4xf32>
    %18 = tpu.matmul %16, %17, %cst_14 {dimension_numbers = #tpu.dot_dimension_numbers<[1], [0], [0], [1], [0, 0, 1, 1], [], []>} : vector<512x256xbf16>, vector<256x4xbf16>, vector<512x4xf32> -> vector<512x4xf32>
    %c0_15 = arith.constant 0 : index
    %c0_16 = arith.constant 0 : index
    %19 = vector.load %arg7[%c0_15, %c0_16] : memref<1x4xf32, #tpu.memory_space<vmem>>, vector<1x4xf32>
    %20 = vector.broadcast %19 : vector<1x4xf32> to vector<512x4xf32>
    %21 = arith.addf %18, %20 : vector<512x4xf32>
    %cst_17 = arith.constant dense<0xFF800000> : vector<512xf32>
    %22 = vector.multi_reduction <maximumf>, %21, %cst_17 [1] : vector<512x4xf32> to vector<512xf32>
    %23 = vector.shape_cast %22 : vector<512xf32> to vector<512x1xf32>
    %24 = vector.broadcast %23 : vector<512x1xf32> to vector<512x4xf32>
    %25 = arith.subf %21, %24 : vector<512x4xf32>
    %26 = math.exp %25 : vector<512x4xf32>
    %cst_18 = arith.constant dense<0.000000e+00> : vector<512xf32>
    %27 = vector.multi_reduction <add>, %26, %cst_18 [1] : vector<512x4xf32> to vector<512xf32>
    %28 = vector.shape_cast %27 : vector<512xf32> to vector<512x1xf32>
    %29 = vector.broadcast %28 : vector<512x1xf32> to vector<512x4xf32>
    %30 = arith.divf %26, %29 : vector<512x4xf32>
    %c0_19 = arith.constant 0 : index
    %c0_20 = arith.constant 0 : index
    %31 = vector.load %arg8[%c0_19, %c0_20] : memref<512x4xf32, #tpu.memory_space<vmem>>, vector<512x4xf32>
    tpu.vector_store %arg8[%c0_19, %c0_20], %30 {strides = array<i32>} : memref<512x4xf32, #tpu.memory_space<vmem>>, vector<512x4xf32>,
    return
  }
  func.func @transform_0(%arg0: i32) -> (i32, i32) {
    %c0_i32 = arith.constant 0 : i32
    %c0_i32_0 = arith.constant 0 : i32
    return %arg0, %c0_i32 : i32, i32
  }
  func.func @transform_1(%arg0: i32) -> (i32, i32) {
    %c0_i32 = arith.constant 0 : i32
    %c0_i32_0 = arith.constant 0 : i32
    %c0_i32_1 = arith.constant 0 : i32
    return %c0_i32, %c0_i32_0 : i32, i32
  }
  func.func @transform_2(%arg0: i32) -> (i32, i32) {
    %c0_i32 = arith.constant 0 : i32
    %c0_i32_0 = arith.constant 0 : i32
    %c0_i32_1 = arith.constant 0 : i32
    return %c0_i32, %c0_i32_0 : i32, i32
  }
  func.func @transform_3(%arg0: i32) -> (i32, i32) {
    %c0_i32 = arith.constant 0 : i32
    %c0_i32_0 = arith.constant 0 : i32
    %c0_i32_1 = arith.constant 0 : i32
    return %c0_i32, %c0_i32_0 : i32, i32
  }
  func.func @transform_4(%arg0: i32) -> (i32, i32) {
    %c0_i32 = arith.constant 0 : i32
    %c0_i32_0 = arith.constant 0 : i32
    %c0_i32_1 = arith.constant 0 : i32
    return %c0_i32, %c0_i32_0 : i32, i32
  }
  func.func @transform_5(%arg0: i32) -> (i32, i32) {
    %c0_i32 = arith.constant 0 : i32
    %c0_i32_0 = arith.constant 0 : i32
    %c0_i32_1 = arith.constant 0 : i32
    return %c0_i32, %c0_i32_0 : i32, i32
  }
  func.func @transform_6(%arg0: i32) -> (i32, i32) {
    %c0_i32 = arith.constant 0 : i32
    %c0_i32_0 = arith.constant 0 : i32
    %c0_i32_1 = arith.constant 0 : i32
    return %c0_i32, %c0_i32_0 : i32, i32
  }
  func.func @transform_7(%arg0: i32) -> (i32, i32) {
    %c0_i32 = arith.constant 0 : i32
    %c0_i32_0 = arith.constant 0 : i32
    return %arg0, %c0_i32 : i32, i32
  }
}

</mosaic_0001>

<llo_original>
// kernel: _actor_forward_impl.1
$region0: #{_actor_forward_impl.1}
  #allocation0 [shape = 'u32[]', space=smem, size = 0x4, offset = 0x4, fixed_abs, tag = 'smem constant byte address 0x4 - core index']
  #allocation1 [shape = 'u32[72,128]{1,0:T(1,128)}', space=vmem, size = 0x9000, scoped, tag = 'internal scratch']
  %s0 = inlined_call_operand.vmem [shape: bf16[512,8], index: 0, kind: input, shape index: {}]
  %s1 = inlined_call_operand.vmem [shape: bf16[8,128], index: 1, kind: input, shape index: {}]
  %s2 = inlined_call_operand.vmem [shape: f32[1,128], index: 2, kind: input, shape index: {}]
  %s3 = inlined_call_operand.vmem [shape: bf16[128,256], index: 3, kind: input, shape index: {}]
  %s4 = inlined_call_operand.vmem [shape: f32[1,256], index: 4, kind: input, shape index: {}]
  %s5 = inlined_call_operand.vmem [shape: bf16[256,4], index: 5, kind: input, shape index: {}]
  %s6 = inlined_call_operand.vmem [shape: f32[1,4], index: 6, kind: input, shape index: {}]
  %s7 = inlined_call_operand.vmem [shape: f32[512,4], index: 7, kind: output, shape index: {}]
  %s8 = sld [smem:[#allocation0]]
  $region38: #{_actor_forward_impl.1} parent=0
    _
  %s10 = ssub.s32 1, %s8
  %s11 = scalar_select 0, %s10, %s8
  // Predicated region
  $region2: #{_actor_forward_impl.1} parent=0 // pred_check
    _
  $region3: #{_actor_forward_impl.1} parent=0 // pred_check_branch
    %13 = sbr.rel (0) target = $region5
  $region4: #{_actor_forward_impl.1} parent=0 // pred_region
    _
  $region5: #{_actor_forward_impl.1} parent=0 // pred_fallthru
    _
  // Predicated region
  $region6: #{_actor_forward_impl.1} parent=0 // pred_check
    _
  $region7: #{_actor_forward_impl.1} parent=0 // pred_check_branch
    %15 = sbr.rel (0) target = $region9
  $region8: #{_actor_forward_impl.1} parent=0 // pred_region
    _
  $region9: #{_actor_forward_impl.1} parent=0 // pred_fallthru
    _
  // Predicated region
  $region10: #{_actor_forward_impl.1} parent=0 // pred_check
    _
  $region11: #{_actor_forward_impl.1} parent=0 // pred_check_branch
    %17 = sbr.rel (0) target = $region13
  $region12: #{_actor_forward_impl.1} parent=0 // pred_region
    _
  $region13: #{_actor_forward_impl.1} parent=0 // pred_fallthru
    _
  // Predicated region
  $region14: #{_actor_forward_impl.1} parent=0 // pred_check
    _
  $region15: #{_actor_forward_impl.1} parent=0 // pred_check_branch
    %19 = sbr.rel (0) target = $region17
  $region16: #{_actor_forward_impl.1} parent=0 // pred_region
    _
  $region17: #{_actor_forward_impl.1} parent=0 // pred_fallthru
    _
  // Predicated region
  $region18: #{_actor_forward_impl.1} parent=0 // pred_check
    _
  $region19: #{_actor_forward_impl.1} parent=0 // pred_check_branch
    %21 = sbr.rel (0) target = $region21
  $region20: #{_actor_forward_impl.1} parent=0 // pred_region
    _
  $region21: #{_actor_forward_impl.1} parent=0 // pred_fallthru
    _
  // Predicated region
  $region22: #{_actor_forward_impl.1} parent=0 // pred_check
    _
  $region23: #{_actor_forward_impl.1} parent=0 // pred_check_branch
    %23 = sbr.rel (0) target = $region25
  $region24: #{_actor_forward_impl.1} parent=0 // pred_region
    _
  $region25: #{_actor_forward_impl.1} parent=0 // pred_fallthru
    _
  // Predicated region
  $region26: #{_actor_forward_impl.1} parent=0 // pred_check
    _
  $region27: #{_actor_forward_impl.1} parent=0 // pred_check_branch
    %25 = sbr.rel (0) target = $region29
  $region28: #{_actor_forward_impl.1} parent=0 // pred_region
    _
  $region29: #{_actor_forward_impl.1} parent=0 // pred_fallthru
    _
  %v27 = vld [vmem:[%s0] sm:$0xf]
  %v28 = vld [vmem:[%s0 + $0x4] sm:$0xf]
  %v29 = vld [vmem:[%s0 + $0x8] sm:$0xf]
  %v30 = vld [vmem:[%s0 + $0xc] sm:$0xf]
  %v31 = vld [vmem:[%s0 + $0x10] sm:$0xf]
  %v32 = vld [vmem:[%s0 + $0x14] sm:$0xf]
  %v33 = vld [vmem:[%s0 + $0x18] sm:$0xf]
  %v34 = vld [vmem:[%s0 + $0x1c] sm:$0xf]
  %v35 = vld [vmem:[%s0 + $0x20] sm:$0xf]
  %v36 = vld [vmem:[%s0 + $0x24] sm:$0xf]
  %v37 = vld [vmem:[%s0 + $0x28] sm:$0xf]
  %v38 = vld [vmem:[%s0 + $0x2c] sm:$0xf]
  %v39 = vld [vmem:[%s0 + $0x30] sm:$0xf]
  %v40 = vld [vmem:[%s0 + $0x34] sm:$0xf]
  %v41 = vld [vmem:[%s0 + $0x38] sm:$0xf]
  %v42 = vld [vmem:[%s0 + $0x3c] sm:$0xf]
  %v43 = vld [vmem:[%s0 + $0x40] sm:$0xf]
  %v44 = vld [vmem:[%s0 + $0x44] sm:$0xf]
  %v45 = vld [vmem:[%s0 + $0x48] sm:$0xf]
  %v46 = vld [vmem:[%s0 + $0x4c] sm:$0xf]
  %v47 = vld [vmem:[%s0 + $0x50] sm:$0xf]
  %v48 = vld [vmem:[%s0 + $0x54] sm:$0xf]
  %v49 = vld [vmem:[%s0 + $0x58] sm:$0xf]
  %v50 = vld [vmem:[%s0 + $0x5c] sm:$0xf]
  %v51 = vld [vmem:[%s0 + $0x60] sm:$0xf]
  %v52 = vld [vmem:[%s0 + $0x64] sm:$0xf]
  %v53 = vld [vmem:[%s0 + $0x68] sm:$0xf]
  %v54 = vld [vmem:[%s0 + $0x6c] sm:$0xf]
  %v55 = vld [vmem:[%s0 + $0x70] sm:$0xf]
  %v56 = vld [vmem:[%s0 + $0x74] sm:$0xf]
  %v57 = vld [vmem:[%s0 + $0x78] sm:$0xf]
  %v58 = vld [vmem:[%s0 + $0x7c] sm:$0xf]
  %v59 = vld [vmem:[%s0 + $0x80] sm:$0xf]
  %v60 = vld [vmem:[%s0 + $0x84] sm:$0xf]
  %v61 = vld [vmem:[%s0 + $0x88] sm:$0xf]
  %v62 = vld [vmem:[%s0 + $0x8c] sm:$0xf]
  %v63 = vld [vmem:[%s0 + $0x90] sm:$0xf]
  %v64 = vld [vmem:[%s0 + $0x94] sm:$0xf]
  %v65 = vld [vmem:[%s0 + $0x98] sm:$0xf]
  %v66 = vld [vmem:[%s0 + $0x9c] sm:$0xf]
  %v67 = vld [vmem:[%s0 + $0xa0] sm:$0xf]
  %v68 = vld [vmem:[%s0 + $0xa4] sm:$0xf]
  %v69 = vld [vmem:[%s0 + $0xa8] sm:$0xf]
  %v70 = vld [vmem:[%s0 + $0xac] sm:$0xf]
  %v71 = vld [vmem:[%s0 + $0xb0] sm:$0xf]
  %v72 = vld [vmem:[%s0 + $0xb4] sm:$0xf]
  %v73 = vld [vmem:[%s0 + $0xb8] sm:$0xf]
  %v74 = vld [vmem:[%s0 + $0xbc] sm:$0xf]
  %v75 = vld [vmem:[%s0 + $0xc0] sm:$0xf]
  %v76 = vld [vmem:[%s0 + $0xc4] sm:$0xf]
  %v77 = vld [vmem:[%s0 + $0xc8] sm:$0xf]
  %v78 = vld [vmem:[%s0 + $0xcc] sm:$0xf]
  %v79 = vld [vmem:[%s0 + $0xd0] sm:$0xf]
  %v80 = vld [vmem:[%s0 + $0xd4] sm:$0xf]
  %v81 = vld [vmem:[%s0 + $0xd8] sm:$0xf]
  %v82 = vld [vmem:[%s0 + $0xdc] sm:$0xf]
  %v83 = vld [vmem:[%s0 + $0xe0] sm:$0xf]
  %v84 = vld [vmem:[%s0 + $0xe4] sm:$0xf]
  %v85 = vld [vmem:[%s0 + $0xe8] sm:$0xf]
  %v86 = vld [vmem:[%s0 + $0xec] sm:$0xf]
  %v87 = vld [vmem:[%s0 + $0xf0] sm:$0xf]
  %v88 = vld [vmem:[%s0 + $0xf4] sm:$0xf]
  %v89 = vld [vmem:[%s0 + $0xf8] sm:$0xf]
  %v90 = vld [vmem:[%s0 + $0xfc] sm:$0xf]
  %v91 = vld [vmem:[%s1] sm:$0xf]
  %v92 = vld [vmem:[%s2] sm:$0x1]
  %v94 = vperm.slane %v92, 0
  %v160 = vunpack.c.l.b16 %v27
  %v161 = vunpack.c.l.b16 %v28
  %v162 = vunpack.c.l.b16 %v29
  %v163 = vunpack.c.l.b16 %v30
  %v164 = vunpack.c.l.b16 %v31
  %v165 = vunpack.c.l.b16 %v32
  %v166 = vunpack.c.l.b16 %v33
  %v167 = vunpack.c.l.b16 %v34
  %v168 = vunpack.c.l.b16 %v35
  %v169 = vunpack.c.l.b16 %v36
  %v170 = vunpack.c.l.b16 %v37
  %v171 = vunpack.c.l.b16 %v38
  %v172 = vunpack.c.l.b16 %v39
  %v173 = vunpack.c.l.b16 %v40
  %v174 = vunpack.c.l.b16 %v41
  %v175 = vunpack.c.l.b16 %v42
  %v176 = vunpack.c.l.b16 %v43
  %v177 = vunpack.c.l.b16 %v44
  %v178 = vunpack.c.l.b16 %v45
  %v179 = vunpack.c.l.b16 %v46
  %v180 = vunpack.c.l.b16 %v47
  %v181 = vunpack.c.l.b16 %v48
  %v182 = vunpack.c.l.b16 %v49
  %v183 = vunpack.c.l.b16 %v50
  %v184 = vunpack.c.l.b16 %v51
  %v185 = vunpack.c.l.b16 %v52
  %v186 = vunpack.c.l.b16 %v53
  %v187 = vunpack.c.l.b16 %v54
  %v188 = vunpack.c.l.b16 %v55
  %v189 = vunpack.c.l.b16 %v56
  %v190 = vunpack.c.l.b16 %v57
  %v191 = vunpack.c.l.b16 %v58
  %v192 = vunpack.c.l.b16 %v59
  %v193 = vunpack.c.l.b16 %v60
  %v194 = vunpack.c.l.b16 %v61
  %v195 = vunpack.c.l.b16 %v62
  %v196 = vunpack.c.l.b16 %v63
  %v197 = vunpack.c.l.b16 %v64
  %v198 = vunpack.c.l.b16 %v65
  %v199 = vunpack.c.l.b16 %v66
  %v200 = vunpack.c.l.b16 %v67
  %v201 = vunpack.c.l.b16 %v68
  %v202 = vunpack.c.l.b16 %v69
  %v203 = vunpack.c.l.b16 %v70
  %v204 = vunpack.c.l.b16 %v71
  %v205 = vunpack.c.l.b16 %v72
  %v206 = vunpack.c.l.b16 %v73
  %v207 = vunpack.c.l.b16 %v74
  %v208 = vunpack.c.l.b16 %v75
  %v209 = vunpack.c.l.b16 %v76
  %v210 = vunpack.c.l.b16 %v77
  %v211 = vunpack.c.l.b16 %v78
  %v212 = vunpack.c.l.b16 %v79
  %v213 = vunpack.c.l.b16 %v80
  %v214 = vunpack.c.l.b16 %v81
  %v215 = vunpack.c.l.b16 %v82
  %v216 = vunpack.c.l.b16 %v83
  %v217 = vunpack.c.l.b16 %v84
  %v218 = vunpack.c.l.b16 %v85
  %v219 = vunpack.c.l.b16 %v86
  %v220 = vunpack.c.l.b16 %v87
  %v221 = vunpack.c.l.b16 %v88
  %v222 = vunpack.c.l.b16 %v89
  %v223 = vunpack.c.l.b16 %v90
  %v224 = vpack.c.b16 %v161, %v160
  %v225 = vpack.c.b16 %v163, %v162
  %v226 = vpack.c.b16 %v165, %v164
  %v227 = vpack.c.b16 %v167, %v166
  %v228 = vpack.c.b16 %v169, %v168
  %v229 = vpack.c.b16 %v171, %v170
  %v230 = vpack.c.b16 %v173, %v172
  %v231 = vpack.c.b16 %v175, %v174
  %v232 = vpack.c.b16 %v177, %v176
  %v233 = vpack.c.b16 %v179, %v178
  %v234 = vpack.c.b16 %v181, %v180
  %v235 = vpack.c.b16 %v183, %v182
  %v236 = vpack.c.b16 %v185, %v184
  %v237 = vpack.c.b16 %v187, %v186
  %v238 = vpack.c.b16 %v189, %v188
  %v239 = vpack.c.b16 %v191, %v190
  %v240 = vpack.c.b16 %v193, %v192
  %v241 = vpack.c.b16 %v195, %v194
  %v242 = vpack.c.b16 %v197, %v196
  %v243 = vpack.c.b16 %v199, %v198
  %v244 = vpack.c.b16 %v201, %v200
  %v245 = vpack.c.b16 %v203, %v202
  %v246 = vpack.c.b16 %v205, %v204
  %v247 = vpack.c.b16 %v207, %v206
  %v248 = vpack.c.b16 %v209, %v208
  %v249 = vpack.c.b16 %v211, %v210
  %v250 = vpack.c.b16 %v213, %v212
  %v251 = vpack.c.b16 %v215, %v214
  %v252 = vpack.c.b16 %v217, %v216
  %v253 = vpack.c.b16 %v219, %v218
  %v254 = vpack.c.b16 %v221, %v220
  %v255 = vpack.c.b16 %v223, %v222
  %vm256 = vcmask 64512
  %v258 = vsel %vm256, %v224, 0
  %v261 = vsel %vm256, %v225, 0
  %v264 = vsel %vm256, %v226, 0
  %v267 = vsel %vm256, %v227, 0
  %v270 = vsel %vm256, %v228, 0
  %v273 = vsel %vm256, %v229, 0
  %v276 = vsel %vm256, %v230, 0
  %v279 = vsel %vm256, %v231, 0
  %v282 = vsel %vm256, %v232, 0
  %v285 = vsel %vm256, %v233, 0
  %v288 = vsel %vm256, %v234, 0
  %v291 = vsel %vm256, %v235, 0
  %v294 = vsel %vm256, %v236, 0
  %v297 = vsel %vm256, %v237, 0
  %v300 = vsel %vm256, %v238, 0
  %v303 = vsel %vm256, %v239, 0
  %v306 = vsel %vm256, %v240, 0
  %v309 = vsel %vm256, %v241, 0
  %v312 = vsel %vm256, %v242, 0
  %v315 = vsel %vm256, %v243, 0
  %v318 = vsel %vm256, %v244, 0
  %v321 = vsel %vm256, %v245, 0
  %v324 = vsel %vm256, %v246, 0
  %v327 = vsel %vm256, %v247, 0
  %v330 = vsel %vm256, %v248, 0
  %v333 = vsel %vm256, %v249, 0
  %v336 = vsel %vm256, %v250, 0
  %v339 = vsel %vm256, %v251, 0
  %v342 = vsel %vm256, %v252, 0
  %v345 = vsel %vm256, %v253, 0
  %v348 = vsel %vm256, %v254, 0
  %v351 = vsel %vm256, %v255, 0
  %vm353 = vcmask 1043456
  %v355 = vsel %vm353, %v91, 0
  %357 = vmatpush.bf16.msra.mxu0 0
  %358 = vmatpush.bf16.msra.mxu0 0
  %359 = vmatpush.bf16.msra.mxu0 0
  %360 = vmatpush.bf16.msra.mxu0 0
  %361 = vmatpush.bf16.msra.mxu0 0
  %362 = vmatpush.bf16.msra.mxu0 0
  %363 = vmatpush.bf16.msra.mxu0 0
  %364 = vmatpush.bf16.msra.mxu0 %v355
  %365 = vmatmul.bf16.gmra.mxu0 %v258
  %v366 = vpop.f32.mrf.mxu0
  %v367 = vadd.f32 %v94, %v366
  %v368 = vpop.f32.mrf.mxu0
  %v369 = vadd.f32 %v94, %v368
  %370 = vmatmul.bf16.gmra.mxu0 %v261
  %v371 = vpop.f32.mrf.mxu0
  %v372 = vadd.f32 %v94, %v371
  %v373 = vpop.f32.mrf.mxu0
  %v374 = vadd.f32 %v94, %v373
  %375 = vmatmul.bf16.gmra.mxu0 %v264
  %v376 = vpop.f32.mrf.mxu0
  %v377 = vadd.f32 %v94, %v376
  %v378 = vpop.f32.mrf.mxu0
  %v379 = vadd.f32 %v94, %v378
  %380 = vmatmul.bf16.gmra.mxu0 %v267
  %v381 = vpop.f32.mrf.mxu0
  %v382 = vadd.f32 %v94, %v381
  %v383 = vpop.f32.mrf.mxu0
  %v384 = vadd.f32 %v94, %v383
  %385 = vmatmul.bf16.gmra.mxu0 %v270
  %v386 = vpop.f32.mrf.mxu0
  %v387 = vadd.f32 %v94, %v386
  %v388 = vpop.f32.mrf.mxu0
  %v389 = vadd.f32 %v94, %v388
  %390 = vmatmul.bf16.gmra.mxu0 %v273
  %v391 = vpop.f32.mrf.mxu0
  %v392 = vadd.f32 %v94, %v391
  %v393 = vpop.f32.mrf.mxu0
  %v394 = vadd.f32 %v94, %v393
  %395 = vmatmul.bf16.gmra.mxu0 %v276
  %v396 = vpop.f32.mrf.mxu0
  %v397 = vadd.f32 %v94, %v396
  %v398 = vpop.f32.mrf.mxu0
  %v399 = vadd.f32 %v94, %v398
  %400 = vmatmul.bf16.gmra.mxu0 %v279
  %v401 = vpop.f32.mrf.mxu0
  %v402 = vadd.f32 %v94, %v401
  %v403 = vpop.f32.mrf.mxu0
  %v404 = vadd.f32 %v94, %v403
  %405 = vmatmul.bf16.gmra.mxu0 %v282
  %v406 = vpop.f32.mrf.mxu0
  %v407 = vadd.f32 %v94, %v406
  %v408 = vpop.f32.mrf.mxu0
  %v409 = vadd.f32 %v94, %v408
  %410 = vmatmul.bf16.gmra.mxu0 %v285
  %v411 = vpop.f32.mrf.mxu0
  %v412 = vadd.f32 %v94, %v411
  %v413 = vpop.f32.mrf.mxu0
  %v414 = vadd.f32 %v94, %v413
  %415 = vmatmul.bf16.gmra.mxu0 %v288
  %v416 = vpop.f32.mrf.mxu0
  %v417 = vadd.f32 %v94, %v416
  %v418 = vpop.f32.mrf.mxu0
  %v419 = vadd.f32 %v94, %v418
  %420 = vmatmul.bf16.gmra.mxu0 %v291
  %v421 = vpop.f32.mrf.mxu0
  %v422 = vadd.f32 %v94, %v421
  %v423 = vpop.f32.mrf.mxu0
  %v424 = vadd.f32 %v94, %v423
  %425 = vmatmul.bf16.gmra.mxu0 %v294
  %v426 = vpop.f32.mrf.mxu0
  %v427 = vadd.f32 %v94, %v426
  %v428 = vpop.f32.mrf.mxu0
  %v429 = vadd.f32 %v94, %v428
  %430 = vmatmul.bf16.gmra.mxu0 %v297
  %v431 = vpop.f32.mrf.mxu0
  %v432 = vadd.f32 %v94, %v431
  %v433 = vpop.f32.mrf.mxu0
  %v434 = vadd.f32 %v94, %v433
  %435 = vmatmul.bf16.gmra.mxu0 %v300
  %v436 = vpop.f32.mrf.mxu0
  %v437 = vadd.f32 %v94, %v436
  %v438 = vpop.f32.mrf.mxu0
  %v439 = vadd.f32 %v94, %v438
  %440 = vmatmul.bf16.gmra.mxu0 %v303
  %v441 = vpop.f32.mrf.mxu0
  %v442 = vadd.f32 %v94, %v441
  %v443 = vpop.f32.mrf.mxu0
  %v444 = vadd.f32 %v94, %v443
  %445 = vmatmul.bf16.gmra.mxu0 %v306
  %v446 = vpop.f32.mrf.mxu0
  %v447 = vadd.f32 %v94, %v446
  %v448 = vpop.f32.mrf.mxu0
  %v449 = vadd.f32 %v94, %v448
  %450 = vmatmul.bf16.gmra.mxu0 %v309
  %v451 = vpop.f32.mrf.mxu0
  %v452 = vadd.f32 %v94, %v451
  %v453 = vpop.f32.mrf.mxu0
  %v454 = vadd.f32 %v94, %v453
  %455 = vmatmul.bf16.gmra.mxu0 %v312
  %v456 = vpop.f32.mrf.mxu0
  %v457 = vadd.f32 %v94, %v456
  %v458 = vpop.f32.mrf.mxu0
  %v459 = vadd.f32 %v94, %v458
  %460 = vmatmul.bf16.gmra.mxu0 %v315
  %v461 = vpop.f32.mrf.mxu0
  %v462 = vadd.f32 %v94, %v461
  %v463 = vpop.f32.mrf.mxu0
  %v464 = vadd.f32 %v94, %v463
  %465 = vmatmul.bf16.gmra.mxu0 %v318
  %v466 = vpop.f32.mrf.mxu0
  %v467 = vadd.f32 %v94, %v466
  %v468 = vpop.f32.mrf.mxu0
  %v469 = vadd.f32 %v94, %v468
  %470 = vmatmul.bf16.gmra.mxu0 %v321
  %v471 = vpop.f32.mrf.mxu0
  %v472 = vadd.f32 %v94, %v471
  %v473 = vpop.f32.mrf.mxu0
  %v474 = vadd.f32 %v94, %v473
  %475 = vmatmul.bf16.gmra.mxu0 %v324
  %v476 = vpop.f32.mrf.mxu0
  %v477 = vadd.f32 %v94, %v476
  %v478 = vpop.f32.mrf.mxu0
  %v479 = vadd.f32 %v94, %v478
  %480 = vmatmul.bf16.gmra.mxu0 %v327
  %v481 = vpop.f32.mrf.mxu0
  %v482 = vadd.f32 %v94, %v481
  %v483 = vpop.f32.mrf.mxu0
  %v484 = vadd.f32 %v94, %v483
  %485 = vmatmul.bf16.gmra.mxu0 %v330
  %v486 = vpop.f32.mrf.mxu0
  %v487 = vadd.f32 %v94, %v486
  %v488 = vpop.f32.mrf.mxu0
  %v489 = vadd.f32 %v94, %v488
  %490 = vmatmul.bf16.gmra.mxu0 %v333
  %v491 = vpop.f32.mrf.mxu0
  %v492 = vadd.f32 %v94, %v491
  %v493 = vpop.f32.mrf.mxu0
  %v494 = vadd.f32 %v94, %v493
  %495 = vmatmul.bf16.gmra.mxu0 %v336
  %v496 = vpop.f32.mrf.mxu0
  %v497 = vadd.f32 %v94, %v496
  %v498 = vpop.f32.mrf.mxu0
  %v499 = vadd.f32 %v94, %v498
  %500 = vmatmul.bf16.gmra.mxu0 %v339
  %v501 = vpop.f32.mrf.mxu0
  %v502 = vadd.f32 %v94, %v501
  %v503 = vpop.f32.mrf.mxu0
  %v504 = vadd.f32 %v94, %v503
  %505 = vmatmul.bf16.gmra.mxu0 %v342
  %v506 = vpop.f32.mrf.mxu0
  %v507 = vadd.f32 %v94, %v506
  %v508 = vpop.f32.mrf.mxu0
  %v509 = vadd.f32 %v94, %v508
  %510 = vmatmul.bf16.gmra.mxu0 %v345
  %v511 = vpop.f32.mrf.mxu0
  %v512 = vadd.f32 %v94, %v511
  %v513 = vpop.f32.mrf.mxu0
  %v514 = vadd.f32 %v94, %v513
  %515 = vmatmul.bf16.gmra.mxu0 %v348
  %v516 = vpop.f32.mrf.mxu0
  %v517 = vadd.f32 %v94, %v516
  %v518 = vpop.f32.mrf.mxu0
  %v519 = vadd.f32 %v94, %v518
  %520 = vmatmul.bf16.gmra.mxu0 %v351
  %v521 = vpop.f32.mrf.mxu0
  %v522 = vadd.f32 %v94, %v521
  %v523 = vpop.f32.mrf.mxu0
  %v524 = vadd.f32 %v94, %v523
  %525 = vdwg.mxu0
  %v526 = vmax.f32 %v367, 0.0
  %v527 = vmax.f32 %v369, 0.0
  %v528 = vmax.f32 %v372, 0.0
  %v529 = vmax.f32 %v374, 0.0
  %v530 = vmax.f32 %v377, 0.0
  %v531 = vmax.f32 %v379, 0.0
  %v532 = vmax.f32 %v382, 0.0
  %v533 = vmax.f32 %v384, 0.0
  %v534 = vmax.f32 %v387, 0.0
  %v535 = vmax.f32 %v389, 0.0
  %v536 = vmax.f32 %v392, 0.0
  %v537 = vmax.f32 %v394, 0.0
  %v538 = vmax.f32 %v397, 0.0
  %v539 = vmax.f32 %v399, 0.0
  %v540 = vmax.f32 %v402, 0.0
  %v541 = vmax.f32 %v404, 0.0
  %v542 = vmax.f32 %v407, 0.0
  %v543 = vmax.f32 %v409, 0.0
  %v544 = vmax.f32 %v412, 0.0
  %v545 = vmax.f32 %v414, 0.0
  %v546 = vmax.f32 %v417, 0.0
  %v547 = vmax.f32 %v419, 0.0
  %v548 = vmax.f32 %v422, 0.0
  %v549 = vmax.f32 %v424, 0.0
  %v550 = vmax.f32 %v427, 0.0
  %v551 = vmax.f32 %v429, 0.0
  %v552 = vmax.f32 %v432, 0.0
  %v553 = vmax.f32 %v434, 0.0
  %v554 = vmax.f32 %v437, 0.0
  %v555 = vmax.f32 %v439, 0.0
  %v556 = vmax.f32 %v442, 0.0
  %v557 = vmax.f32 %v444, 0.0
  %v558 = vmax.f32 %v447, 0.0
  %v559 = vmax.f32 %v449, 0.0
  %v560 = vmax.f32 %v452, 0.0
  %v561 = vmax.f32 %v454, 0.0
  %v562 = vmax.f32 %v457, 0.0
  %v563 = vmax.f32 %v459, 0.0
  %v564 = vmax.f32 %v462, 0.0
  %v565 = vmax.f32 %v464, 0.0
  %v566 = vmax.f32 %v467, 0.0
  %v567 = vmax.f32 %v469, 0.0
  %v568 = vmax.f32 %v472, 0.0
  %v569 = vmax.f32 %v474, 0.0
  %v570 = vmax.f32 %v477, 0.0
  %v571 = vmax.f32 %v479, 0.0
  %v572 = vmax.f32 %v482, 0.0
  %v573 = vmax.f32 %v484, 0.0
  %v574 = vmax.f32 %v487, 0.0
  %v575 = vmax.f32 %v489, 0.0
  %v576 = vmax.f32 %v492, 0.0
  %v577 = vmax.f32 %v494, 0.0
  %v578 = vmax.f32 %v497, 0.0
  %v579 = vmax.f32 %v499, 0.0
  %v580 = vmax.f32 %v502, 0.0
  %v581 = vmax.f32 %v504, 0.0
  %v582 = vmax.f32 %v507, 0.0
  %v583 = vmax.f32 %v509, 0.0
  %v584 = vmax.f32 %v512, 0.0
  %v585 = vmax.f32 %v514, 0.0
  %v586 = vmax.f32 %v517, 0.0
  %v587 = vmax.f32 %v519, 0.0
  %v588 = vmax.f32 %v522, 0.0
  %v589 = vmax.f32 %v524, 0.0
  %v590 = vpack.c.bf16 %v527, %v526
  %v591 = vpack.c.bf16 %v529, %v528
  %v592 = vpack.c.bf16 %v531, %v530
  %v593 = vpack.c.bf16 %v533, %v532
  %v594 = vpack.c.bf16 %v535, %v534
  %v595 = vpack.c.bf16 %v537, %v536
  %v596 = vpack.c.bf16 %v539, %v538
  %v597 = vpack.c.bf16 %v541, %v540
  %v598 = vpack.c.bf16 %v543, %v542
  %v599 = vpack.c.bf16 %v545, %v544
  %v600 = vpack.c.bf16 %v547, %v546
  %v601 = vpack.c.bf16 %v549, %v548
  %v602 = vpack.c.bf16 %v551, %v550
  %v603 = vpack.c.bf16 %v553, %v552
  %v604 = vpack.c.bf16 %v555, %v554
  %v605 = vpack.c.bf16 %v557, %v556
  %v606 = vpack.c.bf16 %v559, %v558
  %v607 = vpack.c.bf16 %v561, %v560
  %v608 = vpack.c.bf16 %v563, %v562
  %v609 = vpack.c.bf16 %v565, %v564
  %v610 = vpack.c.bf16 %v567, %v566
  %v611 = vpack.c.bf16 %v569, %v568
  %v612 = vpack.c.bf16 %v571, %v570
  %v613 = vpack.c.bf16 %v573, %v572
  %v614 = vpack.c.bf16 %v575, %v574
  %v615 = vpack.c.bf16 %v577, %v576
  %v616 = vpack.c.bf16 %v579, %v578
  %v617 = vpack.c.bf16 %v581, %v580
  %v618 = vpack.c.bf16 %v583, %v582
  %v619 = vpack.c.bf16 %v585, %v584
  %v620 = vpack.c.bf16 %v587, %v586
  %v621 = vpack.c.bf16 %v589, %v588
  %v622 = vld [vmem:[%s3] sm:$0xff]
  %v623 = vld [vmem:[%s3 + $0x8] sm:$0xff]
  %v624 = vld [vmem:[%s3 + $0x10] sm:$0xff]
  %v625 = vld [vmem:[%s3 + $0x18] sm:$0xff]
  %v626 = vld [vmem:[%s3 + $0x20] sm:$0xff]
  %v627 = vld [vmem:[%s3 + $0x28] sm:$0xff]
  %v628 = vld [vmem:[%s3 + $0x30] sm:$0xff]
  %v629 = vld [vmem:[%s3 + $0x38] sm:$0xff]
  %v630 = vld [vmem:[%s3 + $0x40] sm:$0xff]
  %v631 = vld [vmem:[%s3 + $0x48] sm:$0xff]
  %v632 = vld [vmem:[%s3 + $0x50] sm:$0xff]
  %v633 = vld [vmem:[%s3 + $0x58] sm:$0xff]
  %v634 = vld [vmem:[%s3 + $0x60] sm:$0xff]
  %v635 = vld [vmem:[%s3 + $0x68] sm:$0xff]
  %v636 = vld [vmem:[%s3 + $0x70] sm:$0xff]
  %v637 = vld [vmem:[%s3 + $0x78] sm:$0xff]
  %v638 = vld [vmem:[%s4] sm:$0x3]
  %v640 = vperm.slane %v638, 0
  %v641 = vperm.slane %v638, 1
  %v660 = vunpack.c.l.b16 %v622
  %v661 = vunpack.c.h.b16 %v622
  %v662 = vunpack.c.l.b16 %v623
  %v663 = vunpack.c.h.b16 %v623
  %v664 = vunpack.c.l.b16 %v624
  %v665 = vunpack.c.h.b16 %v624
  %v666 = vunpack.c.l.b16 %v625
  %v667 = vunpack.c.h.b16 %v625
  %v668 = vunpack.c.l.b16 %v626
  %v669 = vunpack.c.h.b16 %v626
  %v670 = vunpack.c.l.b16 %v627
  %v671 = vunpack.c.h.b16 %v627
  %v672 = vunpack.c.l.b16 %v628
  %v673 = vunpack.c.h.b16 %v628
  %v674 = vunpack.c.l.b16 %v629
  %v675 = vunpack.c.h.b16 %v629
  %v676 = vunpack.c.l.b16 %v630
  %v677 = vunpack.c.h.b16 %v630
  %v678 = vunpack.c.l.b16 %v631
  %v679 = vunpack.c.h.b16 %v631
  %v680 = vunpack.c.l.b16 %v632
  %v681 = vunpack.c.h.b16 %v632
  %v682 = vunpack.c.l.b16 %v633
  %v683 = vunpack.c.h.b16 %v633
  %v684 = vunpack.c.l.b16 %v634
  %v685 = vunpack.c.h.b16 %v634
  %v686 = vunpack.c.l.b16 %v635
  %v687 = vunpack.c.h.b16 %v635
  %v688 = vunpack.c.l.b16 %v636
  %v689 = vunpack.c.h.b16 %v636
  %v690 = vunpack.c.l.b16 %v637
  %v691 = vunpack.c.h.b16 %v637
  %v692 = vpack.c.b16 %v662, %v660
  %v693 = vpack.c.b16 %v663, %v661
  %v694 = vpack.c.b16 %v666, %v664
  %v695 = vpack.c.b16 %v667, %v665
  %v696 = vpack.c.b16 %v670, %v668
  %v697 = vpack.c.b16 %v671, %v669
  %v698 = vpack.c.b16 %v674, %v672
  %v699 = vpack.c.b16 %v675, %v673
  %v700 = vpack.c.b16 %v678, %v676
  %v701 = vpack.c.b16 %v679, %v677
  %v702 = vpack.c.b16 %v682, %v680
  %v703 = vpack.c.b16 %v683, %v681
  %v704 = vpack.c.b16 %v686, %v684
  %v705 = vpack.c.b16 %v687, %v685
  %v706 = vpack.c.b16 %v690, %v688
  %v707 = vpack.c.b16 %v691, %v689
  %724 = vmatpush.bf16.msra.mxu0 %v706
  %725 = vmatpush.bf16.msra.mxu0 %v704
  %726 = vmatpush.bf16.msra.mxu0 %v702
  %727 = vmatpush.bf16.msra.mxu0 %v700
  %728 = vmatpush.bf16.msra.mxu0 %v698
  %729 = vmatpush.bf16.msra.mxu0 %v696
  %730 = vmatpush.bf16.msra.mxu0 %v694
  %731 = vmatpush.bf16.msra.mxu0 %v692
  %732 = vmatmul.bf16.gmra.mxu0 %v590
  %v733 = vpop.f32.mrf.mxu0
  %v734 = vadd.f32 %v640, %v733
  %v735 = vpop.f32.mrf.mxu0
  %v736 = vadd.f32 %v640, %v735
  %737 = vmatmul.bf16.gmra.mxu0 %v591
  %v738 = vpop.f32.mrf.mxu0
  %v739 = vadd.f32 %v640, %v738
  %v740 = vpop.f32.mrf.mxu0
  %v741 = vadd.f32 %v640, %v740
  %742 = vmatmul.bf16.gmra.mxu0 %v592
  %v743 = vpop.f32.mrf.mxu0
  %v744 = vadd.f32 %v640, %v743
  %v745 = vpop.f32.mrf.mxu0
  %v746 = vadd.f32 %v640, %v745
  %747 = vmatmul.bf16.gmra.mxu0 %v593
  %v748 = vpop.f32.mrf.mxu0
  %v749 = vadd.f32 %v640, %v748
  %v750 = vpop.f32.mrf.mxu0
  %v751 = vadd.f32 %v640, %v750
  %752 = vmatmul.bf16.gmra.mxu0 %v594
  %v753 = vpop.f32.mrf.mxu0
  %v754 = vadd.f32 %v640, %v753
  %v755 = vpop.f32.mrf.mxu0
  %v756 = vadd.f32 %v640, %v755
  %757 = vmatmul.bf16.gmra.mxu0 %v595
  %v758 = vpop.f32.mrf.mxu0
  %v759 = vadd.f32 %v640, %v758
  %v760 = vpop.f32.mrf.mxu0
  %v761 = vadd.f32 %v640, %v760
  %762 = vmatmul.bf16.gmra.mxu0 %v596
  %v763 = vpop.f32.mrf.mxu0
  %v764 = vadd.f32 %v640, %v763
  %v765 = vpop.f32.mrf.mxu0
  %v766 = vadd.f32 %v640, %v765
  %767 = vmatmul.bf16.gmra.mxu0 %v597
  %v768 = vpop.f32.mrf.mxu0
  %v769 = vadd.f32 %v640, %v768
  %v770 = vpop.f32.mrf.mxu0
  %v771 = vadd.f32 %v640, %v770
  %772 = vmatmul.bf16.gmra.mxu0 %v598
  %v773 = vpop.f32.mrf.mxu0
  %v774 = vadd.f32 %v640, %v773
  %v775 = vpop.f32.mrf.mxu0
  %v776 = vadd.f32 %v640, %v775
  %777 = vmatmul.bf16.gmra.mxu0 %v599
  %v778 = vpop.f32.mrf.mxu0
  %v779 = vadd.f32 %v640, %v778
  %v780 = vpop.f32.mrf.mxu0
  %v781 = vadd.f32 %v640, %v780
  %782 = vmatmul.bf16.gmra.mxu0 %v600
  %v783 = vpop.f32.mrf.mxu0
  %v784 = vadd.f32 %v640, %v783
  %v785 = vpop.f32.mrf.mxu0
  %v786 = vadd.f32 %v640, %v785
  %787 = vmatmul.bf16.gmra.mxu0 %v601
  %v788 = vpop.f32.mrf.mxu0
  %v789 = vadd.f32 %v640, %v788
  %v790 = vpop.f32.mrf.mxu0
  %v791 = vadd.f32 %v640, %v790
  %792 = vmatmul.bf16.gmra.mxu0 %v602
  %v793 = vpop.f32.mrf.mxu0
  %v794 = vadd.f32 %v640, %v793
  %v795 = vpop.f32.mrf.mxu0
  %v796 = vadd.f32 %v640, %v795
  %797 = vmatmul.bf16.gmra.mxu0 %v603
  %v798 = vpop.f32.mrf.mxu0
  %v799 = vadd.f32 %v640, %v798
  %v800 = vpop.f32.mrf.mxu0
  %v801 = vadd.f32 %v640, %v800
  %802 = vmatmul.bf16.gmra.mxu0 %v604
  %v803 = vpop.f32.mrf.mxu0
  %v804 = vadd.f32 %v640, %v803
  %v805 = vpop.f32.mrf.mxu0
  %v806 = vadd.f32 %v640, %v805
  %807 = vmatmul.bf16.gmra.mxu0 %v605
  %v808 = vpop.f32.mrf.mxu0
  %v809 = vadd.f32 %v640, %v808
  %v810 = vpop.f32.mrf.mxu0
  %v811 = vadd.f32 %v640, %v810
  %812 = vmatmul.bf16.gmra.mxu0 %v606
  %v813 = vpop.f32.mrf.mxu0
  %v814 = vadd.f32 %v640, %v813
  %v815 = vpop.f32.mrf.mxu0
  %v816 = vadd.f32 %v640, %v815
  %817 = vmatmul.bf16.gmra.mxu0 %v607
  %v818 = vpop.f32.mrf.mxu0
  %v819 = vadd.f32 %v640, %v818
  %v820 = vpop.f32.mrf.mxu0
  %v821 = vadd.f32 %v640, %v820
  %822 = vmatmul.bf16.gmra.mxu0 %v608
  %v823 = vpop.f32.mrf.mxu0
  %v824 = vadd.f32 %v640, %v823
  %v825 = vpop.f32.mrf.mxu0
  %v826 = vadd.f32 %v640, %v825
  %827 = vmatmul.bf16.gmra.mxu0 %v609
  %v828 = vpop.f32.mrf.mxu0
  %v829 = vadd.f32 %v640, %v828
  %v830 = vpop.f32.mrf.mxu0
  %v831 = vadd.f32 %v640, %v830
  %832 = vmatmul.bf16.gmra.mxu0 %v610
  %v833 = vpop.f32.mrf.mxu0
  %v834 = vadd.f32 %v640, %v833
  %v835 = vpop.f32.mrf.mxu0
  %v836 = vadd.f32 %v640, %v835
  %837 = vmatmul.bf16.gmra.mxu0 %v611
  %v838 = vpop.f32.mrf.mxu0
  %v839 = vadd.f32 %v640, %v838
  %v840 = vpop.f32.mrf.mxu0
  %v841 = vadd.f32 %v640, %v840
  %842 = vmatmul.bf16.gmra.mxu0 %v612
  %v843 = vpop.f32.mrf.mxu0
  %v844 = vadd.f32 %v640, %v843
  %v845 = vpop.f32.mrf.mxu0
  %v846 = vadd.f32 %v640, %v845
  %847 = vmatmul.bf16.gmra.mxu0 %v613
  %v848 = vpop.f32.mrf.mxu0
  %v849 = vadd.f32 %v640, %v848
  %v850 = vpop.f32.mrf.mxu0
  %v851 = vadd.f32 %v640, %v850
  %852 = vmatmul.bf16.gmra.mxu0 %v614
  %v853 = vpop.f32.mrf.mxu0
  %v854 = vadd.f32 %v640, %v853
  %v855 = vpop.f32.mrf.mxu0
  %v856 = vadd.f32 %v640, %v855
  %857 = vmatmul.bf16.gmra.mxu0 %v615
  %v858 = vpop.f32.mrf.mxu0
  %v859 = vadd.f32 %v640, %v858
  %v860 = vpop.f32.mrf.mxu0
  %v861 = vadd.f32 %v640, %v860
  %862 = vmatmul.bf16.gmra.mxu0 %v616
  %v863 = vpop.f32.mrf.mxu0
  %v864 = vadd.f32 %v640, %v863
  %v865 = vpop.f32.mrf.mxu0
  %v866 = vadd.f32 %v640, %v865
  %867 = vmatmul.bf16.gmra.mxu0 %v617
  %v868 = vpop.f32.mrf.mxu0
  %v869 = vadd.f32 %v640, %v868
  %v870 = vpop.f32.mrf.mxu0
  %v871 = vadd.f32 %v640, %v870
  %872 = vmatmul.bf16.gmra.mxu0 %v618
  %v873 = vpop.f32.mrf.mxu0
  %v874 = vadd.f32 %v640, %v873
  %v875 = vpop.f32.mrf.mxu0
  %v876 = vadd.f32 %v640, %v875
  %877 = vmatmul.bf16.gmra.mxu0 %v619
  %v878 = vpop.f32.mrf.mxu0
  %v879 = vadd.f32 %v640, %v878
  %v880 = vpop.f32.mrf.mxu0
  %v881 = vadd.f32 %v640, %v880
  %882 = vmatmul.bf16.gmra.mxu0 %v620
  %v883 = vpop.f32.mrf.mxu0
  %v884 = vadd.f32 %v640, %v883
  %v885 = vpop.f32.mrf.mxu0
  %v886 = vadd.f32 %v640, %v885
  %887 = vmatmul.bf16.gmra.mxu0 %v621
  %v888 = vpop.f32.mrf.mxu0
  %v889 = vadd.f32 %v640, %v888
  %v890 = vpop.f32.mrf.mxu0
  %v891 = vadd.f32 %v640, %v890
  %892 = vdwg.mxu0
  %893 = vmatpush.bf16.msra.mxu0 %v707
  %894 = vmatpush.bf16.msra.mxu0 %v705
  %895 = vmatpush.bf16.msra.mxu0 %v703
  %896 = vmatpush.bf16.msra.mxu0 %v701
  %897 = vmatpush.bf16.msra.mxu0 %v699
  %898 = vmatpush.bf16.msra.mxu0 %v697
  %899 = vmatpush.bf16.msra.mxu0 %v695
  %900 = vmatpush.bf16.msra.mxu0 %v693
  %901 = vmatmul.bf16.gmra.mxu0 %v590
  %v902 = vpop.f32.mrf.mxu0
  %v903 = vadd.f32 %v641, %v902
  %v904 = vpop.f32.mrf.mxu0
  %v905 = vadd.f32 %v641, %v904
  %906 = vmatmul.bf16.gmra.mxu0 %v591
  %v907 = vpop.f32.mrf.mxu0
  %v908 = vadd.f32 %v641, %v907
  %v909 = vpop.f32.mrf.mxu0
  %v910 = vadd.f32 %v641, %v909
  %911 = vmatmul.bf16.gmra.mxu0 %v592
  %v912 = vpop.f32.mrf.mxu0
  %v913 = vadd.f32 %v641, %v912
  %v914 = vpop.f32.mrf.mxu0
  %v915 = vadd.f32 %v641, %v914
  %916 = vmatmul.bf16.gmra.mxu0 %v593
  %v917 = vpop.f32.mrf.mxu0
  %v918 = vadd.f32 %v641, %v917
  %v919 = vpop.f32.mrf.mxu0
  %v920 = vadd.f32 %v641, %v919
  %921 = vmatmul.bf16.gmra.mxu0 %v594
  %v922 = vpop.f32.mrf.mxu0
  %v923 = vadd.f32 %v641, %v922
  %v924 = vpop.f32.mrf.mxu0
  %v925 = vadd.f32 %v641, %v924
  %926 = vmatmul.bf16.gmra.mxu0 %v595
  %v927 = vpop.f32.mrf.mxu0
  %v928 = vadd.f32 %v641, %v927
  %v929 = vpop.f32.mrf.mxu0
  %v930 = vadd.f32 %v641, %v929
  %931 = vmatmul.bf16.gmra.mxu0 %v596
  %v932 = vpop.f32.mrf.mxu0
  %v933 = vadd.f32 %v641, %v932
  %v934 = vpop.f32.mrf.mxu0
  %v935 = vadd.f32 %v641, %v934
  %936 = vmatmul.bf16.gmra.mxu0 %v597
  %v937 = vpop.f32.mrf.mxu0
  %v938 = vadd.f32 %v641, %v937
  %v939 = vpop.f32.mrf.mxu0
  %v940 = vadd.f32 %v641, %v939
  %941 = vmatmul.bf16.gmra.mxu0 %v598
  %v942 = vpop.f32.mrf.mxu0
  %v943 = vadd.f32 %v641, %v942
  %v944 = vpop.f32.mrf.mxu0
  %v945 = vadd.f32 %v641, %v944
  %946 = vmatmul.bf16.gmra.mxu0 %v599
  %v947 = vpop.f32.mrf.mxu0
  %v948 = vadd.f32 %v641, %v947
  %v949 = vpop.f32.mrf.mxu0
  %v950 = vadd.f32 %v641, %v949
  %951 = vmatmul.bf16.gmra.mxu0 %v600
  %v952 = vpop.f32.mrf.mxu0
  %v953 = vadd.f32 %v641, %v952
  %v954 = vpop.f32.mrf.mxu0
  %v955 = vadd.f32 %v641, %v954
  %956 = vmatmul.bf16.gmra.mxu0 %v601
  %v957 = vpop.f32.mrf.mxu0
  %v958 = vadd.f32 %v641, %v957
  %v959 = vpop.f32.mrf.mxu0
  %v960 = vadd.f32 %v641, %v959
  %961 = vmatmul.bf16.gmra.mxu0 %v602
  %v962 = vpop.f32.mrf.mxu0
  %v963 = vadd.f32 %v641, %v962
  %v964 = vpop.f32.mrf.mxu0
  %v965 = vadd.f32 %v641, %v964
  %966 = vmatmul.bf16.gmra.mxu0 %v603
  %v967 = vpop.f32.mrf.mxu0
  %v968 = vadd.f32 %v641, %v967
  %v969 = vpop.f32.mrf.mxu0
  %v970 = vadd.f32 %v641, %v969
  %971 = vmatmul.bf16.gmra.mxu0 %v604
  %v972 = vpop.f32.mrf.mxu0
  %v973 = vadd.f32 %v641, %v972
  %v974 = vpop.f32.mrf.mxu0
  %v975 = vadd.f32 %v641, %v974
  %976 = vmatmul.bf16.gmra.mxu0 %v605
  %v977 = vpop.f32.mrf.mxu0
  %v978 = vadd.f32 %v641, %v977
  %v979 = vpop.f32.mrf.mxu0
  %v980 = vadd.f32 %v641, %v979
  %981 = vmatmul.bf16.gmra.mxu0 %v606
  %v982 = vpop.f32.mrf.mxu0
  %v983 = vadd.f32 %v641, %v982
  %v984 = vpop.f32.mrf.mxu0
  %v985 = vadd.f32 %v641, %v984
  %986 = vmatmul.bf16.gmra.mxu0 %v607
  %v987 = vpop.f32.mrf.mxu0
  %v988 = vadd.f32 %v641, %v987
  %v989 = vpop.f32.mrf.mxu0
  %v990 = vadd.f32 %v641, %v989
  %991 = vmatmul.bf16.gmra.mxu0 %v608
  %v992 = vpop.f32.mrf.mxu0
  %v993 = vadd.f32 %v641, %v992
  %v994 = vpop.f32.mrf.mxu0
  %v995 = vadd.f32 %v641, %v994
  %996 = vmatmul.bf16.gmra.mxu0 %v609
  %v997 = vpop.f32.mrf.mxu0
  %v998 = vadd.f32 %v641, %v997
  %v999 = vpop.f32.mrf.mxu0
  %v1000 = vadd.f32 %v641, %v999
  %1001 = vmatmul.bf16.gmra.mxu0 %v610
  %v1002 = vpop.f32.mrf.mxu0
  %v1003 = vadd.f32 %v641, %v1002
  %v1004 = vpop.f32.mrf.mxu0
  %v1005 = vadd.f32 %v641, %v1004
  %1006 = vmatmul.bf16.gmra.mxu0 %v611
  %v1007 = vpop.f32.mrf.mxu0
  %v1008 = vadd.f32 %v641, %v1007
  %v1009 = vpop.f32.mrf.mxu0
  %v1010 = vadd.f32 %v641, %v1009
  %1011 = vmatmul.bf16.gmra.mxu0 %v612
  %v1012 = vpop.f32.mrf.mxu0
  %v1013 = vadd.f32 %v641, %v1012
  %v1014 = vpop.f32.mrf.mxu0
  %v1015 = vadd.f32 %v641, %v1014
  %1016 = vmatmul.bf16.gmra.mxu0 %v613
  %v1017 = vpop.f32.mrf.mxu0
  %v1018 = vadd.f32 %v641, %v1017
  %v1019 = vpop.f32.mrf.mxu0
  %v1020 = vadd.f32 %v641, %v1019
  %1021 = vmatmul.bf16.gmra.mxu0 %v614
  %v1022 = vpop.f32.mrf.mxu0
  %v1023 = vadd.f32 %v641, %v1022
  %v1024 = vpop.f32.mrf.mxu0
  %v1025 = vadd.f32 %v641, %v1024
  %1026 = vmatmul.bf16.gmra.mxu0 %v615
  %v1027 = vpop.f32.mrf.mxu0
  %v1028 = vadd.f32 %v641, %v1027
  %v1029 = vpop.f32.mrf.mxu0
  %v1030 = vadd.f32 %v641, %v1029
  %1031 = vmatmul.bf16.gmra.mxu0 %v616
  %v1032 = vpop.f32.mrf.mxu0
  %v1033 = vadd.f32 %v641, %v1032
  %v1034 = vpop.f32.mrf.mxu0
  %v1035 = vadd.f32 %v641, %v1034
  %1036 = vmatmul.bf16.gmra.mxu0 %v617
  %v1037 = vpop.f32.mrf.mxu0
  %v1038 = vadd.f32 %v641, %v1037
  %v1039 = vpop.f32.mrf.mxu0
  %v1040 = vadd.f32 %v641, %v1039
  %1041 = vmatmul.bf16.gmra.mxu0 %v618
  %v1042 = vpop.f32.mrf.mxu0
  %v1043 = vadd.f32 %v641, %v1042
  %v1044 = vpop.f32.mrf.mxu0
  %v1045 = vadd.f32 %v641, %v1044
  %1046 = vmatmul.bf16.gmra.mxu0 %v619
  %v1047 = vpop.f32.mrf.mxu0
  %v1048 = vadd.f32 %v641, %v1047
  %v1049 = vpop.f32.mrf.mxu0
  %v1050 = vadd.f32 %v641, %v1049
  %1051 = vmatmul.bf16.gmra.mxu0 %v620
  %v1052 = vpop.f32.mrf.mxu0
  %v1053 = vadd.f32 %v641, %v1052
  %v1054 = vpop.f32.mrf.mxu0
  %v1055 = vadd.f32 %v641, %v1054
  %1056 = vmatmul.bf16.gmra.mxu0 %v621
  %v1057 = vpop.f32.mrf.mxu0
  %v1058 = vadd.f32 %v641, %v1057
  %v1059 = vpop.f32.mrf.mxu0
  %v1060 = vadd.f32 %v641, %v1059
  %1061 = vdwg.mxu0
  %v1062 = vmax.f32 %v734, 0.0
  %v1063 = vmax.f32 %v903, 0.0
  %v1064 = vmax.f32 %v736, 0.0
  %v1065 = vmax.f32 %v905, 0.0
  %v1066 = vmax.f32 %v739, 0.0
  %v1067 = vmax.f32 %v908, 0.0
  %v1068 = vmax.f32 %v741, 0.0
  %v1069 = vmax.f32 %v910, 0.0
  %v1070 = vmax.f32 %v744, 0.0
  %v1071 = vmax.f32 %v913, 0.0
  %v1072 = vmax.f32 %v746, 0.0
  %v1073 = vmax.f32 %v915, 0.0
  %v1074 = vmax.f32 %v749, 0.0
  %v1075 = vmax.f32 %v918, 0.0
  %v1076 = vmax.f32 %v751, 0.0
  %v1077 = vmax.f32 %v920, 0.0
  %v1078 = vmax.f32 %v754, 0.0
  %v1079 = vmax.f32 %v923, 0.0
  %v1080 = vmax.f32 %v756, 0.0
  %v1081 = vmax.f32 %v925, 0.0
  %v1082 = vmax.f32 %v759, 0.0
  %v1083 = vmax.f32 %v928, 0.0
  %v1084 = vmax.f32 %v761, 0.0
  %v1085 = vmax.f32 %v930, 0.0
  %v1086 = vmax.f32 %v764, 0.0
  %v1087 = vmax.f32 %v933, 0.0
  %v1088 = vmax.f32 %v766, 0.0
  %v1089 = vmax.f32 %v935, 0.0
  %v1090 = vmax.f32 %v769, 0.0
  %v1091 = vmax.f32 %v938, 0.0
  %v1092 = vmax.f32 %v771, 0.0
  %v1093 = vmax.f32 %v940, 0.0
  %v1094 = vmax.f32 %v774, 0.0
  %v1095 = vmax.f32 %v943, 0.0
  %v1096 = vmax.f32 %v776, 0.0
  %v1097 = vmax.f32 %v945, 0.0
  %v1098 = vmax.f32 %v779, 0.0
  %v1099 = vmax.f32 %v948, 0.0
  %v1100 = vmax.f32 %v781, 0.0
  %v1101 = vmax.f32 %v950, 0.0
  %v1102 = vmax.f32 %v784, 0.0
  %v1103 = vmax.f32 %v953, 0.0
  %v1104 = vmax.f32 %v786, 0.0
  %v1105 = vmax.f32 %v955, 0.0
  %v1106 = vmax.f32 %v789, 0.0
  %v1107 = vmax.f32 %v958, 0.0
  %v1108 = vmax.f32 %v791, 0.0
  %v1109 = vmax.f32 %v960, 0.0
  %v1110 = vmax.f32 %v794, 0.0
  %v1111 = vmax.f32 %v963, 0.0
  %v1112 = vmax.f32 %v796, 0.0
  %v1113 = vmax.f32 %v965, 0.0
  %v1114 = vmax.f32 %v799, 0.0
  %v1115 = vmax.f32 %v968, 0.0
  %v1116 = vmax.f32 %v801, 0.0
  %v1117 = vmax.f32 %v970, 0.0
  %v1118 = vmax.f32 %v804, 0.0
  %v1119 = vmax.f32 %v973, 0.0
  %v1120 = vmax.f32 %v806, 0.0
  %v1121 = vmax.f32 %v975, 0.0
  %v1122 = vmax.f32 %v809, 0.0
  %v1123 = vmax.f32 %v978, 0.0
  %v1124 = vmax.f32 %v811, 0.0
  %v1125 = vmax.f32 %v980, 0.0
  %v1126 = vmax.f32 %v814, 0.0
  %v1127 = vmax.f32 %v983, 0.0
  %v1128 = vmax.f32 %v816, 0.0
  %v1129 = vmax.f32 %v985, 0.0
  %v1130 = vmax.f32 %v819, 0.0
  %v1131 = vmax.f32 %v988, 0.0
  %v1132 = vmax.f32 %v821, 0.0
  %v1133 = vmax.f32 %v990, 0.0
  %v1134 = vmax.f32 %v824, 0.0
  %v1135 = vmax.f32 %v993, 0.0
  %v1136 = vmax.f32 %v826, 0.0
  %v1137 = vmax.f32 %v995, 0.0
  %v1138 = vmax.f32 %v829, 0.0
  %v1139 = vmax.f32 %v998, 0.0
  %v1140 = vmax.f32 %v831, 0.0
  %v1141 = vmax.f32 %v1000, 0.0
  %v1142 = vmax.f32 %v834, 0.0
  %v1143 = vmax.f32 %v1003, 0.0
  %v1144 = vmax.f32 %v836, 0.0
  %v1145 = vmax.f32 %v1005, 0.0
  %v1146 = vmax.f32 %v839, 0.0
  %v1147 = vmax.f32 %v1008, 0.0
  %v1148 = vmax.f32 %v841, 0.0
  %v1149 = vmax.f32 %v1010, 0.0
  %v1150 = vmax.f32 %v844, 0.0
  %v1151 = vmax.f32 %v1013, 0.0
  %v1152 = vmax.f32 %v846, 0.0
  %v1153 = vmax.f32 %v1015, 0.0
  %v1154 = vmax.f32 %v849, 0.0
  %v1155 = vmax.f32 %v1018, 0.0
  %v1156 = vmax.f32 %v851, 0.0
  %v1157 = vmax.f32 %v1020, 0.0
  %v1158 = vmax.f32 %v854, 0.0
  %v1159 = vmax.f32 %v1023, 0.0
  %v1160 = vmax.f32 %v856, 0.0
  %v1161 = vmax.f32 %v1025, 0.0
  %v1162 = vmax.f32 %v859, 0.0
  %v1163 = vmax.f32 %v1028, 0.0
  %v1164 = vmax.f32 %v861, 0.0
  %v1165 = vmax.f32 %v1030, 0.0
  %v1166 = vmax.f32 %v864, 0.0
  %v1167 = vmax.f32 %v1033, 0.0
  %v1168 = vmax.f32 %v866, 0.0
  %v1169 = vmax.f32 %v1035, 0.0
  %v1170 = vmax.f32 %v869, 0.0
  %v1171 = vmax.f32 %v1038, 0.0
  %v1172 = vmax.f32 %v871, 0.0
  %v1173 = vmax.f32 %v1040, 0.0
  %v1174 = vmax.f32 %v874, 0.0
  %v1175 = vmax.f32 %v1043, 0.0
  %v1176 = vmax.f32 %v876, 0.0
  %v1177 = vmax.f32 %v1045, 0.0
  %v1178 = vmax.f32 %v879, 0.0
  %v1179 = vmax.f32 %v1048, 0.0
  %v1180 = vmax.f32 %v881, 0.0
  %v1181 = vmax.f32 %v1050, 0.0
  %v1182 = vmax.f32 %v884, 0.0
  %v1183 = vmax.f32 %v1053, 0.0
  %v1184 = vmax.f32 %v886, 0.0
  %v1185 = vmax.f32 %v1055, 0.0
  %v1186 = vmax.f32 %v889, 0.0
  %v1187 = vmax.f32 %v1058, 0.0
  %v1188 = vmax.f32 %v891, 0.0
  %v1189 = vmax.f32 %v1060, 0.0
  %v1190 = vpack.c.bf16 %v1064, %v1062
  %v1191 = vpack.c.bf16 %v1065, %v1063
  %v1192 = vpack.c.bf16 %v1068, %v1066
  %v1193 = vpack.c.bf16 %v1069, %v1067
  %v1194 = vpack.c.bf16 %v1072, %v1070
  %v1195 = vpack.c.bf16 %v1073, %v1071
  %v1196 = vpack.c.bf16 %v1076, %v1074
  %v1197 = vpack.c.bf16 %v1077, %v1075
  %v1198 = vpack.c.bf16 %v1080, %v1078
  %v1199 = vpack.c.bf16 %v1081, %v1079
  %v1200 = vpack.c.bf16 %v1084, %v1082
  %v1201 = vpack.c.bf16 %v1085, %v1083
  %v1202 = vpack.c.bf16 %v1088, %v1086
  %v1203 = vpack.c.bf16 %v1089, %v1087
  %v1204 = vpack.c.bf16 %v1092, %v1090
  %v1205 = vpack.c.bf16 %v1093, %v1091
  %v1206 = vpack.c.bf16 %v1096, %v1094
  %v1207 = vpack.c.bf16 %v1097, %v1095
  %v1208 = vpack.c.bf16 %v1100, %v1098
  %v1209 = vpack.c.bf16 %v1101, %v1099
  %v1210 = vpack.c.bf16 %v1104, %v1102
  %v1211 = vpack.c.bf16 %v1105, %v1103
  %v1212 = vpack.c.bf16 %v1108, %v1106
  %v1213 = vpack.c.bf16 %v1109, %v1107
  %v1214 = vpack.c.bf16 %v1112, %v1110
  %v1215 = vpack.c.bf16 %v1113, %v1111
  %v1216 = vpack.c.bf16 %v1116, %v1114
  %v1217 = vpack.c.bf16 %v1117, %v1115
  %v1218 = vpack.c.bf16 %v1120, %v1118
  %v1219 = vpack.c.bf16 %v1121, %v1119
  %v1220 = vpack.c.bf16 %v1124, %v1122
  %v1221 = vpack.c.bf16 %v1125, %v1123
  %v1222 = vpack.c.bf16 %v1128, %v1126
  %v1223 = vpack.c.bf16 %v1129, %v1127
  %v1224 = vpack.c.bf16 %v1132, %v1130
  %v1225 = vpack.c.bf16 %v1133, %v1131
  %v1226 = vpack.c.bf16 %v1136, %v1134
  %v1227 = vpack.c.bf16 %v1137, %v1135
  %v1228 = vpack.c.bf16 %v1140, %v1138
  %v1229 = vpack.c.bf16 %v1141, %v1139
  %v1230 = vpack.c.bf16 %v1144, %v1142
  %v1231 = vpack.c.bf16 %v1145, %v1143
  %v1232 = vpack.c.bf16 %v1148, %v1146
  %v1233 = vpack.c.bf16 %v1149, %v1147
  %v1234 = vpack.c.bf16 %v1152, %v1150
  %v1235 = vpack.c.bf16 %v1153, %v1151
  %v1236 = vpack.c.bf16 %v1156, %v1154
  %v1237 = vpack.c.bf16 %v1157, %v1155
  %v1238 = vpack.c.bf16 %v1160, %v1158
  %v1239 = vpack.c.bf16 %v1161, %v1159
  %v1240 = vpack.c.bf16 %v1164, %v1162
  %v1241 = vpack.c.bf16 %v1165, %v1163
  %v1242 = vpack.c.bf16 %v1168, %v1166
  %v1243 = vpack.c.bf16 %v1169, %v1167
  %v1244 = vpack.c.bf16 %v1172, %v1170
  %v1245 = vpack.c.bf16 %v1173, %v1171
  %v1246 = vpack.c.bf16 %v1176, %v1174
  %v1247 = vpack.c.bf16 %v1177, %v1175
  %v1248 = vpack.c.bf16 %v1180, %v1178
  %v1249 = vpack.c.bf16 %v1181, %v1179
  %v1250 = vpack.c.bf16 %v1184, %v1182
  %v1251 = vpack.c.bf16 %v1185, %v1183
  %v1252 = vpack.c.bf16 %v1188, %v1186
  %v1253 = vpack.c.bf16 %v1189, %v1187
  %v1254 = vld [vmem:[%s5] sm:$0xf]
  %v1255 = vld [vmem:[%s5 + $0x4] sm:$0xf]
  %v1256 = vld [vmem:[%s5 + $0x8] sm:$0xf]
  %v1257 = vld [vmem:[%s5 + $0xc] sm:$0xf]
  %v1258 = vld [vmem:[%s5 + $0x10] sm:$0xf]
  %v1259 = vld [vmem:[%s5 + $0x14] sm:$0xf]
  %v1260 = vld [vmem:[%s5 + $0x18] sm:$0xf]
  %v1261 = vld [vmem:[%s5 + $0x1c] sm:$0xf]
  %v1262 = vld [vmem:[%s5 + $0x20] sm:$0xf]
  %v1263 = vld [vmem:[%s5 + $0x24] sm:$0xf]
  %v1264 = vld [vmem:[%s5 + $0x28] sm:$0xf]
  %v1265 = vld [vmem:[%s5 + $0x2c] sm:$0xf]
  %v1266 = vld [vmem:[%s5 + $0x30] sm:$0xf]
  %v1267 = vld [vmem:[%s5 + $0x34] sm:$0xf]
  %v1268 = vld [vmem:[%s5 + $0x38] sm:$0xf]
  %v1269 = vld [vmem:[%s5 + $0x3c] sm:$0xf]
  %v1270 = vld [vmem:[%s5 + $0x40] sm:$0xf]
  %v1271 = vld [vmem:[%s5 + $0x44] sm:$0xf]
  %v1272 = vld [vmem:[%s5 + $0x48] sm:$0xf]
  %v1273 = vld [vmem:[%s5 + $0x4c] sm:$0xf]
  %v1274 = vld [vmem:[%s5 + $0x50] sm:$0xf]
  %v1275 = vld [vmem:[%s5 + $0x54] sm:$0xf]
  %v1276 = vld [vmem:[%s5 + $0x58] sm:$0xf]
  %v1277 = vld [vmem:[%s5 + $0x5c] sm:$0xf]
  %v1278 = vld [vmem:[%s5 + $0x60] sm:$0xf]
  %v1279 = vld [vmem:[%s5 + $0x64] sm:$0xf]
  %v1280 = vld [vmem:[%s5 + $0x68] sm:$0xf]
  %v1281 = vld [vmem:[%s5 + $0x6c] sm:$0xf]
  %v1282 = vld [vmem:[%s5 + $0x70] sm:$0xf]
  %v1283 = vld [vmem:[%s5 + $0x74] sm:$0xf]
  %v1284 = vld [vmem:[%s5 + $0x78] sm:$0xf]
  %v1285 = vld [vmem:[%s5 + $0x7c] sm:$0xf]
  %v1286 = vld [vmem:[%s6] sm:$0x1]
  %v1288 = vperm.slane %v1286, 0
  %v1322 = vunpack.c.l.b16 %v1254
  %v1323 = vunpack.c.l.b16 %v1255
  %v1324 = vunpack.c.l.b16 %v1256
  %v1325 = vunpack.c.l.b16 %v1257
  %v1326 = vunpack.c.l.b16 %v1258
  %v1327 = vunpack.c.l.b16 %v1259
  %v1328 = vunpack.c.l.b16 %v1260
  %v1329 = vunpack.c.l.b16 %v1261
  %v1330 = vunpack.c.l.b16 %v1262
  %v1331 = vunpack.c.l.b16 %v1263
  %v1332 = vunpack.c.l.b16 %v1264
  %v1333 = vunpack.c.l.b16 %v1265
  %v1334 = vunpack.c.l.b16 %v1266
  %v1335 = vunpack.c.l.b16 %v1267
  %v1336 = vunpack.c.l.b16 %v1268
  %v1337 = vunpack.c.l.b16 %v1269
  %v1338 = vunpack.c.l.b16 %v1270
  %v1339 = vunpack.c.l.b16 %v1271
  %v1340 = vunpack.c.l.b16 %v1272
  %v1341 = vunpack.c.l.b16 %v1273
  %v1342 = vunpack.c.l.b16 %v1274
  %v1343 = vunpack.c.l.b16 %v1275
  %v1344 = vunpack.c.l.b16 %v1276
  %v1345 = vunpack.c.l.b16 %v1277
  %v1346 = vunpack.c.l.b16 %v1278
  %v1347 = vunpack.c.l.b16 %v1279
  %v1348 = vunpack.c.l.b16 %v1280
  %v1349 = vunpack.c.l.b16 %v1281
  %v1350 = vunpack.c.l.b16 %v1282
  %v1351 = vunpack.c.l.b16 %v1283
  %v1352 = vunpack.c.l.b16 %v1284
  %v1353 = vunpack.c.l.b16 %v1285
  %v1354 = vpack.c.b16 %v1323, %v1322
  %v1355 = vpack.c.b16 %v1325, %v1324
  %v1356 = vpack.c.b16 %v1327, %v1326
  %v1357 = vpack.c.b16 %v1329, %v1328
  %v1358 = vpack.c.b16 %v1331, %v1330
  %v1359 = vpack.c.b16 %v1333, %v1332
  %v1360 = vpack.c.b16 %v1335, %v1334
  %v1361 = vpack.c.b16 %v1337, %v1336
  %v1362 = vpack.c.b16 %v1339, %v1338
  %v1363 = vpack.c.b16 %v1341, %v1340
  %v1364 = vpack.c.b16 %v1343, %v1342
  %v1365 = vpack.c.b16 %v1345, %v1344
  %v1366 = vpack.c.b16 %v1347, %v1346
  %v1367 = vpack.c.b16 %v1349, %v1348
  %v1368 = vpack.c.b16 %v1351, %v1350
  %v1369 = vpack.c.b16 %v1353, %v1352
  %1386 = vmatpush.bf16.msra.mxu0 %v1361
  %1387 = vmatpush.bf16.msra.mxu0 %v1360
  %1388 = vmatpush.bf16.msra.mxu0 %v1359
  %1389 = vmatpush.bf16.msra.mxu0 %v1358
  %1390 = vmatpush.bf16.msra.mxu0 %v1357
  %1391 = vmatpush.bf16.msra.mxu0 %v1356
  %1392 = vmatpush.bf16.msra.mxu0 %v1355
  %1393 = vmatpush.bf16.msra.mxu0 %v1354
  %1394 = vmatmul.bf16.gmra.mxu0 %v1190
  %v1395 = vpop.f32.mrf.mxu0
  %v1396 = vadd.f32 %v1288, %v1395
  %v1397 = vpop.f32.mrf.mxu0
  %v1398 = vadd.f32 %v1288, %v1397
  %1399 = vmatmul.bf16.gmra.mxu0 %v1192
  %v1400 = vpop.f32.mrf.mxu0
  %v1401 = vadd.f32 %v1288, %v1400
  %v1402 = vpop.f32.mrf.mxu0
  %v1403 = vadd.f32 %v1288, %v1402
  %1404 = vmatmul.bf16.gmra.mxu0 %v1194
  %v1405 = vpop.f32.mrf.mxu0
  %v1406 = vadd.f32 %v1288, %v1405
  %v1407 = vpop.f32.mrf.mxu0
  %v1408 = vadd.f32 %v1288, %v1407
  %1409 = vmatmul.bf16.gmra.mxu0 %v1196
  %v1410 = vpop.f32.mrf.mxu0
  %v1411 = vadd.f32 %v1288, %v1410
  %v1412 = vpop.f32.mrf.mxu0
  %v1413 = vadd.f32 %v1288, %v1412
  %1414 = vmatmul.bf16.gmra.mxu0 %v1198
  %v1415 = vpop.f32.mrf.mxu0
  %v1416 = vadd.f32 %v1288, %v1415
  %v1417 = vpop.f32.mrf.mxu0
  %v1418 = vadd.f32 %v1288, %v1417
  %1419 = vmatmul.bf16.gmra.mxu0 %v1200
  %v1420 = vpop.f32.mrf.mxu0
  %v1421 = vadd.f32 %v1288, %v1420
  %v1422 = vpop.f32.mrf.mxu0
  %v1423 = vadd.f32 %v1288, %v1422
  %1424 = vmatmul.bf16.gmra.mxu0 %v1202
  %v1425 = vpop.f32.mrf.mxu0
  %v1426 = vadd.f32 %v1288, %v1425
  %v1427 = vpop.f32.mrf.mxu0
  %v1428 = vadd.f32 %v1288, %v1427
  %1429 = vmatmul.bf16.gmra.mxu0 %v1204
  %v1430 = vpop.f32.mrf.mxu0
  %v1431 = vadd.f32 %v1288, %v1430
  %v1432 = vpop.f32.mrf.mxu0
  %v1433 = vadd.f32 %v1288, %v1432
  %1434 = vmatmul.bf16.gmra.mxu0 %v1206
  %v1435 = vpop.f32.mrf.mxu0
  %v1436 = vadd.f32 %v1288, %v1435
  %v1437 = vpop.f32.mrf.mxu0
  %v1438 = vadd.f32 %v1288, %v1437
  %1439 = vmatmul.bf16.gmra.mxu0 %v1208
  %v1440 = vpop.f32.mrf.mxu0
  %v1441 = vadd.f32 %v1288, %v1440
  %v1442 = vpop.f32.mrf.mxu0
  %v1443 = vadd.f32 %v1288, %v1442
  %1444 = vmatmul.bf16.gmra.mxu0 %v1210
  %v1445 = vpop.f32.mrf.mxu0
  %v1446 = vadd.f32 %v1288, %v1445
  %v1447 = vpop.f32.mrf.mxu0
  %v1448 = vadd.f32 %v1288, %v1447
  %1449 = vmatmul.bf16.gmra.mxu0 %v1212
  %v1450 = vpop.f32.mrf.mxu0
  %v1451 = vadd.f32 %v1288, %v1450
  %v1452 = vpop.f32.mrf.mxu0
  %v1453 = vadd.f32 %v1288, %v1452
  %1454 = vmatmul.bf16.gmra.mxu0 %v1214
  %v1455 = vpop.f32.mrf.mxu0
  %v1456 = vadd.f32 %v1288, %v1455
  %v1457 = vpop.f32.mrf.mxu0
  %v1458 = vadd.f32 %v1288, %v1457
  %1459 = vmatmul.bf16.gmra.mxu0 %v1216
  %v1460 = vpop.f32.mrf.mxu0
  %v1461 = vadd.f32 %v1288, %v1460
  %v1462 = vpop.f32.mrf.mxu0
  %v1463 = vadd.f32 %v1288, %v1462
  %1464 = vmatmul.bf16.gmra.mxu0 %v1218
  %v1465 = vpop.f32.mrf.mxu0
  %v1466 = vadd.f32 %v1288, %v1465
  %v1467 = vpop.f32.mrf.mxu0
  %v1468 = vadd.f32 %v1288, %v1467
  %1469 = vmatmul.bf16.gmra.mxu0 %v1220
  %v1470 = vpop.f32.mrf.mxu0
  %v1471 = vadd.f32 %v1288, %v1470
  %v1472 = vpop.f32.mrf.mxu0
  %v1473 = vadd.f32 %v1288, %v1472
  %1474 = vmatmul.bf16.gmra.mxu0 %v1222
  %v1475 = vpop.f32.mrf.mxu0
  %v1476 = vadd.f32 %v1288, %v1475
  %v1477 = vpop.f32.mrf.mxu0
  %v1478 = vadd.f32 %v1288, %v1477
  %1479 = vmatmul.bf16.gmra.mxu0 %v1224
  %v1480 = vpop.f32.mrf.mxu0
  %v1481 = vadd.f32 %v1288, %v1480
  %v1482 = vpop.f32.mrf.mxu0
  %v1483 = vadd.f32 %v1288, %v1482
  %1484 = vmatmul.bf16.gmra.mxu0 %v1226
  %v1485 = vpop.f32.mrf.mxu0
  %v1486 = vadd.f32 %v1288, %v1485
  %v1487 = vpop.f32.mrf.mxu0
  %v1488 = vadd.f32 %v1288, %v1487
  %1489 = vmatmul.bf16.gmra.mxu0 %v1228
  %v1490 = vpop.f32.mrf.mxu0
  %v1491 = vadd.f32 %v1288, %v1490
  %v1492 = vpop.f32.mrf.mxu0
  %v1493 = vadd.f32 %v1288, %v1492
  %1494 = vmatmul.bf16.gmra.mxu0 %v1230
  %v1495 = vpop.f32.mrf.mxu0
  %v1496 = vadd.f32 %v1288, %v1495
  %v1497 = vpop.f32.mrf.mxu0
  %v1498 = vadd.f32 %v1288, %v1497
  %1499 = vmatmul.bf16.gmra.mxu0 %v1232
  %v1500 = vpop.f32.mrf.mxu0
  %v1501 = vadd.f32 %v1288, %v1500
  %v1502 = vpop.f32.mrf.mxu0
  %v1503 = vadd.f32 %v1288, %v1502
  %1504 = vmatmul.bf16.gmra.mxu0 %v1234
  %v1505 = vpop.f32.mrf.mxu0
  %v1506 = vadd.f32 %v1288, %v1505
  %v1507 = vpop.f32.mrf.mxu0
  %v1508 = vadd.f32 %v1288, %v1507
  %1509 = vmatmul.bf16.gmra.mxu0 %v1236
  %v1510 = vpop.f32.mrf.mxu0
  %v1511 = vadd.f32 %v1288, %v1510
  %v1512 = vpop.f32.mrf.mxu0
  %v1513 = vadd.f32 %v1288, %v1512
  %1514 = vmatmul.bf16.gmra.mxu0 %v1238
  %v1515 = vpop.f32.mrf.mxu0
  %v1516 = vadd.f32 %v1288, %v1515
  %v1517 = vpop.f32.mrf.mxu0
  %v1518 = vadd.f32 %v1288, %v1517
  %1519 = vmatmul.bf16.gmra.mxu0 %v1240
  %v1520 = vpop.f32.mrf.mxu0
  %v1521 = vadd.f32 %v1288, %v1520
  %v1522 = vpop.f32.mrf.mxu0
  %v1523 = vadd.f32 %v1288, %v1522
  %1524 = vmatmul.bf16.gmra.mxu0 %v1242
  %v1525 = vpop.f32.mrf.mxu0
  %v1526 = vadd.f32 %v1288, %v1525
  %v1527 = vpop.f32.mrf.mxu0
  %v1528 = vadd.f32 %v1288, %v1527
  %1529 = vmatmul.bf16.gmra.mxu0 %v1244
  %v1530 = vpop.f32.mrf.mxu0
  %v1531 = vadd.f32 %v1288, %v1530
  %v1532 = vpop.f32.mrf.mxu0
  %v1533 = vadd.f32 %v1288, %v1532
  %1534 = vmatmul.bf16.gmra.mxu0 %v1246
  %v1535 = vpop.f32.mrf.mxu0
  %v1536 = vadd.f32 %v1288, %v1535
  %v1537 = vpop.f32.mrf.mxu0
  %v1538 = vadd.f32 %v1288, %v1537
  %1539 = vmatmul.bf16.gmra.mxu0 %v1248
  %v1540 = vpop.f32.mrf.mxu0
  %v1541 = vadd.f32 %v1288, %v1540
  %v1542 = vpop.f32.mrf.mxu0
  %v1543 = vadd.f32 %v1288, %v1542
  %1544 = vmatmul.bf16.gmra.mxu0 %v1250
  %v1545 = vpop.f32.mrf.mxu0
  %v1546 = vadd.f32 %v1288, %v1545
  %v1547 = vpop.f32.mrf.mxu0
  %v1548 = vadd.f32 %v1288, %v1547
  %1549 = vmatmul.bf16.gmra.mxu0 %v1252
  %v1550 = vpop.f32.mrf.mxu0
  %v1551 = vadd.f32 %v1288, %v1550
  %v1552 = vpop.f32.mrf.mxu0
  %v1553 = vadd.f32 %v1288, %v1552
  %1554 = vdwg.mxu0
  %1555 = vmatpush.bf16.msra.mxu0 %v1369
  %1556 = vmatpush.bf16.msra.mxu0 %v1368
  %1557 = vmatpush.bf16.msra.mxu0 %v1367
  %1558 = vmatpush.bf16.msra.mxu0 %v1366
  %1559 = vmatpush.bf16.msra.mxu0 %v1365
  %1560 = vmatpush.bf16.msra.mxu0 %v1364
  %1561 = vmatpush.bf16.msra.mxu0 %v1363
  %1562 = vmatpush.bf16.msra.mxu0 %v1362
  %1563 = vmatmul.bf16.gmra.mxu0 %v1191
  %v1564 = vpop.f32.mrf.mxu0
  %v1565 = vadd.f32 %v1396, %v1564
  %v1566 = vpop.f32.mrf.mxu0
  %v1567 = vadd.f32 %v1398, %v1566
  %1568 = vmatmul.bf16.gmra.mxu0 %v1193
  %v1569 = vpop.f32.mrf.mxu0
  %v1570 = vadd.f32 %v1401, %v1569
  %v1571 = vpop.f32.mrf.mxu0
  %v1572 = vadd.f32 %v1403, %v1571
  %1573 = vmatmul.bf16.gmra.mxu0 %v1195
  %v1574 = vpop.f32.mrf.mxu0
  %v1575 = vadd.f32 %v1406, %v1574
  %v1576 = vpop.f32.mrf.mxu0
  %v1577 = vadd.f32 %v1408, %v1576
  %1578 = vmatmul.bf16.gmra.mxu0 %v1197
  %v1579 = vpop.f32.mrf.mxu0
  %v1580 = vadd.f32 %v1411, %v1579
  %v1581 = vpop.f32.mrf.mxu0
  %v1582 = vadd.f32 %v1413, %v1581
  %1583 = vmatmul.bf16.gmra.mxu0 %v1199
  %v1584 = vpop.f32.mrf.mxu0
  %v1585 = vadd.f32 %v1416, %v1584
  %v1586 = vpop.f32.mrf.mxu0
  %v1587 = vadd.f32 %v1418, %v1586
  %1588 = vmatmul.bf16.gmra.mxu0 %v1201
  %v1589 = vpop.f32.mrf.mxu0
  %v1590 = vadd.f32 %v1421, %v1589
  %v1591 = vpop.f32.mrf.mxu0
  %v1592 = vadd.f32 %v1423, %v1591
  %1593 = vmatmul.bf16.gmra.mxu0 %v1203
  %v1594 = vpop.f32.mrf.mxu0
  %v1595 = vadd.f32 %v1426, %v1594
  %v1596 = vpop.f32.mrf.mxu0
  %v1597 = vadd.f32 %v1428, %v1596
  %1598 = vmatmul.bf16.gmra.mxu0 %v1205
  %v1599 = vpop.f32.mrf.mxu0
  %v1600 = vadd.f32 %v1431, %v1599
  %v1601 = vpop.f32.mrf.mxu0
  %v1602 = vadd.f32 %v1433, %v1601
  %1603 = vmatmul.bf16.gmra.mxu0 %v1207
  %v1604 = vpop.f32.mrf.mxu0
  %v1605 = vadd.f32 %v1436, %v1604
  %v1606 = vpop.f32.mrf.mxu0
  %v1607 = vadd.f32 %v1438, %v1606
  %1608 = vmatmul.bf16.gmra.mxu0 %v1209
  %v1609 = vpop.f32.mrf.mxu0
  %v1610 = vadd.f32 %v1441, %v1609
  %v1611 = vpop.f32.mrf.mxu0
  %v1612 = vadd.f32 %v1443, %v1611
  %1613 = vmatmul.bf16.gmra.mxu0 %v1211
  %v1614 = vpop.f32.mrf.mxu0
  %v1615 = vadd.f32 %v1446, %v1614
  %v1616 = vpop.f32.mrf.mxu0
  %v1617 = vadd.f32 %v1448, %v1616
  %1618 = vmatmul.bf16.gmra.mxu0 %v1213
  %v1619 = vpop.f32.mrf.mxu0
  %v1620 = vadd.f32 %v1451, %v1619
  %v1621 = vpop.f32.mrf.mxu0
  %v1622 = vadd.f32 %v1453, %v1621
  %1623 = vmatmul.bf16.gmra.mxu0 %v1215
  %v1624 = vpop.f32.mrf.mxu0
  %v1625 = vadd.f32 %v1456, %v1624
  %v1626 = vpop.f32.mrf.mxu0
  %v1627 = vadd.f32 %v1458, %v1626
  %1628 = vmatmul.bf16.gmra.mxu0 %v1217
  %v1629 = vpop.f32.mrf.mxu0
  %v1630 = vadd.f32 %v1461, %v1629
  %v1631 = vpop.f32.mrf.mxu0
  %v1632 = vadd.f32 %v1463, %v1631
  %1633 = vmatmul.bf16.gmra.mxu0 %v1219
  %v1634 = vpop.f32.mrf.mxu0
  %v1635 = vadd.f32 %v1466, %v1634
  %v1636 = vpop.f32.mrf.mxu0
  %v1637 = vadd.f32 %v1468, %v1636
  %1638 = vmatmul.bf16.gmra.mxu0 %v1221
  %v1639 = vpop.f32.mrf.mxu0
  %v1640 = vadd.f32 %v1471, %v1639
  %v1641 = vpop.f32.mrf.mxu0
  %v1642 = vadd.f32 %v1473, %v1641
  %1643 = vmatmul.bf16.gmra.mxu0 %v1223
  %v1644 = vpop.f32.mrf.mxu0
  %v1645 = vadd.f32 %v1476, %v1644
  %v1646 = vpop.f32.mrf.mxu0
  %v1647 = vadd.f32 %v1478, %v1646
  %1648 = vmatmul.bf16.gmra.mxu0 %v1225
  %v1649 = vpop.f32.mrf.mxu0
  %v1650 = vadd.f32 %v1481, %v1649
  %v1651 = vpop.f32.mrf.mxu0
  %v1652 = vadd.f32 %v1483, %v1651
  %1653 = vmatmul.bf16.gmra.mxu0 %v1227
  %v1654 = vpop.f32.mrf.mxu0
  %v1655 = vadd.f32 %v1486, %v1654
  %v1656 = vpop.f32.mrf.mxu0
  %v1657 = vadd.f32 %v1488, %v1656
  %1658 = vmatmul.bf16.gmra.mxu0 %v1229
  %v1659 = vpop.f32.mrf.mxu0
  %v1660 = vadd.f32 %v1491, %v1659
  %v1661 = vpop.f32.mrf.mxu0
  %v1662 = vadd.f32 %v1493, %v1661
  %1663 = vmatmul.bf16.gmra.mxu0 %v1231
  %v1664 = vpop.f32.mrf.mxu0
  %v1665 = vadd.f32 %v1496, %v1664
  %v1666 = vpop.f32.mrf.mxu0
  %v1667 = vadd.f32 %v1498, %v1666
  %1668 = vmatmul.bf16.gmra.mxu0 %v1233
  %v1669 = vpop.f32.mrf.mxu0
  %v1670 = vadd.f32 %v1501, %v1669
  %v1671 = vpop.f32.mrf.mxu0
  %v1672 = vadd.f32 %v1503, %v1671
  %1673 = vmatmul.bf16.gmra.mxu0 %v1235
  %v1674 = vpop.f32.mrf.mxu0
  %v1675 = vadd.f32 %v1506, %v1674
  %v1676 = vpop.f32.mrf.mxu0
  %v1677 = vadd.f32 %v1508, %v1676
  %1678 = vmatmul.bf16.gmra.mxu0 %v1237
  %v1679 = vpop.f32.mrf.mxu0
  %v1680 = vadd.f32 %v1511, %v1679
  %v1681 = vpop.f32.mrf.mxu0
  %v1682 = vadd.f32 %v1513, %v1681
  %1683 = vmatmul.bf16.gmra.mxu0 %v1239
  %v1684 = vpop.f32.mrf.mxu0
  %v1685 = vadd.f32 %v1516, %v1684
  %v1686 = vpop.f32.mrf.mxu0
  %v1687 = vadd.f32 %v1518, %v1686
  %1688 = vmatmul.bf16.gmra.mxu0 %v1241
  %v1689 = vpop.f32.mrf.mxu0
  %v1690 = vadd.f32 %v1521, %v1689
  %v1691 = vpop.f32.mrf.mxu0
  %v1692 = vadd.f32 %v1523, %v1691
  %1693 = vmatmul.bf16.gmra.mxu0 %v1243
  %v1694 = vpop.f32.mrf.mxu0
  %v1695 = vadd.f32 %v1526, %v1694
  %v1696 = vpop.f32.mrf.mxu0
  %v1697 = vadd.f32 %v1528, %v1696
  %1698 = vmatmul.bf16.gmra.mxu0 %v1245
  %v1699 = vpop.f32.mrf.mxu0
  %v1700 = vadd.f32 %v1531, %v1699
  %v1701 = vpop.f32.mrf.mxu0
  %v1702 = vadd.f32 %v1533, %v1701
  %1703 = vmatmul.bf16.gmra.mxu0 %v1247
  %v1704 = vpop.f32.mrf.mxu0
  %v1705 = vadd.f32 %v1536, %v1704
  %v1706 = vpop.f32.mrf.mxu0
  %v1707 = vadd.f32 %v1538, %v1706
  %1708 = vmatmul.bf16.gmra.mxu0 %v1249
  %v1709 = vpop.f32.mrf.mxu0
  %v1710 = vadd.f32 %v1541, %v1709
  %v1711 = vpop.f32.mrf.mxu0
  %v1712 = vadd.f32 %v1543, %v1711
  %1713 = vmatmul.bf16.gmra.mxu0 %v1251
  %v1714 = vpop.f32.mrf.mxu0
  %v1715 = vadd.f32 %v1546, %v1714
  %v1716 = vpop.f32.mrf.mxu0
  %v1717 = vadd.f32 %v1548, %v1716
  %1718 = vmatmul.bf16.gmra.mxu0 %v1253
  %v1719 = vpop.f32.mrf.mxu0
  %v1720 = vadd.f32 %v1551, %v1719
  %v1721 = vpop.f32.mrf.mxu0
  %v1722 = vadd.f32 %v1553, %v1721
  %1723 = vdwg.mxu0
  %vm1724 = vcmask 31744
  %v1725 = vsel %vm1724, %v1565, -inf
  %1726 = vmax.xlane.f32.xlu0 %v1725
  %v1727 = vpop.xlane.xlu0 %1726
  %v1728 = vsel %vm1724, %v1567, -inf
  %1729 = vmax.xlane.f32.xlu0 %v1728
  %v1730 = vpop.xlane.xlu0 %1729
  %v1731 = vsel %vm1724, %v1570, -inf
  %1732 = vmax.xlane.f32.xlu0 %v1731
  %v1733 = vpop.xlane.xlu0 %1732
  %v1734 = vsel %vm1724, %v1572, -inf
  %1735 = vmax.xlane.f32.xlu0 %v1734
  %v1736 = vpop.xlane.xlu0 %1735
  %v1737 = vsel %vm1724, %v1575, -inf
  %1738 = vmax.xlane.f32.xlu0 %v1737
  %v1739 = vpop.xlane.xlu0 %1738
  %v1740 = vsel %vm1724, %v1577, -inf
  %1741 = vmax.xlane.f32.xlu0 %v1740
  %v1742 = vpop.xlane.xlu0 %1741
  %v1743 = vsel %vm1724, %v1580, -inf
  %1744 = vmax.xlane.f32.xlu0 %v1743
  %v1745 = vpop.xlane.xlu0 %1744
  %v1746 = vsel %vm1724, %v1582, -inf
  %1747 = vmax.xlane.f32.xlu0 %v1746
  %v1748 = vpop.xlane.xlu0 %1747
  %v1749 = vsel %vm1724, %v1585, -inf
  %1750 = vmax.xlane.f32.xlu0 %v1749
  %v1751 = vpop.xlane.xlu0 %1750
  %v1752 = vsel %vm1724, %v1587, -inf
  %1753 = vmax.xlane.f32.xlu0 %v1752
  %v1754 = vpop.xlane.xlu0 %1753
  %v1755 = vsel %vm1724, %v1590, -inf
  %1756 = vmax.xlane.f32.xlu0 %v1755
  %v1757 = vpop.xlane.xlu0 %1756
  %v1758 = vsel %vm1724, %v1592, -inf
  %1759 = vmax.xlane.f32.xlu0 %v1758
  %v1760 = vpop.xlane.xlu0 %1759
  %v1761 = vsel %vm1724, %v1595, -inf
  %1762 = vmax.xlane.f32.xlu0 %v1761
  %v1763 = vpop.xlane.xlu0 %1762
  %v1764 = vsel %vm1724, %v1597, -inf
  %1765 = vmax.xlane.f32.xlu0 %v1764
  %v1766 = vpop.xlane.xlu0 %1765
  %v1767 = vsel %vm1724, %v1600, -inf
  %1768 = vmax.xlane.f32.xlu0 %v1767
  %v1769 = vpop.xlane.xlu0 %1768
  %v1770 = vsel %vm1724, %v1602, -inf
  %1771 = vmax.xlane.f32.xlu0 %v1770
  %v1772 = vpop.xlane.xlu0 %1771
  %v1773 = vsel %vm1724, %v1605, -inf
  %1774 = vmax.xlane.f32.xlu0 %v1773
  %v1775 = vpop.xlane.xlu0 %1774
  %v1776 = vsel %vm1724, %v1607, -inf
  %1777 = vmax.xlane.f32.xlu0 %v1776
  %v1778 = vpop.xlane.xlu0 %1777
  %v1779 = vsel %vm1724, %v1610, -inf
  %1780 = vmax.xlane.f32.xlu0 %v1779
  %v1781 = vpop.xlane.xlu0 %1780
  %v1782 = vsel %vm1724, %v1612, -inf
  %1783 = vmax.xlane.f32.xlu0 %v1782
  %v1784 = vpop.xlane.xlu0 %1783
  %v1785 = vsel %vm1724, %v1615, -inf
  %1786 = vmax.xlane.f32.xlu0 %v1785
  %v1787 = vpop.xlane.xlu0 %1786
  %v1788 = vsel %vm1724, %v1617, -inf
  %1789 = vmax.xlane.f32.xlu0 %v1788
  %v1790 = vpop.xlane.xlu0 %1789
  %v1791 = vsel %vm1724, %v1620, -inf
  %1792 = vmax.xlane.f32.xlu0 %v1791
  %v1793 = vpop.xlane.xlu0 %1792
  %v1794 = vsel %vm1724, %v1622, -inf
  %1795 = vmax.xlane.f32.xlu0 %v1794
  %v1796 = vpop.xlane.xlu0 %1795
  %v1797 = vsel %vm1724, %v1625, -inf
  %1798 = vmax.xlane.f32.xlu0 %v1797
  %v1799 = vpop.xlane.xlu0 %1798
  %v1800 = vsel %vm1724, %v1627, -inf
  %1801 = vmax.xlane.f32.xlu0 %v1800
  %v1802 = vpop.xlane.xlu0 %1801
  %v1803 = vsel %vm1724, %v1630, -inf
  %1804 = vmax.xlane.f32.xlu0 %v1803
  %v1805 = vpop.xlane.xlu0 %1804
  %v1806 = vsel %vm1724, %v1632, -inf
  %1807 = vmax.xlane.f32.xlu0 %v1806
  %v1808 = vpop.xlane.xlu0 %1807
  %v1809 = vsel %vm1724, %v1635, -inf
  %1810 = vmax.xlane.f32.xlu0 %v1809
  %v1811 = vpop.xlane.xlu0 %1810
  %v1812 = vsel %vm1724, %v1637, -inf
  %1813 = vmax.xlane.f32.xlu0 %v1812
  %v1814 = vpop.xlane.xlu0 %1813
  %v1815 = vsel %vm1724, %v1640, -inf
  %1816 = vmax.xlane.f32.xlu0 %v1815
  %v1817 = vpop.xlane.xlu0 %1816
  %v1818 = vsel %vm1724, %v1642, -inf
  %1819 = vmax.xlane.f32.xlu0 %v1818
  %v1820 = vpop.xlane.xlu0 %1819
  %v1821 = vsel %vm1724, %v1645, -inf
  %1822 = vmax.xlane.f32.xlu0 %v1821
  %v1823 = vpop.xlane.xlu0 %1822
  %v1824 = vsel %vm1724, %v1647, -inf
  %1825 = vmax.xlane.f32.xlu0 %v1824
  %v1826 = vpop.xlane.xlu0 %1825
  %v1827 = vsel %vm1724, %v1650, -inf
  %1828 = vmax.xlane.f32.xlu0 %v1827
  %v1829 = vpop.xlane.xlu0 %1828
  %v1830 = vsel %vm1724, %v1652, -inf
  %1831 = vmax.xlane.f32.xlu0 %v1830
  %v1832 = vpop.xlane.xlu0 %1831
  %v1833 = vsel %vm1724, %v1655, -inf
  %1834 = vmax.xlane.f32.xlu0 %v1833
  %v1835 = vpop.xlane.xlu0 %1834
  %v1836 = vsel %vm1724, %v1657, -inf
  %1837 = vmax.xlane.f32.xlu0 %v1836
  %v1838 = vpop.xlane.xlu0 %1837
  %v1839 = vsel %vm1724, %v1660, -inf
  %1840 = vmax.xlane.f32.xlu0 %v1839
  %v1841 = vpop.xlane.xlu0 %1840
  %v1842 = vsel %vm1724, %v1662, -inf
  %1843 = vmax.xlane.f32.xlu0 %v1842
  %v1844 = vpop.xlane.xlu0 %1843
  %v1845 = vsel %vm1724, %v1665, -inf
  %1846 = vmax.xlane.f32.xlu0 %v1845
  %v1847 = vpop.xlane.xlu0 %1846
  %v1848 = vsel %vm1724, %v1667, -inf
  %1849 = vmax.xlane.f32.xlu0 %v1848
  %v1850 = vpop.xlane.xlu0 %1849
  %v1851 = vsel %vm1724, %v1670, -inf
  %1852 = vmax.xlane.f32.xlu0 %v1851
  %v1853 = vpop.xlane.xlu0 %1852
  %v1854 = vsel %vm1724, %v1672, -inf
  %1855 = vmax.xlane.f32.xlu0 %v1854
  %v1856 = vpop.xlane.xlu0 %1855
  %v1857 = vsel %vm1724, %v1675, -inf
  %1858 = vmax.xlane.f32.xlu0 %v1857
  %v1859 = vpop.xlane.xlu0 %1858
  %v1860 = vsel %vm1724, %v1677, -inf
  %1861 = vmax.xlane.f32.xlu0 %v1860
  %v1862 = vpop.xlane.xlu0 %1861
  %v1863 = vsel %vm1724, %v1680, -inf
  %1864 = vmax.xlane.f32.xlu0 %v1863
  %v1865 = vpop.xlane.xlu0 %1864
  %v1866 = vsel %vm1724, %v1682, -inf
  %1867 = vmax.xlane.f32.xlu0 %v1866
  %v1868 = vpop.xlane.xlu0 %1867
  %v1869 = vsel %vm1724, %v1685, -inf
  %1870 = vmax.xlane.f32.xlu0 %v1869
  %v1871 = vpop.xlane.xlu0 %1870
  %v1872 = vsel %vm1724, %v1687, -inf
  %1873 = vmax.xlane.f32.xlu0 %v1872
  %v1874 = vpop.xlane.xlu0 %1873
  %v1875 = vsel %vm1724, %v1690, -inf
  %1876 = vmax.xlane.f32.xlu0 %v1875
  %v1877 = vpop.xlane.xlu0 %1876
  %v1878 = vsel %vm1724, %v1692, -inf
  %1879 = vmax.xlane.f32.xlu0 %v1878
  %v1880 = vpop.xlane.xlu0 %1879
  %v1881 = vsel %vm1724, %v1695, -inf
  %1882 = vmax.xlane.f32.xlu0 %v1881
  %v1883 = vpop.xlane.xlu0 %1882
  %v1884 = vsel %vm1724, %v1697, -inf
  %1885 = vmax.xlane.f32.xlu0 %v1884
  %v1886 = vpop.xlane.xlu0 %1885
  %v1887 = vsel %vm1724, %v1700, -inf
  %1888 = vmax.xlane.f32.xlu0 %v1887
  %v1889 = vpop.xlane.xlu0 %1888
  %v1890 = vsel %vm1724, %v1702, -inf
  %1891 = vmax.xlane.f32.xlu0 %v1890
  %v1892 = vpop.xlane.xlu0 %1891
  %v1893 = vsel %vm1724, %v1705, -inf
  %1894 = vmax.xlane.f32.xlu0 %v1893
  %v1895 = vpop.xlane.xlu0 %1894
  %v1896 = vsel %vm1724, %v1707, -inf
  %1897 = vmax.xlane.f32.xlu0 %v1896
  %v1898 = vpop.xlane.xlu0 %1897
  %v1899 = vsel %vm1724, %v1710, -inf
  %1900 = vmax.xlane.f32.xlu0 %v1899
  %v1901 = vpop.xlane.xlu0 %1900
  %v1902 = vsel %vm1724, %v1712, -inf
  %1903 = vmax.xlane.f32.xlu0 %v1902
  %v1904 = vpop.xlane.xlu0 %1903
  %v1905 = vsel %vm1724, %v1715, -inf
  %1906 = vmax.xlane.f32.xlu0 %v1905
  %v1907 = vpop.xlane.xlu0 %1906
  %v1908 = vsel %vm1724, %v1717, -inf
  %1909 = vmax.xlane.f32.xlu0 %v1908
  %v1910 = vpop.xlane.xlu0 %1909
  %v1911 = vsel %vm1724, %v1720, -inf
  %1912 = vmax.xlane.f32.xlu0 %v1911
  %v1913 = vpop.xlane.xlu0 %1912
  %v1914 = vsel %vm1724, %v1722, -inf
  %1915 = vmax.xlane.f32.xlu0 %v1914
  %v1916 = vpop.xlane.xlu0 %1915
  %v1917 = vsub.f32 %v1565, %v1727
  %v1918 = vsub.f32 %v1567, %v1730
  %v1919 = vsub.f32 %v1570, %v1733
  %v1920 = vsub.f32 %v1572, %v1736
  %v1921 = vsub.f32 %v1575, %v1739
  %v1922 = vsub.f32 %v1577, %v1742
  %v1923 = vsub.f32 %v1580, %v1745
  %v1924 = vsub.f32 %v1582, %v1748
  %v1925 = vsub.f32 %v1585, %v1751
  %v1926 = vsub.f32 %v1587, %v1754
  %v1927 = vsub.f32 %v1590, %v1757
  %v1928 = vsub.f32 %v1592, %v1760
  %v1929 = vsub.f32 %v1595, %v1763
  %v1930 = vsub.f32 %v1597, %v1766
  %v1931 = vsub.f32 %v1600, %v1769
  %v1932 = vsub.f32 %v1602, %v1772
  %v1933 = vsub.f32 %v1605, %v1775
  %v1934 = vsub.f32 %v1607, %v1778
  %v1935 = vsub.f32 %v1610, %v1781
  %v1936 = vsub.f32 %v1612, %v1784
  %v1937 = vsub.f32 %v1615, %v1787
  %v1938 = vsub.f32 %v1617, %v1790
  %v1939 = vsub.f32 %v1620, %v1793
  %v1940 = vsub.f32 %v1622, %v1796
  %v1941 = vsub.f32 %v1625, %v1799
  %v1942 = vsub.f32 %v1627, %v1802
  %v1943 = vsub.f32 %v1630, %v1805
  %v1944 = vsub.f32 %v1632, %v1808
  %v1945 = vsub.f32 %v1635, %v1811
  %v1946 = vsub.f32 %v1637, %v1814
  %v1947 = vsub.f32 %v1640, %v1817
  %v1948 = vsub.f32 %v1642, %v1820
  %v1949 = vsub.f32 %v1645, %v1823
  %v1950 = vsub.f32 %v1647, %v1826
  %v1951 = vsub.f32 %v1650, %v1829
  %v1952 = vsub.f32 %v1652, %v1832
  %v1953 = vsub.f32 %v1655, %v1835
  %v1954 = vsub.f32 %v1657, %v1838
  %v1955 = vsub.f32 %v1660, %v1841
  %v1956 = vsub.f32 %v1662, %v1844
  %v1957 = vsub.f32 %v1665, %v1847
  %v1958 = vsub.f32 %v1667, %v1850
  %v1959 = vsub.f32 %v1670, %v1853
  %v1960 = vsub.f32 %v1672, %v1856
  %v1961 = vsub.f32 %v1675, %v1859
  %v1962 = vsub.f32 %v1677, %v1862
  %v1963 = vsub.f32 %v1680, %v1865
  %v1964 = vsub.f32 %v1682, %v1868
  %v1965 = vsub.f32 %v1685, %v1871
  %v1966 = vsub.f32 %v1687, %v1874
  %v1967 = vsub.f32 %v1690, %v1877
  %v1968 = vsub.f32 %v1692, %v1880
  %v1969 = vsub.f32 %v1695, %v1883
  %v1970 = vsub.f32 %v1697, %v1886
  %v1971 = vsub.f32 %v1700, %v1889
  %v1972 = vsub.f32 %v1702, %v1892
  %v1973 = vsub.f32 %v1705, %v1895
  %v1974 = vsub.f32 %v1707, %v1898
  %v1975 = vsub.f32 %v1710, %v1901
  %v1976 = vsub.f32 %v1712, %v1904
  %v1977 = vsub.f32 %v1715, %v1907
  %v1978 = vsub.f32 %v1717, %v1910
  %v1979 = vsub.f32 %v1720, %v1913
  %v1980 = vsub.f32 %v1722, %v1916
  %v1981 = vmul.f32 %v1917, 1.442695
  %v1982 = vpow.pop %v1981
  %v1983 = vmul.f32 %v1918, 1.442695
  %v1984 = vpow.pop %v1983
  %v1985 = vmul.f32 %v1919, 1.442695
  %v1986 = vpow.pop %v1985
  %v1987 = vmul.f32 %v1920, 1.442695
  %v1988 = vpow.pop %v1987
  %v1989 = vmul.f32 %v1921, 1.442695
  %v1990 = vpow.pop %v1989
  %v1991 = vmul.f32 %v1922, 1.442695
  %v1992 = vpow.pop %v1991
  %v1993 = vmul.f32 %v1923, 1.442695
  %v1994 = vpow.pop %v1993
  %v1995 = vmul.f32 %v1924, 1.442695
  %v1996 = vpow.pop %v1995
  %v1997 = vmul.f32 %v1925, 1.442695
  %v1998 = vpow.pop %v1997
  %v1999 = vmul.f32 %v1926, 1.442695
  %v2000 = vpow.pop %v1999
  %v2001 = vmul.f32 %v1927, 1.442695
  %v2002 = vpow.pop %v2001
  %v2003 = vmul.f32 %v1928, 1.442695
  %v2004 = vpow.pop %v2003
  %v2005 = vmul.f32 %v1929, 1.442695
  %v2006 = vpow.pop %v2005
  %v2007 = vmul.f32 %v1930, 1.442695
  %v2008 = vpow.pop %v2007
  %v2009 = vmul.f32 %v1931, 1.442695
  %v2010 = vpow.pop %v2009
  %v2011 = vmul.f32 %v1932, 1.442695
  %v2012 = vpow.pop %v2011
  %v2013 = vmul.f32 %v1933, 1.442695
  %v2014 = vpow.pop %v2013
  %v2015 = vmul.f32 %v1934, 1.442695
  %v2016 = vpow.pop %v2015
  %v2017 = vmul.f32 %v1935, 1.442695
  %v2018 = vpow.pop %v2017
  %v2019 = vmul.f32 %v1936, 1.442695
  %v2020 = vpow.pop %v2019
  %v2021 = vmul.f32 %v1937, 1.442695
  %v2022 = vpow.pop %v2021
  %v2023 = vmul.f32 %v1938, 1.442695
  %v2024 = vpow.pop %v2023
  %v2025 = vmul.f32 %v1939, 1.442695
  %v2026 = vpow.pop %v2025
  %v2027 = vmul.f32 %v1940, 1.442695
  %v2028 = vpow.pop %v2027
  %v2029 = vmul.f32 %v1941, 1.442695
  %v2030 = vpow.pop %v2029
  %v2031 = vmul.f32 %v1942, 1.442695
  %v2032 = vpow.pop %v2031
  %v2033 = vmul.f32 %v1943, 1.442695
  %v2034 = vpow.pop %v2033
  %v2035 = vmul.f32 %v1944, 1.442695
  %v2036 = vpow.pop %v2035
  %v2037 = vmul.f32 %v1945, 1.442695
  %v2038 = vpow.pop %v2037
  %v2039 = vmul.f32 %v1946, 1.442695
  %v2040 = vpow.pop %v2039
  %v2041 = vmul.f32 %v1947, 1.442695
  %v2042 = vpow.pop %v2041
  %v2043 = vmul.f32 %v1948, 1.442695
  %v2044 = vpow.pop %v2043
  %v2045 = vmul.f32 %v1949, 1.442695
  %v2046 = vpow.pop %v2045
  %v2047 = vmul.f32 %v1950, 1.442695
  %v2048 = vpow.pop %v2047
  %v2049 = vmul.f32 %v1951, 1.442695
  %v2050 = vpow.pop %v2049
  %v2051 = vmul.f32 %v1952, 1.442695
  %v2052 = vpow.pop %v2051
  %v2053 = vmul.f32 %v1953, 1.442695
  %v2054 = vpow.pop %v2053
  %v2055 = vmul.f32 %v1954, 1.442695
  %v2056 = vpow.pop %v2055
  %v2057 = vmul.f32 %v1955, 1.442695
  %v2058 = vpow.pop %v2057
  %v2059 = vmul.f32 %v1956, 1.442695
  %v2060 = vpow.pop %v2059
  %v2061 = vmul.f32 %v1957, 1.442695
  %v2062 = vpow.pop %v2061
  %v2063 = vmul.f32 %v1958, 1.442695
  %v2064 = vpow.pop %v2063
  %v2065 = vmul.f32 %v1959, 1.442695
  %v2066 = vpow.pop %v2065
  %v2067 = vmul.f32 %v1960, 1.442695
  %v2068 = vpow.pop %v2067
  %v2069 = vmul.f32 %v1961, 1.442695
  %v2070 = vpow.pop %v2069
  %v2071 = vmul.f32 %v1962, 1.442695
  %v2072 = vpow.pop %v2071
  %v2073 = vmul.f32 %v1963, 1.442695
  %v2074 = vpow.pop %v2073
  %v2075 = vmul.f32 %v1964, 1.442695
  %v2076 = vpow.pop %v2075
  %v2077 = vmul.f32 %v1965, 1.442695
  %v2078 = vpow.pop %v2077
  %v2079 = vmul.f32 %v1966, 1.442695
  %v2080 = vpow.pop %v2079
  %v2081 = vmul.f32 %v1967, 1.442695
  %v2082 = vpow.pop %v2081
  %v2083 = vmul.f32 %v1968, 1.442695
  %v2084 = vpow.pop %v2083
  %v2085 = vmul.f32 %v1969, 1.442695
  %v2086 = vpow.pop %v2085
  %v2087 = vmul.f32 %v1970, 1.442695
  %v2088 = vpow.pop %v2087
  %v2089 = vmul.f32 %v1971, 1.442695
  %v2090 = vpow.pop %v2089
  %v2091 = vmul.f32 %v1972, 1.442695
  %v2092 = vpow.pop %v2091
  %v2093 = vmul.f32 %v1973, 1.442695
  %v2094 = vpow.pop %v2093
  %v2095 = vmul.f32 %v1974, 1.442695
  %v2096 = vpow.pop %v2095
  %v2097 = vmul.f32 %v1975, 1.442695
  %v2098 = vpow.pop %v2097
  %v2099 = vmul.f32 %v1976, 1.442695
  %v2100 = vpow.pop %v2099
  %v2101 = vmul.f32 %v1977, 1.442695
  %v2102 = vpow.pop %v2101
  %v2103 = vmul.f32 %v1978, 1.442695
  %v2104 = vpow.pop %v2103
  %v2105 = vmul.f32 %v1979, 1.442695
  %v2106 = vpow.pop %v2105
  %v2107 = vmul.f32 %v1980, 1.442695
  %v2108 = vpow.pop %v2107
  %v2109 = vsel %vm1724, %v1982, 0.0
  %2110 = vadd.xlane.f32.xlu0 %v2109
  %v2111 = vpop.xlane.xlu0 %2110
  %v2112 = vsel %vm1724, %v1984, 0.0
  %2113 = vadd.xlane.f32.xlu0 %v2112
  %v2114 = vpop.xlane.xlu0 %2113
  %v2115 = vsel %vm1724, %v1986, 0.0
  %2116 = vadd.xlane.f32.xlu0 %v2115
  %v2117 = vpop.xlane.xlu0 %2116
  %v2118 = vsel %vm1724, %v1988, 0.0
  %2119 = vadd.xlane.f32.xlu0 %v2118
  %v2120 = vpop.xlane.xlu0 %2119
  %v2121 = vsel %vm1724, %v1990, 0.0
  %2122 = vadd.xlane.f32.xlu0 %v2121
  %v2123 = vpop.xlane.xlu0 %2122
  %v2124 = vsel %vm1724, %v1992, 0.0
  %2125 = vadd.xlane.f32.xlu0 %v2124
  %v2126 = vpop.xlane.xlu0 %2125
  %v2127 = vsel %vm1724, %v1994, 0.0
  %2128 = vadd.xlane.f32.xlu0 %v2127
  %v2129 = vpop.xlane.xlu0 %2128
  %v2130 = vsel %vm1724, %v1996, 0.0
  %2131 = vadd.xlane.f32.xlu0 %v2130
  %v2132 = vpop.xlane.xlu0 %2131
  %v2133 = vsel %vm1724, %v1998, 0.0
  %2134 = vadd.xlane.f32.xlu0 %v2133
  %v2135 = vpop.xlane.xlu0 %2134
  %v2136 = vsel %vm1724, %v2000, 0.0
  %2137 = vadd.xlane.f32.xlu0 %v2136
  %v2138 = vpop.xlane.xlu0 %2137
  %v2139 = vsel %vm1724, %v2002, 0.0
  %2140 = vadd.xlane.f32.xlu0 %v2139
  %v2141 = vpop.xlane.xlu0 %2140
  %v2142 = vsel %vm1724, %v2004, 0.0
  %2143 = vadd.xlane.f32.xlu0 %v2142
  %v2144 = vpop.xlane.xlu0 %2143
  %v2145 = vsel %vm1724, %v2006, 0.0
  %2146 = vadd.xlane.f32.xlu0 %v2145
  %v2147 = vpop.xlane.xlu0 %2146
  %v2148 = vsel %vm1724, %v2008, 0.0
  %2149 = vadd.xlane.f32.xlu0 %v2148
  %v2150 = vpop.xlane.xlu0 %2149
  %v2151 = vsel %vm1724, %v2010, 0.0
  %2152 = vadd.xlane.f32.xlu0 %v2151
  %v2153 = vpop.xlane.xlu0 %2152
  %v2154 = vsel %vm1724, %v2012, 0.0
  %2155 = vadd.xlane.f32.xlu0 %v2154
  %v2156 = vpop.xlane.xlu0 %2155
  %v2157 = vsel %vm1724, %v2014, 0.0
  %2158 = vadd.xlane.f32.xlu0 %v2157
  %v2159 = vpop.xlane.xlu0 %2158
  %v2160 = vsel %vm1724, %v2016, 0.0
  %2161 = vadd.xlane.f32.xlu0 %v2160
  %v2162 = vpop.xlane.xlu0 %2161
  %v2163 = vsel %vm1724, %v2018, 0.0
  %2164 = vadd.xlane.f32.xlu0 %v2163
  %v2165 = vpop.xlane.xlu0 %2164
  %v2166 = vsel %vm1724, %v2020, 0.0
  %2167 = vadd.xlane.f32.xlu0 %v2166
  %v2168 = vpop.xlane.xlu0 %2167
  %v2169 = vsel %vm1724, %v2022, 0.0
  %2170 = vadd.xlane.f32.xlu0 %v2169
  %v2171 = vpop.xlane.xlu0 %2170
  %v2172 = vsel %vm1724, %v2024, 0.0
  %2173 = vadd.xlane.f32.xlu0 %v2172
  %v2174 = vpop.xlane.xlu0 %2173
  %v2175 = vsel %vm1724, %v2026, 0.0
  %2176 = vadd.xlane.f32.xlu0 %v2175
  %v2177 = vpop.xlane.xlu0 %2176
  %v2178 = vsel %vm1724, %v2028, 0.0
  %2179 = vadd.xlane.f32.xlu0 %v2178
  %v2180 = vpop.xlane.xlu0 %2179
  %v2181 = vsel %vm1724, %v2030, 0.0
  %2182 = vadd.xlane.f32.xlu0 %v2181
  %v2183 = vpop.xlane.xlu0 %2182
  %v2184 = vsel %vm1724, %v2032, 0.0
  %2185 = vadd.xlane.f32.xlu0 %v2184
  %v2186 = vpop.xlane.xlu0 %2185
  %v2187 = vsel %vm1724, %v2034, 0.0
  %2188 = vadd.xlane.f32.xlu0 %v2187
  %v2189 = vpop.xlane.xlu0 %2188
  %v2190 = vsel %vm1724, %v2036, 0.0
  %2191 = vadd.xlane.f32.xlu0 %v2190
  %v2192 = vpop.xlane.xlu0 %2191
  %v2193 = vsel %vm1724, %v2038, 0.0
  %2194 = vadd.xlane.f32.xlu0 %v2193
  %v2195 = vpop.xlane.xlu0 %2194
  %v2196 = vsel %vm1724, %v2040, 0.0
  %2197 = vadd.xlane.f32.xlu0 %v2196
  %v2198 = vpop.xlane.xlu0 %2197
  %v2199 = vsel %vm1724, %v2042, 0.0
  %2200 = vadd.xlane.f32.xlu0 %v2199
  %v2201 = vpop.xlane.xlu0 %2200
  %v2202 = vsel %vm1724, %v2044, 0.0
  %2203 = vadd.xlane.f32.xlu0 %v2202
  %v2204 = vpop.xlane.xlu0 %2203
  %v2205 = vsel %vm1724, %v2046, 0.0
  %2206 = vadd.xlane.f32.xlu0 %v2205
  %v2207 = vpop.xlane.xlu0 %2206
  %v2208 = vsel %vm1724, %v2048, 0.0
  %2209 = vadd.xlane.f32.xlu0 %v2208
  %v2210 = vpop.xlane.xlu0 %2209
  %v2211 = vsel %vm1724, %v2050, 0.0
  %2212 = vadd.xlane.f32.xlu0 %v2211
  %v2213 = vpop.xlane.xlu0 %2212
  %v2214 = vsel %vm1724, %v2052, 0.0
  %2215 = vadd.xlane.f32.xlu0 %v2214
  %v2216 = vpop.xlane.xlu0 %2215
  %v2217 = vsel %vm1724, %v2054, 0.0
  %2218 = vadd.xlane.f32.xlu0 %v2217
  %v2219 = vpop.xlane.xlu0 %2218
  %v2220 = vsel %vm1724, %v2056, 0.0
  %2221 = vadd.xlane.f32.xlu0 %v2220
  %v2222 = vpop.xlane.xlu0 %2221
  %v2223 = vsel %vm1724, %v2058, 0.0
  %2224 = vadd.xlane.f32.xlu0 %v2223
  %v2225 = vpop.xlane.xlu0 %2224
  %v2226 = vsel %vm1724, %v2060, 0.0
  %2227 = vadd.xlane.f32.xlu0 %v2226
  %v2228 = vpop.xlane.xlu0 %2227
  %v2229 = vsel %vm1724, %v2062, 0.0
  %2230 = vadd.xlane.f32.xlu0 %v2229
  %v2231 = vpop.xlane.xlu0 %2230
  %v2232 = vsel %vm1724, %v2064, 0.0
  %2233 = vadd.xlane.f32.xlu0 %v2232
  %v2234 = vpop.xlane.xlu0 %2233
  %v2235 = vsel %vm1724, %v2066, 0.0
  %2236 = vadd.xlane.f32.xlu0 %v2235
  %v2237 = vpop.xlane.xlu0 %2236
  %v2238 = vsel %vm1724, %v2068, 0.0
  %2239 = vadd.xlane.f32.xlu0 %v2238
  %v2240 = vpop.xlane.xlu0 %2239
  %v2241 = vsel %vm1724, %v2070, 0.0
  %2242 = vadd.xlane.f32.xlu0 %v2241
  %v2243 = vpop.xlane.xlu0 %2242
  %v2244 = vsel %vm1724, %v2072, 0.0
  %2245 = vadd.xlane.f32.xlu0 %v2244
  %v2246 = vpop.xlane.xlu0 %2245
  %v2247 = vsel %vm1724, %v2074, 0.0
  %2248 = vadd.xlane.f32.xlu0 %v2247
  %v2249 = vpop.xlane.xlu0 %2248
  %v2250 = vsel %vm1724, %v2076, 0.0
  %2251 = vadd.xlane.f32.xlu0 %v2250
  %v2252 = vpop.xlane.xlu0 %2251
  %v2253 = vsel %vm1724, %v2078, 0.0
  %2254 = vadd.xlane.f32.xlu0 %v2253
  %v2255 = vpop.xlane.xlu0 %2254
  %v2256 = vsel %vm1724, %v2080, 0.0
  %2257 = vadd.xlane.f32.xlu0 %v2256
  %v2258 = vpop.xlane.xlu0 %2257
  %v2259 = vsel %vm1724, %v2082, 0.0
  %2260 = vadd.xlane.f32.xlu0 %v2259
  %v2261 = vpop.xlane.xlu0 %2260
  %v2262 = vsel %vm1724, %v2084, 0.0
  %2263 = vadd.xlane.f32.xlu0 %v2262
  %v2264 = vpop.xlane.xlu0 %2263
  %v2265 = vsel %vm1724, %v2086, 0.0
  %2266 = vadd.xlane.f32.xlu0 %v2265
  %v2267 = vpop.xlane.xlu0 %2266
  %v2268 = vsel %vm1724, %v2088, 0.0
  %2269 = vadd.xlane.f32.xlu0 %v2268
  %v2270 = vpop.xlane.xlu0 %2269
  %v2271 = vsel %vm1724, %v2090, 0.0
  %2272 = vadd.xlane.f32.xlu0 %v2271
  %v2273 = vpop.xlane.xlu0 %2272
  %v2274 = vsel %vm1724, %v2092, 0.0
  %2275 = vadd.xlane.f32.xlu0 %v2274
  %v2276 = vpop.xlane.xlu0 %2275
  %v2277 = vsel %vm1724, %v2094, 0.0
  %2278 = vadd.xlane.f32.xlu0 %v2277
  %v2279 = vpop.xlane.xlu0 %2278
  %v2280 = vsel %vm1724, %v2096, 0.0
  %2281 = vadd.xlane.f32.xlu0 %v2280
  %v2282 = vpop.xlane.xlu0 %2281
  %v2283 = vsel %vm1724, %v2098, 0.0
  %2284 = vadd.xlane.f32.xlu0 %v2283
  %v2285 = vpop.xlane.xlu0 %2284
  %v2286 = vsel %vm1724, %v2100, 0.0
  %2287 = vadd.xlane.f32.xlu0 %v2286
  %v2288 = vpop.xlane.xlu0 %2287
  %v2289 = vsel %vm1724, %v2102, 0.0
  %2290 = vadd.xlane.f32.xlu0 %v2289
  %v2291 = vpop.xlane.xlu0 %2290
  %v2292 = vsel %vm1724, %v2104, 0.0
  %2293 = vadd.xlane.f32.xlu0 %v2292
  %v2294 = vpop.xlane.xlu0 %2293
  %v2295 = vsel %vm1724, %v2106, 0.0
  %2296 = vadd.xlane.f32.xlu0 %v2295
  %v2297 = vpop.xlane.xlu0 %2296
  %v2298 = vsel %vm1724, %v2108, 0.0
  %2299 = vadd.xlane.f32.xlu0 %v2298
  %v2300 = vpop.xlane.xlu0 %2299
  %v2301 = vrcp.pop %v2111
  %v2302 = vmul.f32 %v2111, %v2301
  %v2303 = vsub.f32 1.0, %v2302
  %v2304 = vmul.f32 %v2301, %v2303
  %v2305 = vadd.f32 %v2301, %v2304
  %vm2306 = vweird.f32 %v2111
  %vm2307 = vweird.f32 %v2301
  %vm2308 = vmor %vm2306, %vm2307
  %v2309 = vsel %vm2308, %v2301, %v2305
  %v2310 = vand.u32 2147483647, %v2111
  %vm2311 = vcmp.eq.f32.partialorder %v2310, 8.507059e+37
  %v2312 = vand.u32 %v2111, 2147483648
  %v2313 = vor.u32 1.1754944e-38, %v2312
  %v2314 = vsel %vm2311, %v2313, %v2309
  %v2315 = vmul.f32 %v1982, %v2314
  %v2316 = vrcp.pop %v2114
  %v2317 = vmul.f32 %v2114, %v2316
  %v2318 = vsub.f32 1.0, %v2317
  %v2319 = vmul.f32 %v2316, %v2318
  %v2320 = vadd.f32 %v2316, %v2319
  %vm2321 = vweird.f32 %v2114
  %vm2322 = vweird.f32 %v2316
  %vm2323 = vmor %vm2321, %vm2322
  %v2324 = vsel %vm2323, %v2316, %v2320
  %v2325 = vand.u32 2147483647, %v2114
  %vm2326 = vcmp.eq.f32.partialorder %v2325, 8.507059e+37
  %v2327 = vand.u32 %v2114, 2147483648
  %v2328 = vor.u32 1.1754944e-38, %v2327
  %v2329 = vsel %vm2326, %v2328, %v2324
  %v2330 = vmul.f32 %v1984, %v2329
  %v2331 = vrcp.pop %v2117
  %v2332 = vmul.f32 %v2117, %v2331
  %v2333 = vsub.f32 1.0, %v2332
  %v2334 = vmul.f32 %v2331, %v2333
  %v2335 = vadd.f32 %v2331, %v2334
  %vm2336 = vweird.f32 %v2117
  %vm2337 = vweird.f32 %v2331
  %vm2338 = vmor %vm2336, %vm2337
  %v2339 = vsel %vm2338, %v2331, %v2335
  %v2340 = vand.u32 2147483647, %v2117
  %vm2341 = vcmp.eq.f32.partialorder %v2340, 8.507059e+37
  %v2342 = vand.u32 %v2117, 2147483648
  %v2343 = vor.u32 1.1754944e-38, %v2342
  %v2344 = vsel %vm2341, %v2343, %v2339
  %v2345 = vmul.f32 %v1986, %v2344
  %v2346 = vrcp.pop %v2120
  %v2347 = vmul.f32 %v2120, %v2346
  %v2348 = vsub.f32 1.0, %v2347
  %v2349 = vmul.f32 %v2346, %v2348
  %v2350 = vadd.f32 %v2346, %v2349
  %vm2351 = vweird.f32 %v2120
  %vm2352 = vweird.f32 %v2346
  %vm2353 = vmor %vm2351, %vm2352
  %v2354 = vsel %vm2353, %v2346, %v2350
  %v2355 = vand.u32 2147483647, %v2120
  %vm2356 = vcmp.eq.f32.partialorder %v2355, 8.507059e+37
  %v2357 = vand.u32 %v2120, 2147483648
  %v2358 = vor.u32 1.1754944e-38, %v2357
  %v2359 = vsel %vm2356, %v2358, %v2354
  %v2360 = vmul.f32 %v1988, %v2359
  %v2361 = vrcp.pop %v2123
  %v2362 = vmul.f32 %v2123, %v2361
  %v2363 = vsub.f32 1.0, %v2362
  %v2364 = vmul.f32 %v2361, %v2363
  %v2365 = vadd.f32 %v2361, %v2364
  %vm2366 = vweird.f32 %v2123
  %vm2367 = vweird.f32 %v2361
  %vm2368 = vmor %vm2366, %vm2367
  %v2369 = vsel %vm2368, %v2361, %v2365
  %v2370 = vand.u32 2147483647, %v2123
  %vm2371 = vcmp.eq.f32.partialorder %v2370, 8.507059e+37
  %v2372 = vand.u32 %v2123, 2147483648
  %v2373 = vor.u32 1.1754944e-38, %v2372
  %v2374 = vsel %vm2371, %v2373, %v2369
  %v2375 = vmul.f32 %v1990, %v2374
  %v2376 = vrcp.pop %v2126
  %v2377 = vmul.f32 %v2126, %v2376
  %v2378 = vsub.f32 1.0, %v2377
  %v2379 = vmul.f32 %v2376, %v2378
  %v2380 = vadd.f32 %v2376, %v2379
  %vm2381 = vweird.f32 %v2126
  %vm2382 = vweird.f32 %v2376
  %vm2383 = vmor %vm2381, %vm2382
  %v2384 = vsel %vm2383, %v2376, %v2380
  %v2385 = vand.u32 2147483647, %v2126
  %vm2386 = vcmp.eq.f32.partialorder %v2385, 8.507059e+37
  %v2387 = vand.u32 %v2126, 2147483648
  %v2388 = vor.u32 1.1754944e-38, %v2387
  %v2389 = vsel %vm2386, %v2388, %v2384
  %v2390 = vmul.f32 %v1992, %v2389
  %v2391 = vrcp.pop %v2129
  %v2392 = vmul.f32 %v2129, %v2391
  %v2393 = vsub.f32 1.0, %v2392
  %v2394 = vmul.f32 %v2391, %v2393
  %v2395 = vadd.f32 %v2391, %v2394
  %vm2396 = vweird.f32 %v2129
  %vm2397 = vweird.f32 %v2391
  %vm2398 = vmor %vm2396, %vm2397
  %v2399 = vsel %vm2398, %v2391, %v2395
  %v2400 = vand.u32 2147483647, %v2129
  %vm2401 = vcmp.eq.f32.partialorder %v2400, 8.507059e+37
  %v2402 = vand.u32 %v2129, 2147483648
  %v2403 = vor.u32 1.1754944e-38, %v2402
  %v2404 = vsel %vm2401, %v2403, %v2399
  %v2405 = vmul.f32 %v1994, %v2404
  %v2406 = vrcp.pop %v2132
  %v2407 = vmul.f32 %v2132, %v2406
  %v2408 = vsub.f32 1.0, %v2407
  %v2409 = vmul.f32 %v2406, %v2408
  %v2410 = vadd.f32 %v2406, %v2409
  %vm2411 = vweird.f32 %v2132
  %vm2412 = vweird.f32 %v2406
  %vm2413 = vmor %vm2411, %vm2412
  %v2414 = vsel %vm2413, %v2406, %v2410
  %v2415 = vand.u32 2147483647, %v2132
  %vm2416 = vcmp.eq.f32.partialorder %v2415, 8.507059e+37
  %v2417 = vand.u32 %v2132, 2147483648
  %v2418 = vor.u32 1.1754944e-38, %v2417
  %v2419 = vsel %vm2416, %v2418, %v2414
  %v2420 = vmul.f32 %v1996, %v2419
  %v2421 = vrcp.pop %v2135
  %v2422 = vmul.f32 %v2135, %v2421
  %v2423 = vsub.f32 1.0, %v2422
  %v2424 = vmul.f32 %v2421, %v2423
  %v2425 = vadd.f32 %v2421, %v2424
  %vm2426 = vweird.f32 %v2135
  %vm2427 = vweird.f32 %v2421
  %vm2428 = vmor %vm2426, %vm2427
  %v2429 = vsel %vm2428, %v2421, %v2425
  %v2430 = vand.u32 2147483647, %v2135
  %vm2431 = vcmp.eq.f32.partialorder %v2430, 8.507059e+37
  %v2432 = vand.u32 %v2135, 2147483648
  %v2433 = vor.u32 1.1754944e-38, %v2432
  %v2434 = vsel %vm2431, %v2433, %v2429
  %v2435 = vmul.f32 %v1998, %v2434
  %v2436 = vrcp.pop %v2138
  %v2437 = vmul.f32 %v2138, %v2436
  %v2438 = vsub.f32 1.0, %v2437
  %v2439 = vmul.f32 %v2436, %v2438
  %v2440 = vadd.f32 %v2436, %v2439
  %vm2441 = vweird.f32 %v2138
  %vm2442 = vweird.f32 %v2436
  %vm2443 = vmor %vm2441, %vm2442
  %v2444 = vsel %vm2443, %v2436, %v2440
  %v2445 = vand.u32 2147483647, %v2138
  %vm2446 = vcmp.eq.f32.partialorder %v2445, 8.507059e+37
  %v2447 = vand.u32 %v2138, 2147483648
  %v2448 = vor.u32 1.1754944e-38, %v2447
  %v2449 = vsel %vm2446, %v2448, %v2444
  %v2450 = vmul.f32 %v2000, %v2449
  %v2451 = vrcp.pop %v2141
  %v2452 = vmul.f32 %v2141, %v2451
  %v2453 = vsub.f32 1.0, %v2452
  %v2454 = vmul.f32 %v2451, %v2453
  %v2455 = vadd.f32 %v2451, %v2454
  %vm2456 = vweird.f32 %v2141
  %vm2457 = vweird.f32 %v2451
  %vm2458 = vmor %vm2456, %vm2457
  %v2459 = vsel %vm2458, %v2451, %v2455
  %v2460 = vand.u32 2147483647, %v2141
  %vm2461 = vcmp.eq.f32.partialorder %v2460, 8.507059e+37
  %v2462 = vand.u32 %v2141, 2147483648
  %v2463 = vor.u32 1.1754944e-38, %v2462
  %v2464 = vsel %vm2461, %v2463, %v2459
  %v2465 = vmul.f32 %v2002, %v2464
  %v2466 = vrcp.pop %v2144
  %v2467 = vmul.f32 %v2144, %v2466
  %v2468 = vsub.f32 1.0, %v2467
  %v2469 = vmul.f32 %v2466, %v2468
  %v2470 = vadd.f32 %v2466, %v2469
  %vm2471 = vweird.f32 %v2144
  %vm2472 = vweird.f32 %v2466
  %vm2473 = vmor %vm2471, %vm2472
  %v2474 = vsel %vm2473, %v2466, %v2470
  %v2475 = vand.u32 2147483647, %v2144
  %vm2476 = vcmp.eq.f32.partialorder %v2475, 8.507059e+37
  %v2477 = vand.u32 %v2144, 2147483648
  %v2478 = vor.u32 1.1754944e-38, %v2477
  %v2479 = vsel %vm2476, %v2478, %v2474
  %v2480 = vmul.f32 %v2004, %v2479
  %v2481 = vrcp.pop %v2147
  %v2482 = vmul.f32 %v2147, %v2481
  %v2483 = vsub.f32 1.0, %v2482
  %v2484 = vmul.f32 %v2481, %v2483
  %v2485 = vadd.f32 %v2481, %v2484
  %vm2486 = vweird.f32 %v2147
  %vm2487 = vweird.f32 %v2481
  %vm2488 = vmor %vm2486, %vm2487
  %v2489 = vsel %vm2488, %v2481, %v2485
  %v2490 = vand.u32 2147483647, %v2147
  %vm2491 = vcmp.eq.f32.partialorder %v2490, 8.507059e+37
  %v2492 = vand.u32 %v2147, 2147483648
  %v2493 = vor.u32 1.1754944e-38, %v2492
  %v2494 = vsel %vm2491, %v2493, %v2489
  %v2495 = vmul.f32 %v2006, %v2494
  %v2496 = vrcp.pop %v2150
  %v2497 = vmul.f32 %v2150, %v2496
  %v2498 = vsub.f32 1.0, %v2497
  %v2499 = vmul.f32 %v2496, %v2498
  %v2500 = vadd.f32 %v2496, %v2499
  %vm2501 = vweird.f32 %v2150
  %vm2502 = vweird.f32 %v2496
  %vm2503 = vmor %vm2501, %vm2502
  %v2504 = vsel %vm2503, %v2496, %v2500
  %v2505 = vand.u32 2147483647, %v2150
  %vm2506 = vcmp.eq.f32.partialorder %v2505, 8.507059e+37
  %v2507 = vand.u32 %v2150, 2147483648
  %v2508 = vor.u32 1.1754944e-38, %v2507
  %v2509 = vsel %vm2506, %v2508, %v2504
  %v2510 = vmul.f32 %v2008, %v2509
  %v2511 = vrcp.pop %v2153
  %v2512 = vmul.f32 %v2153, %v2511
  %v2513 = vsub.f32 1.0, %v2512
  %v2514 = vmul.f32 %v2511, %v2513
  %v2515 = vadd.f32 %v2511, %v2514
  %vm2516 = vweird.f32 %v2153
  %vm2517 = vweird.f32 %v2511
  %vm2518 = vmor %vm2516, %vm2517
  %v2519 = vsel %vm2518, %v2511, %v2515
  %v2520 = vand.u32 2147483647, %v2153
  %vm2521 = vcmp.eq.f32.partialorder %v2520, 8.507059e+37
  %v2522 = vand.u32 %v2153, 2147483648
  %v2523 = vor.u32 1.1754944e-38, %v2522
  %v2524 = vsel %vm2521, %v2523, %v2519
  %v2525 = vmul.f32 %v2010, %v2524
  %v2526 = vrcp.pop %v2156
  %v2527 = vmul.f32 %v2156, %v2526
  %v2528 = vsub.f32 1.0, %v2527
  %v2529 = vmul.f32 %v2526, %v2528
  %v2530 = vadd.f32 %v2526, %v2529
  %vm2531 = vweird.f32 %v2156
  %vm2532 = vweird.f32 %v2526
  %vm2533 = vmor %vm2531, %vm2532
  %v2534 = vsel %vm2533, %v2526, %v2530
  %v2535 = vand.u32 2147483647, %v2156
  %vm2536 = vcmp.eq.f32.partialorder %v2535, 8.507059e+37
  %v2537 = vand.u32 %v2156, 2147483648
  %v2538 = vor.u32 1.1754944e-38, %v2537
  %v2539 = vsel %vm2536, %v2538, %v2534
  %v2540 = vmul.f32 %v2012, %v2539
  %v2541 = vrcp.pop %v2159
  %v2542 = vmul.f32 %v2159, %v2541
  %v2543 = vsub.f32 1.0, %v2542
  %v2544 = vmul.f32 %v2541, %v2543
  %v2545 = vadd.f32 %v2541, %v2544
  %vm2546 = vweird.f32 %v2159
  %vm2547 = vweird.f32 %v2541
  %vm2548 = vmor %vm2546, %vm2547
  %v2549 = vsel %vm2548, %v2541, %v2545
  %v2550 = vand.u32 2147483647, %v2159
  %vm2551 = vcmp.eq.f32.partialorder %v2550, 8.507059e+37
  %v2552 = vand.u32 %v2159, 2147483648
  %v2553 = vor.u32 1.1754944e-38, %v2552
  %v2554 = vsel %vm2551, %v2553, %v2549
  %v2555 = vmul.f32 %v2014, %v2554
  %v2556 = vrcp.pop %v2162
  %v2557 = vmul.f32 %v2162, %v2556
  %v2558 = vsub.f32 1.0, %v2557
  %v2559 = vmul.f32 %v2556, %v2558
  %v2560 = vadd.f32 %v2556, %v2559
  %vm2561 = vweird.f32 %v2162
  %vm2562 = vweird.f32 %v2556
  %vm2563 = vmor %vm2561, %vm2562
  %v2564 = vsel %vm2563, %v2556, %v2560
  %v2565 = vand.u32 2147483647, %v2162
  %vm2566 = vcmp.eq.f32.partialorder %v2565, 8.507059e+37
  %v2567 = vand.u32 %v2162, 2147483648
  %v2568 = vor.u32 1.1754944e-38, %v2567
  %v2569 = vsel %vm2566, %v2568, %v2564
  %v2570 = vmul.f32 %v2016, %v2569
  %v2571 = vrcp.pop %v2165
  %v2572 = vmul.f32 %v2165, %v2571
  %v2573 = vsub.f32 1.0, %v2572
  %v2574 = vmul.f32 %v2571, %v2573
  %v2575 = vadd.f32 %v2571, %v2574
  %vm2576 = vweird.f32 %v2165
  %vm2577 = vweird.f32 %v2571
  %vm2578 = vmor %vm2576, %vm2577
  %v2579 = vsel %vm2578, %v2571, %v2575
  %v2580 = vand.u32 2147483647, %v2165
  %vm2581 = vcmp.eq.f32.partialorder %v2580, 8.507059e+37
  %v2582 = vand.u32 %v2165, 2147483648
  %v2583 = vor.u32 1.1754944e-38, %v2582
  %v2584 = vsel %vm2581, %v2583, %v2579
  %v2585 = vmul.f32 %v2018, %v2584
  %v2586 = vrcp.pop %v2168
  %v2587 = vmul.f32 %v2168, %v2586
  %v2588 = vsub.f32 1.0, %v2587
  %v2589 = vmul.f32 %v2586, %v2588
  %v2590 = vadd.f32 %v2586, %v2589
  %vm2591 = vweird.f32 %v2168
  %vm2592 = vweird.f32 %v2586
  %vm2593 = vmor %vm2591, %vm2592
  %v2594 = vsel %vm2593, %v2586, %v2590
  %v2595 = vand.u32 2147483647, %v2168
  %vm2596 = vcmp.eq.f32.partialorder %v2595, 8.507059e+37
  %v2597 = vand.u32 %v2168, 2147483648
  %v2598 = vor.u32 1.1754944e-38, %v2597
  %v2599 = vsel %vm2596, %v2598, %v2594
  %v2600 = vmul.f32 %v2020, %v2599
  %v2601 = vrcp.pop %v2171
  %v2602 = vmul.f32 %v2171, %v2601
  %v2603 = vsub.f32 1.0, %v2602
  %v2604 = vmul.f32 %v2601, %v2603
  %v2605 = vadd.f32 %v2601, %v2604
  %vm2606 = vweird.f32 %v2171
  %vm2607 = vweird.f32 %v2601
  %vm2608 = vmor %vm2606, %vm2607
  %v2609 = vsel %vm2608, %v2601, %v2605
  %v2610 = vand.u32 2147483647, %v2171
  %vm2611 = vcmp.eq.f32.partialorder %v2610, 8.507059e+37
  %v2612 = vand.u32 %v2171, 2147483648
  %v2613 = vor.u32 1.1754944e-38, %v2612
  %v2614 = vsel %vm2611, %v2613, %v2609
  %v2615 = vmul.f32 %v2022, %v2614
  %v2616 = vrcp.pop %v2174
  %v2617 = vmul.f32 %v2174, %v2616
  %v2618 = vsub.f32 1.0, %v2617
  %v2619 = vmul.f32 %v2616, %v2618
  %v2620 = vadd.f32 %v2616, %v2619
  %vm2621 = vweird.f32 %v2174
  %vm2622 = vweird.f32 %v2616
  %vm2623 = vmor %vm2621, %vm2622
  %v2624 = vsel %vm2623, %v2616, %v2620
  %v2625 = vand.u32 2147483647, %v2174
  %vm2626 = vcmp.eq.f32.partialorder %v2625, 8.507059e+37
  %v2627 = vand.u32 %v2174, 2147483648
  %v2628 = vor.u32 1.1754944e-38, %v2627
  %v2629 = vsel %vm2626, %v2628, %v2624
  %v2630 = vmul.f32 %v2024, %v2629
  %v2631 = vrcp.pop %v2177
  %v2632 = vmul.f32 %v2177, %v2631
  %v2633 = vsub.f32 1.0, %v2632
  %v2634 = vmul.f32 %v2631, %v2633
  %v2635 = vadd.f32 %v2631, %v2634
  %vm2636 = vweird.f32 %v2177
  %vm2637 = vweird.f32 %v2631
  %vm2638 = vmor %vm2636, %vm2637
  %v2639 = vsel %vm2638, %v2631, %v2635
  %v2640 = vand.u32 2147483647, %v2177
  %vm2641 = vcmp.eq.f32.partialorder %v2640, 8.507059e+37
  %v2642 = vand.u32 %v2177, 2147483648
  %v2643 = vor.u32 1.1754944e-38, %v2642
  %v2644 = vsel %vm2641, %v2643, %v2639
  %v2645 = vmul.f32 %v2026, %v2644
  %v2646 = vrcp.pop %v2180
  %v2647 = vmul.f32 %v2180, %v2646
  %v2648 = vsub.f32 1.0, %v2647
  %v2649 = vmul.f32 %v2646, %v2648
  %v2650 = vadd.f32 %v2646, %v2649
  %vm2651 = vweird.f32 %v2180
  %vm2652 = vweird.f32 %v2646
  %vm2653 = vmor %vm2651, %vm2652
  %v2654 = vsel %vm2653, %v2646, %v2650
  %v2655 = vand.u32 2147483647, %v2180
  %vm2656 = vcmp.eq.f32.partialorder %v2655, 8.507059e+37
  %v2657 = vand.u32 %v2180, 2147483648
  %v2658 = vor.u32 1.1754944e-38, %v2657
  %v2659 = vsel %vm2656, %v2658, %v2654
  %v2660 = vmul.f32 %v2028, %v2659
  %v2661 = vrcp.pop %v2183
  %v2662 = vmul.f32 %v2183, %v2661
  %v2663 = vsub.f32 1.0, %v2662
  %v2664 = vmul.f32 %v2661, %v2663
  %v2665 = vadd.f32 %v2661, %v2664
  %vm2666 = vweird.f32 %v2183
  %vm2667 = vweird.f32 %v2661
  %vm2668 = vmor %vm2666, %vm2667
  %v2669 = vsel %vm2668, %v2661, %v2665
  %v2670 = vand.u32 2147483647, %v2183
  %vm2671 = vcmp.eq.f32.partialorder %v2670, 8.507059e+37
  %v2672 = vand.u32 %v2183, 2147483648
  %v2673 = vor.u32 1.1754944e-38, %v2672
  %v2674 = vsel %vm2671, %v2673, %v2669
  %v2675 = vmul.f32 %v2030, %v2674
  %v2676 = vrcp.pop %v2186
  %v2677 = vmul.f32 %v2186, %v2676
  %v2678 = vsub.f32 1.0, %v2677
  %v2679 = vmul.f32 %v2676, %v2678
  %v2680 = vadd.f32 %v2676, %v2679
  %vm2681 = vweird.f32 %v2186
  %vm2682 = vweird.f32 %v2676
  %vm2683 = vmor %vm2681, %vm2682
  %v2684 = vsel %vm2683, %v2676, %v2680
  %v2685 = vand.u32 2147483647, %v2186
  %vm2686 = vcmp.eq.f32.partialorder %v2685, 8.507059e+37
  %v2687 = vand.u32 %v2186, 2147483648
  %v2688 = vor.u32 1.1754944e-38, %v2687
  %v2689 = vsel %vm2686, %v2688, %v2684
  %v2690 = vmul.f32 %v2032, %v2689
  %v2691 = vrcp.pop %v2189
  %v2692 = vmul.f32 %v2189, %v2691
  %v2693 = vsub.f32 1.0, %v2692
  %v2694 = vmul.f32 %v2691, %v2693
  %v2695 = vadd.f32 %v2691, %v2694
  %vm2696 = vweird.f32 %v2189
  %vm2697 = vweird.f32 %v2691
  %vm2698 = vmor %vm2696, %vm2697
  %v2699 = vsel %vm2698, %v2691, %v2695
  %v2700 = vand.u32 2147483647, %v2189
  %vm2701 = vcmp.eq.f32.partialorder %v2700, 8.507059e+37
  %v2702 = vand.u32 %v2189, 2147483648
  %v2703 = vor.u32 1.1754944e-38, %v2702
  %v2704 = vsel %vm2701, %v2703, %v2699
  %v2705 = vmul.f32 %v2034, %v2704
  %v2706 = vrcp.pop %v2192
  %v2707 = vmul.f32 %v2192, %v2706
  %v2708 = vsub.f32 1.0, %v2707
  %v2709 = vmul.f32 %v2706, %v2708
  %v2710 = vadd.f32 %v2706, %v2709
  %vm2711 = vweird.f32 %v2192
  %vm2712 = vweird.f32 %v2706
  %vm2713 = vmor %vm2711, %vm2712
  %v2714 = vsel %vm2713, %v2706, %v2710
  %v2715 = vand.u32 2147483647, %v2192
  %vm2716 = vcmp.eq.f32.partialorder %v2715, 8.507059e+37
  %v2717 = vand.u32 %v2192, 2147483648
  %v2718 = vor.u32 1.1754944e-38, %v2717
  %v2719 = vsel %vm2716, %v2718, %v2714
  %v2720 = vmul.f32 %v2036, %v2719
  %v2721 = vrcp.pop %v2195
  %v2722 = vmul.f32 %v2195, %v2721
  %v2723 = vsub.f32 1.0, %v2722
  %v2724 = vmul.f32 %v2721, %v2723
  %v2725 = vadd.f32 %v2721, %v2724
  %vm2726 = vweird.f32 %v2195
  %vm2727 = vweird.f32 %v2721
  %vm2728 = vmor %vm2726, %vm2727
  %v2729 = vsel %vm2728, %v2721, %v2725
  %v2730 = vand.u32 2147483647, %v2195
  %vm2731 = vcmp.eq.f32.partialorder %v2730, 8.507059e+37
  %v2732 = vand.u32 %v2195, 2147483648
  %v2733 = vor.u32 1.1754944e-38, %v2732
  %v2734 = vsel %vm2731, %v2733, %v2729
  %v2735 = vmul.f32 %v2038, %v2734
  %v2736 = vrcp.pop %v2198
  %v2737 = vmul.f32 %v2198, %v2736
  %v2738 = vsub.f32 1.0, %v2737
  %v2739 = vmul.f32 %v2736, %v2738
  %v2740 = vadd.f32 %v2736, %v2739
  %vm2741 = vweird.f32 %v2198
  %vm2742 = vweird.f32 %v2736
  %vm2743 = vmor %vm2741, %vm2742
  %v2744 = vsel %vm2743, %v2736, %v2740
  %v2745 = vand.u32 2147483647, %v2198
  %vm2746 = vcmp.eq.f32.partialorder %v2745, 8.507059e+37
  %v2747 = vand.u32 %v2198, 2147483648
  %v2748 = vor.u32 1.1754944e-38, %v2747
  %v2749 = vsel %vm2746, %v2748, %v2744
  %v2750 = vmul.f32 %v2040, %v2749
  %v2751 = vrcp.pop %v2201
  %v2752 = vmul.f32 %v2201, %v2751
  %v2753 = vsub.f32 1.0, %v2752
  %v2754 = vmul.f32 %v2751, %v2753
  %v2755 = vadd.f32 %v2751, %v2754
  %vm2756 = vweird.f32 %v2201
  %vm2757 = vweird.f32 %v2751
  %vm2758 = vmor %vm2756, %vm2757
  %v2759 = vsel %vm2758, %v2751, %v2755
  %v2760 = vand.u32 2147483647, %v2201
  %vm2761 = vcmp.eq.f32.partialorder %v2760, 8.507059e+37
  %v2762 = vand.u32 %v2201, 2147483648
  %v2763 = vor.u32 1.1754944e-38, %v2762
  %v2764 = vsel %vm2761, %v2763, %v2759
  %v2765 = vmul.f32 %v2042, %v2764
  %v2766 = vrcp.pop %v2204
  %v2767 = vmul.f32 %v2204, %v2766
  %v2768 = vsub.f32 1.0, %v2767
  %v2769 = vmul.f32 %v2766, %v2768
  %v2770 = vadd.f32 %v2766, %v2769
  %vm2771 = vweird.f32 %v2204
  %vm2772 = vweird.f32 %v2766
  %vm2773 = vmor %vm2771, %vm2772
  %v2774 = vsel %vm2773, %v2766, %v2770
  %v2775 = vand.u32 2147483647, %v2204
  %vm2776 = vcmp.eq.f32.partialorder %v2775, 8.507059e+37
  %v2777 = vand.u32 %v2204, 2147483648
  %v2778 = vor.u32 1.1754944e-38, %v2777
  %v2779 = vsel %vm2776, %v2778, %v2774
  %v2780 = vmul.f32 %v2044, %v2779
  %v2781 = vrcp.pop %v2207
  %v2782 = vmul.f32 %v2207, %v2781
  %v2783 = vsub.f32 1.0, %v2782
  %v2784 = vmul.f32 %v2781, %v2783
  %v2785 = vadd.f32 %v2781, %v2784
  %vm2786 = vweird.f32 %v2207
  %vm2787 = vweird.f32 %v2781
  %vm2788 = vmor %vm2786, %vm2787
  %v2789 = vsel %vm2788, %v2781, %v2785
  %v2790 = vand.u32 2147483647, %v2207
  %vm2791 = vcmp.eq.f32.partialorder %v2790, 8.507059e+37
  %v2792 = vand.u32 %v2207, 2147483648
  %v2793 = vor.u32 1.1754944e-38, %v2792
  %v2794 = vsel %vm2791, %v2793, %v2789
  %v2795 = vmul.f32 %v2046, %v2794
  %v2796 = vrcp.pop %v2210
  %v2797 = vmul.f32 %v2210, %v2796
  %v2798 = vsub.f32 1.0, %v2797
  %v2799 = vmul.f32 %v2796, %v2798
  %v2800 = vadd.f32 %v2796, %v2799
  %vm2801 = vweird.f32 %v2210
  %vm2802 = vweird.f32 %v2796
  %vm2803 = vmor %vm2801, %vm2802
  %v2804 = vsel %vm2803, %v2796, %v2800
  %v2805 = vand.u32 2147483647, %v2210
  %vm2806 = vcmp.eq.f32.partialorder %v2805, 8.507059e+37
  %v2807 = vand.u32 %v2210, 2147483648
  %v2808 = vor.u32 1.1754944e-38, %v2807
  %v2809 = vsel %vm2806, %v2808, %v2804
  %v2810 = vmul.f32 %v2048, %v2809
  %v2811 = vrcp.pop %v2213
  %v2812 = vmul.f32 %v2213, %v2811
  %v2813 = vsub.f32 1.0, %v2812
  %v2814 = vmul.f32 %v2811, %v2813
  %v2815 = vadd.f32 %v2811, %v2814
  %vm2816 = vweird.f32 %v2213
  %vm2817 = vweird.f32 %v2811
  %vm2818 = vmor %vm2816, %vm2817
  %v2819 = vsel %vm2818, %v2811, %v2815
  %v2820 = vand.u32 2147483647, %v2213
  %vm2821 = vcmp.eq.f32.partialorder %v2820, 8.507059e+37
  %v2822 = vand.u32 %v2213, 2147483648
  %v2823 = vor.u32 1.1754944e-38, %v2822
  %v2824 = vsel %vm2821, %v2823, %v2819
  %v2825 = vmul.f32 %v2050, %v2824
  %v2826 = vrcp.pop %v2216
  %v2827 = vmul.f32 %v2216, %v2826
  %v2828 = vsub.f32 1.0, %v2827
  %v2829 = vmul.f32 %v2826, %v2828
  %v2830 = vadd.f32 %v2826, %v2829
  %vm2831 = vweird.f32 %v2216
  %vm2832 = vweird.f32 %v2826
  %vm2833 = vmor %vm2831, %vm2832
  %v2834 = vsel %vm2833, %v2826, %v2830
  %v2835 = vand.u32 2147483647, %v2216
  %vm2836 = vcmp.eq.f32.partialorder %v2835, 8.507059e+37
  %v2837 = vand.u32 %v2216, 2147483648
  %v2838 = vor.u32 1.1754944e-38, %v2837
  %v2839 = vsel %vm2836, %v2838, %v2834
  %v2840 = vmul.f32 %v2052, %v2839
  %v2841 = vrcp.pop %v2219
  %v2842 = vmul.f32 %v2219, %v2841
  %v2843 = vsub.f32 1.0, %v2842
  %v2844 = vmul.f32 %v2841, %v2843
  %v2845 = vadd.f32 %v2841, %v2844
  %vm2846 = vweird.f32 %v2219
  %vm2847 = vweird.f32 %v2841
  %vm2848 = vmor %vm2846, %vm2847
  %v2849 = vsel %vm2848, %v2841, %v2845
  %v2850 = vand.u32 2147483647, %v2219
  %vm2851 = vcmp.eq.f32.partialorder %v2850, 8.507059e+37
  %v2852 = vand.u32 %v2219, 2147483648
  %v2853 = vor.u32 1.1754944e-38, %v2852
  %v2854 = vsel %vm2851, %v2853, %v2849
  %v2855 = vmul.f32 %v2054, %v2854
  %v2856 = vrcp.pop %v2222
  %v2857 = vmul.f32 %v2222, %v2856
  %v2858 = vsub.f32 1.0, %v2857
  %v2859 = vmul.f32 %v2856, %v2858
  %v2860 = vadd.f32 %v2856, %v2859
  %vm2861 = vweird.f32 %v2222
  %vm2862 = vweird.f32 %v2856
  %vm2863 = vmor %vm2861, %vm2862
  %v2864 = vsel %vm2863, %v2856, %v2860
  %v2865 = vand.u32 2147483647, %v2222
  %vm2866 = vcmp.eq.f32.partialorder %v2865, 8.507059e+37
  %v2867 = vand.u32 %v2222, 2147483648
  %v2868 = vor.u32 1.1754944e-38, %v2867
  %v2869 = vsel %vm2866, %v2868, %v2864
  %v2870 = vmul.f32 %v2056, %v2869
  %v2871 = vrcp.pop %v2225
  %v2872 = vmul.f32 %v2225, %v2871
  %v2873 = vsub.f32 1.0, %v2872
  %v2874 = vmul.f32 %v2871, %v2873
  %v2875 = vadd.f32 %v2871, %v2874
  %vm2876 = vweird.f32 %v2225
  %vm2877 = vweird.f32 %v2871
  %vm2878 = vmor %vm2876, %vm2877
  %v2879 = vsel %vm2878, %v2871, %v2875
  %v2880 = vand.u32 2147483647, %v2225
  %vm2881 = vcmp.eq.f32.partialorder %v2880, 8.507059e+37
  %v2882 = vand.u32 %v2225, 2147483648
  %v2883 = vor.u32 1.1754944e-38, %v2882
  %v2884 = vsel %vm2881, %v2883, %v2879
  %v2885 = vmul.f32 %v2058, %v2884
  %v2886 = vrcp.pop %v2228
  %v2887 = vmul.f32 %v2228, %v2886
  %v2888 = vsub.f32 1.0, %v2887
  %v2889 = vmul.f32 %v2886, %v2888
  %v2890 = vadd.f32 %v2886, %v2889
  %vm2891 = vweird.f32 %v2228
  %vm2892 = vweird.f32 %v2886
  %vm2893 = vmor %vm2891, %vm2892
  %v2894 = vsel %vm2893, %v2886, %v2890
  %v2895 = vand.u32 2147483647, %v2228
  %vm2896 = vcmp.eq.f32.partialorder %v2895, 8.507059e+37
  %v2897 = vand.u32 %v2228, 2147483648
  %v2898 = vor.u32 1.1754944e-38, %v2897
  %v2899 = vsel %vm2896, %v2898, %v2894
  %v2900 = vmul.f32 %v2060, %v2899
  %v2901 = vrcp.pop %v2231
  %v2902 = vmul.f32 %v2231, %v2901
  %v2903 = vsub.f32 1.0, %v2902
  %v2904 = vmul.f32 %v2901, %v2903
  %v2905 = vadd.f32 %v2901, %v2904
  %vm2906 = vweird.f32 %v2231
  %vm2907 = vweird.f32 %v2901
  %vm2908 = vmor %vm2906, %vm2907
  %v2909 = vsel %vm2908, %v2901, %v2905
  %v2910 = vand.u32 2147483647, %v2231
  %vm2911 = vcmp.eq.f32.partialorder %v2910, 8.507059e+37
  %v2912 = vand.u32 %v2231, 2147483648
  %v2913 = vor.u32 1.1754944e-38, %v2912
  %v2914 = vsel %vm2911, %v2913, %v2909
  %v2915 = vmul.f32 %v2062, %v2914
  %v2916 = vrcp.pop %v2234
  %v2917 = vmul.f32 %v2234, %v2916
  %v2918 = vsub.f32 1.0, %v2917
  %v2919 = vmul.f32 %v2916, %v2918
  %v2920 = vadd.f32 %v2916, %v2919
  %vm2921 = vweird.f32 %v2234
  %vm2922 = vweird.f32 %v2916
  %vm2923 = vmor %vm2921, %vm2922
  %v2924 = vsel %vm2923, %v2916, %v2920
  %v2925 = vand.u32 2147483647, %v2234
  %vm2926 = vcmp.eq.f32.partialorder %v2925, 8.507059e+37
  %v2927 = vand.u32 %v2234, 2147483648
  %v2928 = vor.u32 1.1754944e-38, %v2927
  %v2929 = vsel %vm2926, %v2928, %v2924
  %v2930 = vmul.f32 %v2064, %v2929
  %v2931 = vrcp.pop %v2237
  %v2932 = vmul.f32 %v2237, %v2931
  %v2933 = vsub.f32 1.0, %v2932
  %v2934 = vmul.f32 %v2931, %v2933
  %v2935 = vadd.f32 %v2931, %v2934
  %vm2936 = vweird.f32 %v2237
  %vm2937 = vweird.f32 %v2931
  %vm2938 = vmor %vm2936, %vm2937
  %v2939 = vsel %vm2938, %v2931, %v2935
  %v2940 = vand.u32 2147483647, %v2237
  %vm2941 = vcmp.eq.f32.partialorder %v2940, 8.507059e+37
  %v2942 = vand.u32 %v2237, 2147483648
  %v2943 = vor.u32 1.1754944e-38, %v2942
  %v2944 = vsel %vm2941, %v2943, %v2939
  %v2945 = vmul.f32 %v2066, %v2944
  %v2946 = vrcp.pop %v2240
  %v2947 = vmul.f32 %v2240, %v2946
  %v2948 = vsub.f32 1.0, %v2947
  %v2949 = vmul.f32 %v2946, %v2948
  %v2950 = vadd.f32 %v2946, %v2949
  %vm2951 = vweird.f32 %v2240
  %vm2952 = vweird.f32 %v2946
  %vm2953 = vmor %vm2951, %vm2952
  %v2954 = vsel %vm2953, %v2946, %v2950
  %v2955 = vand.u32 2147483647, %v2240
  %vm2956 = vcmp.eq.f32.partialorder %v2955, 8.507059e+37
  %v2957 = vand.u32 %v2240, 2147483648
  %v2958 = vor.u32 1.1754944e-38, %v2957
  %v2959 = vsel %vm2956, %v2958, %v2954
  %v2960 = vmul.f32 %v2068, %v2959
  %v2961 = vrcp.pop %v2243
  %v2962 = vmul.f32 %v2243, %v2961
  %v2963 = vsub.f32 1.0, %v2962
  %v2964 = vmul.f32 %v2961, %v2963
  %v2965 = vadd.f32 %v2961, %v2964
  %vm2966 = vweird.f32 %v2243
  %vm2967 = vweird.f32 %v2961
  %vm2968 = vmor %vm2966, %vm2967
  %v2969 = vsel %vm2968, %v2961, %v2965
  %v2970 = vand.u32 2147483647, %v2243
  %vm2971 = vcmp.eq.f32.partialorder %v2970, 8.507059e+37
  %v2972 = vand.u32 %v2243, 2147483648
  %v2973 = vor.u32 1.1754944e-38, %v2972
  %v2974 = vsel %vm2971, %v2973, %v2969
  %v2975 = vmul.f32 %v2070, %v2974
  %v2976 = vrcp.pop %v2246
  %v2977 = vmul.f32 %v2246, %v2976
  %v2978 = vsub.f32 1.0, %v2977
  %v2979 = vmul.f32 %v2976, %v2978
  %v2980 = vadd.f32 %v2976, %v2979
  %vm2981 = vweird.f32 %v2246
  %vm2982 = vweird.f32 %v2976
  %vm2983 = vmor %vm2981, %vm2982
  %v2984 = vsel %vm2983, %v2976, %v2980
  %v2985 = vand.u32 2147483647, %v2246
  %vm2986 = vcmp.eq.f32.partialorder %v2985, 8.507059e+37
  %v2987 = vand.u32 %v2246, 2147483648
  %v2988 = vor.u32 1.1754944e-38, %v2987
  %v2989 = vsel %vm2986, %v2988, %v2984
  %v2990 = vmul.f32 %v2072, %v2989
  %v2991 = vrcp.pop %v2249
  %v2992 = vmul.f32 %v2249, %v2991
  %v2993 = vsub.f32 1.0, %v2992
  %v2994 = vmul.f32 %v2991, %v2993
  %v2995 = vadd.f32 %v2991, %v2994
  %vm2996 = vweird.f32 %v2249
  %vm2997 = vweird.f32 %v2991
  %vm2998 = vmor %vm2996, %vm2997
  %v2999 = vsel %vm2998, %v2991, %v2995
  %v3000 = vand.u32 2147483647, %v2249
  %vm3001 = vcmp.eq.f32.partialorder %v3000, 8.507059e+37
  %v3002 = vand.u32 %v2249, 2147483648
  %v3003 = vor.u32 1.1754944e-38, %v3002
  %v3004 = vsel %vm3001, %v3003, %v2999
  %v3005 = vmul.f32 %v2074, %v3004
  %v3006 = vrcp.pop %v2252
  %v3007 = vmul.f32 %v2252, %v3006
  %v3008 = vsub.f32 1.0, %v3007
  %v3009 = vmul.f32 %v3006, %v3008
  %v3010 = vadd.f32 %v3006, %v3009
  %vm3011 = vweird.f32 %v2252
  %vm3012 = vweird.f32 %v3006
  %vm3013 = vmor %vm3011, %vm3012
  %v3014 = vsel %vm3013, %v3006, %v3010
  %v3015 = vand.u32 2147483647, %v2252
  %vm3016 = vcmp.eq.f32.partialorder %v3015, 8.507059e+37
  %v3017 = vand.u32 %v2252, 2147483648
  %v3018 = vor.u32 1.1754944e-38, %v3017
  %v3019 = vsel %vm3016, %v3018, %v3014
  %v3020 = vmul.f32 %v2076, %v3019
  %v3021 = vrcp.pop %v2255
  %v3022 = vmul.f32 %v2255, %v3021
  %v3023 = vsub.f32 1.0, %v3022
  %v3024 = vmul.f32 %v3021, %v3023
  %v3025 = vadd.f32 %v3021, %v3024
  %vm3026 = vweird.f32 %v2255
  %vm3027 = vweird.f32 %v3021
  %vm3028 = vmor %vm3026, %vm3027
  %v3029 = vsel %vm3028, %v3021, %v3025
  %v3030 = vand.u32 2147483647, %v2255
  %vm3031 = vcmp.eq.f32.partialorder %v3030, 8.507059e+37
  %v3032 = vand.u32 %v2255, 2147483648
  %v3033 = vor.u32 1.1754944e-38, %v3032
  %v3034 = vsel %vm3031, %v3033, %v3029
  %v3035 = vmul.f32 %v2078, %v3034
  %v3036 = vrcp.pop %v2258
  %v3037 = vmul.f32 %v2258, %v3036
  %v3038 = vsub.f32 1.0, %v3037
  %v3039 = vmul.f32 %v3036, %v3038
  %v3040 = vadd.f32 %v3036, %v3039
  %vm3041 = vweird.f32 %v2258
  %vm3042 = vweird.f32 %v3036
  %vm3043 = vmor %vm3041, %vm3042
  %v3044 = vsel %vm3043, %v3036, %v3040
  %v3045 = vand.u32 2147483647, %v2258
  %vm3046 = vcmp.eq.f32.partialorder %v3045, 8.507059e+37
  %v3047 = vand.u32 %v2258, 2147483648
  %v3048 = vor.u32 1.1754944e-38, %v3047
  %v3049 = vsel %vm3046, %v3048, %v3044
  %v3050 = vmul.f32 %v2080, %v3049
  %v3051 = vrcp.pop %v2261
  %v3052 = vmul.f32 %v2261, %v3051
  %v3053 = vsub.f32 1.0, %v3052
  %v3054 = vmul.f32 %v3051, %v3053
  %v3055 = vadd.f32 %v3051, %v3054
  %vm3056 = vweird.f32 %v2261
  %vm3057 = vweird.f32 %v3051
  %vm3058 = vmor %vm3056, %vm3057
  %v3059 = vsel %vm3058, %v3051, %v3055
  %v3060 = vand.u32 2147483647, %v2261
  %vm3061 = vcmp.eq.f32.partialorder %v3060, 8.507059e+37
  %v3062 = vand.u32 %v2261, 2147483648
  %v3063 = vor.u32 1.1754944e-38, %v3062
  %v3064 = vsel %vm3061, %v3063, %v3059
  %v3065 = vmul.f32 %v2082, %v3064
  %v3066 = vrcp.pop %v2264
  %v3067 = vmul.f32 %v2264, %v3066
  %v3068 = vsub.f32 1.0, %v3067
  %v3069 = vmul.f32 %v3066, %v3068
  %v3070 = vadd.f32 %v3066, %v3069
  %vm3071 = vweird.f32 %v2264
  %vm3072 = vweird.f32 %v3066
  %vm3073 = vmor %vm3071, %vm3072
  %v3074 = vsel %vm3073, %v3066, %v3070
  %v3075 = vand.u32 2147483647, %v2264
  %vm3076 = vcmp.eq.f32.partialorder %v3075, 8.507059e+37
  %v3077 = vand.u32 %v2264, 2147483648
  %v3078 = vor.u32 1.1754944e-38, %v3077
  %v3079 = vsel %vm3076, %v3078, %v3074
  %v3080 = vmul.f32 %v2084, %v3079
  %v3081 = vrcp.pop %v2267
  %v3082 = vmul.f32 %v2267, %v3081
  %v3083 = vsub.f32 1.0, %v3082
  %v3084 = vmul.f32 %v3081, %v3083
  %v3085 = vadd.f32 %v3081, %v3084
  %vm3086 = vweird.f32 %v2267
  %vm3087 = vweird.f32 %v3081
  %vm3088 = vmor %vm3086, %vm3087
  %v3089 = vsel %vm3088, %v3081, %v3085
  %v3090 = vand.u32 2147483647, %v2267
  %vm3091 = vcmp.eq.f32.partialorder %v3090, 8.507059e+37
  %v3092 = vand.u32 %v2267, 2147483648
  %v3093 = vor.u32 1.1754944e-38, %v3092
  %v3094 = vsel %vm3091, %v3093, %v3089
  %v3095 = vmul.f32 %v2086, %v3094
  %v3096 = vrcp.pop %v2270
  %v3097 = vmul.f32 %v2270, %v3096
  %v3098 = vsub.f32 1.0, %v3097
  %v3099 = vmul.f32 %v3096, %v3098
  %v3100 = vadd.f32 %v3096, %v3099
  %vm3101 = vweird.f32 %v2270
  %vm3102 = vweird.f32 %v3096
  %vm3103 = vmor %vm3101, %vm3102
  %v3104 = vsel %vm3103, %v3096, %v3100
  %v3105 = vand.u32 2147483647, %v2270
  %vm3106 = vcmp.eq.f32.partialorder %v3105, 8.507059e+37
  %v3107 = vand.u32 %v2270, 2147483648
  %v3108 = vor.u32 1.1754944e-38, %v3107
  %v3109 = vsel %vm3106, %v3108, %v3104
  %v3110 = vmul.f32 %v2088, %v3109
  %v3111 = vrcp.pop %v2273
  %v3112 = vmul.f32 %v2273, %v3111
  %v3113 = vsub.f32 1.0, %v3112
  %v3114 = vmul.f32 %v3111, %v3113
  %v3115 = vadd.f32 %v3111, %v3114
  %vm3116 = vweird.f32 %v2273
  %vm3117 = vweird.f32 %v3111
  %vm3118 = vmor %vm3116, %vm3117
  %v3119 = vsel %vm3118, %v3111, %v3115
  %v3120 = vand.u32 2147483647, %v2273
  %vm3121 = vcmp.eq.f32.partialorder %v3120, 8.507059e+37
  %v3122 = vand.u32 %v2273, 2147483648
  %v3123 = vor.u32 1.1754944e-38, %v3122
  %v3124 = vsel %vm3121, %v3123, %v3119
  %v3125 = vmul.f32 %v2090, %v3124
  %v3126 = vrcp.pop %v2276
  %v3127 = vmul.f32 %v2276, %v3126
  %v3128 = vsub.f32 1.0, %v3127
  %v3129 = vmul.f32 %v3126, %v3128
  %v3130 = vadd.f32 %v3126, %v3129
  %vm3131 = vweird.f32 %v2276
  %vm3132 = vweird.f32 %v3126
  %vm3133 = vmor %vm3131, %vm3132
  %v3134 = vsel %vm3133, %v3126, %v3130
  %v3135 = vand.u32 2147483647, %v2276
  %vm3136 = vcmp.eq.f32.partialorder %v3135, 8.507059e+37
  %v3137 = vand.u32 %v2276, 2147483648
  %v3138 = vor.u32 1.1754944e-38, %v3137
  %v3139 = vsel %vm3136, %v3138, %v3134
  %v3140 = vmul.f32 %v2092, %v3139
  %v3141 = vrcp.pop %v2279
  %v3142 = vmul.f32 %v2279, %v3141
  %v3143 = vsub.f32 1.0, %v3142
  %v3144 = vmul.f32 %v3141, %v3143
  %v3145 = vadd.f32 %v3141, %v3144
  %vm3146 = vweird.f32 %v2279
  %vm3147 = vweird.f32 %v3141
  %vm3148 = vmor %vm3146, %vm3147
  %v3149 = vsel %vm3148, %v3141, %v3145
  %v3150 = vand.u32 2147483647, %v2279
  %vm3151 = vcmp.eq.f32.partialorder %v3150, 8.507059e+37
  %v3152 = vand.u32 %v2279, 2147483648
  %v3153 = vor.u32 1.1754944e-38, %v3152
  %v3154 = vsel %vm3151, %v3153, %v3149
  %v3155 = vmul.f32 %v2094, %v3154
  %v3156 = vrcp.pop %v2282
  %v3157 = vmul.f32 %v2282, %v3156
  %v3158 = vsub.f32 1.0, %v3157
  %v3159 = vmul.f32 %v3156, %v3158
  %v3160 = vadd.f32 %v3156, %v3159
  %vm3161 = vweird.f32 %v2282
  %vm3162 = vweird.f32 %v3156
  %vm3163 = vmor %vm3161, %vm3162
  %v3164 = vsel %vm3163, %v3156, %v3160
  %v3165 = vand.u32 2147483647, %v2282
  %vm3166 = vcmp.eq.f32.partialorder %v3165, 8.507059e+37
  %v3167 = vand.u32 %v2282, 2147483648
  %v3168 = vor.u32 1.1754944e-38, %v3167
  %v3169 = vsel %vm3166, %v3168, %v3164
  %v3170 = vmul.f32 %v2096, %v3169
  %v3171 = vrcp.pop %v2285
  %v3172 = vmul.f32 %v2285, %v3171
  %v3173 = vsub.f32 1.0, %v3172
  %v3174 = vmul.f32 %v3171, %v3173
  %v3175 = vadd.f32 %v3171, %v3174
  %vm3176 = vweird.f32 %v2285
  %vm3177 = vweird.f32 %v3171
  %vm3178 = vmor %vm3176, %vm3177
  %v3179 = vsel %vm3178, %v3171, %v3175
  %v3180 = vand.u32 2147483647, %v2285
  %vm3181 = vcmp.eq.f32.partialorder %v3180, 8.507059e+37
  %v3182 = vand.u32 %v2285, 2147483648
  %v3183 = vor.u32 1.1754944e-38, %v3182
  %v3184 = vsel %vm3181, %v3183, %v3179
  %v3185 = vmul.f32 %v2098, %v3184
  %v3186 = vrcp.pop %v2288
  %v3187 = vmul.f32 %v2288, %v3186
  %v3188 = vsub.f32 1.0, %v3187
  %v3189 = vmul.f32 %v3186, %v3188
  %v3190 = vadd.f32 %v3186, %v3189
  %vm3191 = vweird.f32 %v2288
  %vm3192 = vweird.f32 %v3186
  %vm3193 = vmor %vm3191, %vm3192
  %v3194 = vsel %vm3193, %v3186, %v3190
  %v3195 = vand.u32 2147483647, %v2288
  %vm3196 = vcmp.eq.f32.partialorder %v3195, 8.507059e+37
  %v3197 = vand.u32 %v2288, 2147483648
  %v3198 = vor.u32 1.1754944e-38, %v3197
  %v3199 = vsel %vm3196, %v3198, %v3194
  %v3200 = vmul.f32 %v2100, %v3199
  %v3201 = vrcp.pop %v2291
  %v3202 = vmul.f32 %v2291, %v3201
  %v3203 = vsub.f32 1.0, %v3202
  %v3204 = vmul.f32 %v3201, %v3203
  %v3205 = vadd.f32 %v3201, %v3204
  %vm3206 = vweird.f32 %v2291
  %vm3207 = vweird.f32 %v3201
  %vm3208 = vmor %vm3206, %vm3207
  %v3209 = vsel %vm3208, %v3201, %v3205
  %v3210 = vand.u32 2147483647, %v2291
  %vm3211 = vcmp.eq.f32.partialorder %v3210, 8.507059e+37
  %v3212 = vand.u32 %v2291, 2147483648
  %v3213 = vor.u32 1.1754944e-38, %v3212
  %v3214 = vsel %vm3211, %v3213, %v3209
  %v3215 = vmul.f32 %v2102, %v3214
  %v3216 = vrcp.pop %v2294
  %v3217 = vmul.f32 %v2294, %v3216
  %v3218 = vsub.f32 1.0, %v3217
  %v3219 = vmul.f32 %v3216, %v3218
  %v3220 = vadd.f32 %v3216, %v3219
  %vm3221 = vweird.f32 %v2294
  %vm3222 = vweird.f32 %v3216
  %vm3223 = vmor %vm3221, %vm3222
  %v3224 = vsel %vm3223, %v3216, %v3220
  %v3225 = vand.u32 2147483647, %v2294
  %vm3226 = vcmp.eq.f32.partialorder %v3225, 8.507059e+37
  %v3227 = vand.u32 %v2294, 2147483648
  %v3228 = vor.u32 1.1754944e-38, %v3227
  %v3229 = vsel %vm3226, %v3228, %v3224
  %v3230 = vmul.f32 %v2104, %v3229
  %v3231 = vrcp.pop %v2297
  %v3232 = vmul.f32 %v2297, %v3231
  %v3233 = vsub.f32 1.0, %v3232
  %v3234 = vmul.f32 %v3231, %v3233
  %v3235 = vadd.f32 %v3231, %v3234
  %vm3236 = vweird.f32 %v2297
  %vm3237 = vweird.f32 %v3231
  %vm3238 = vmor %vm3236, %vm3237
  %v3239 = vsel %vm3238, %v3231, %v3235
  %v3240 = vand.u32 2147483647, %v2297
  %vm3241 = vcmp.eq.f32.partialorder %v3240, 8.507059e+37
  %v3242 = vand.u32 %v2297, 2147483648
  %v3243 = vor.u32 1.1754944e-38, %v3242
  %v3244 = vsel %vm3241, %v3243, %v3239
  %v3245 = vmul.f32 %v2106, %v3244
  %v3246 = vrcp.pop %v2300
  %v3247 = vmul.f32 %v2300, %v3246
  %v3248 = vsub.f32 1.0, %v3247
  %v3249 = vmul.f32 %v3246, %v3248
  %v3250 = vadd.f32 %v3246, %v3249
  %vm3251 = vweird.f32 %v2300
  %vm3252 = vweird.f32 %v3246
  %vm3253 = vmor %vm3251, %vm3252
  %v3254 = vsel %vm3253, %v3246, %v3250
  %v3255 = vand.u32 2147483647, %v2300
  %vm3256 = vcmp.eq.f32.partialorder %v3255, 8.507059e+37
  %v3257 = vand.u32 %v2300, 2147483648
  %v3258 = vor.u32 1.1754944e-38, %v3257
  %v3259 = vsel %vm3256, %v3258, %v3254
  %v3260 = vmul.f32 %v2108, %v3259
  %3261 = vst.msk [vmem:[%s7] sm:$0xff] %vm1724, %v2315
  %3262 = vst.msk [vmem:[%s7 + $0x8] sm:$0xff] %vm1724, %v2330
  %3263 = vst.msk [vmem:[%s7 + $0x10] sm:$0xff] %vm1724, %v2345
  %3264 = vst.msk [vmem:[%s7 + $0x18] sm:$0xff] %vm1724, %v2360
  %3265 = vst.msk [vmem:[%s7 + $0x20] sm:$0xff] %vm1724, %v2375
  %3266 = vst.msk [vmem:[%s7 + $0x28] sm:$0xff] %vm1724, %v2390
  %3267 = vst.msk [vmem:[%s7 + $0x30] sm:$0xff] %vm1724, %v2405
  %3268 = vst.msk [vmem:[%s7 + $0x38] sm:$0xff] %vm1724, %v2420
  %3269 = vst.msk [vmem:[%s7 + $0x40] sm:$0xff] %vm1724, %v2435
  %3270 = vst.msk [vmem:[%s7 + $0x48] sm:$0xff] %vm1724, %v2450
  %3271 = vst.msk [vmem:[%s7 + $0x50] sm:$0xff] %vm1724, %v2465
  %3272 = vst.msk [vmem:[%s7 + $0x58] sm:$0xff] %vm1724, %v2480
  %3273 = vst.msk [vmem:[%s7 + $0x60] sm:$0xff] %vm1724, %v2495
  %3274 = vst.msk [vmem:[%s7 + $0x68] sm:$0xff] %vm1724, %v2510
  %3275 = vst.msk [vmem:[%s7 + $0x70] sm:$0xff] %vm1724, %v2525
  %3276 = vst.msk [vmem:[%s7 + $0x78] sm:$0xff] %vm1724, %v2540
  %3277 = vst.msk [vmem:[%s7 + $0x80] sm:$0xff] %vm1724, %v2555
  %3278 = vst.msk [vmem:[%s7 + $0x88] sm:$0xff] %vm1724, %v2570
  %3279 = vst.msk [vmem:[%s7 + $0x90] sm:$0xff] %vm1724, %v2585
  %3280 = vst.msk [vmem:[%s7 + $0x98] sm:$0xff] %vm1724, %v2600
  %3281 = vst.msk [vmem:[%s7 + $0xa0] sm:$0xff] %vm1724, %v2615
  %3282 = vst.msk [vmem:[%s7 + $0xa8] sm:$0xff] %vm1724, %v2630
  %3283 = vst.msk [vmem:[%s7 + $0xb0] sm:$0xff] %vm1724, %v2645
  %3284 = vst.msk [vmem:[%s7 + $0xb8] sm:$0xff] %vm1724, %v2660
  %3285 = vst.msk [vmem:[%s7 + $0xc0] sm:$0xff] %vm1724, %v2675
  %3286 = vst.msk [vmem:[%s7 + $0xc8] sm:$0xff] %vm1724, %v2690
  %3287 = vst.msk [vmem:[%s7 + $0xd0] sm:$0xff] %vm1724, %v2705
  %3288 = vst.msk [vmem:[%s7 + $0xd8] sm:$0xff] %vm1724, %v2720
  %3289 = vst.msk [vmem:[%s7 + $0xe0] sm:$0xff] %vm1724, %v2735
  %3290 = vst.msk [vmem:[%s7 + $0xe8] sm:$0xff] %vm1724, %v2750
  %3291 = vst.msk [vmem:[%s7 + $0xf0] sm:$0xff] %vm1724, %v2765
  %3292 = vst.msk [vmem:[%s7 + $0xf8] sm:$0xff] %vm1724, %v2780
  %3293 = vst.msk [vmem:[%s7 + $0x100] sm:$0xff] %vm1724, %v2795
  %3294 = vst.msk [vmem:[%s7 + $0x108] sm:$0xff] %vm1724, %v2810
  %3295 = vst.msk [vmem:[%s7 + $0x110] sm:$0xff] %vm1724, %v2825
  %3296 = vst.msk [vmem:[%s7 + $0x118] sm:$0xff] %vm1724, %v2840
  %3297 = vst.msk [vmem:[%s7 + $0x120] sm:$0xff] %vm1724, %v2855
  %3298 = vst.msk [vmem:[%s7 + $0x128] sm:$0xff] %vm1724, %v2870
  %3299 = vst.msk [vmem:[%s7 + $0x130] sm:$0xff] %vm1724, %v2885
  %3300 = vst.msk [vmem:[%s7 + $0x138] sm:$0xff] %vm1724, %v2900
  %3301 = vst.msk [vmem:[%s7 + $0x140] sm:$0xff] %vm1724, %v2915
  %3302 = vst.msk [vmem:[%s7 + $0x148] sm:$0xff] %vm1724, %v2930
  %3303 = vst.msk [vmem:[%s7 + $0x150] sm:$0xff] %vm1724, %v2945
  %3304 = vst.msk [vmem:[%s7 + $0x158] sm:$0xff] %vm1724, %v2960
  %3305 = vst.msk [vmem:[%s7 + $0x160] sm:$0xff] %vm1724, %v2975
  %3306 = vst.msk [vmem:[%s7 + $0x168] sm:$0xff] %vm1724, %v2990
  %3307 = vst.msk [vmem:[%s7 + $0x170] sm:$0xff] %vm1724, %v3005
  %3308 = vst.msk [vmem:[%s7 + $0x178] sm:$0xff] %vm1724, %v3020
  %3309 = vst.msk [vmem:[%s7 + $0x180] sm:$0xff] %vm1724, %v3035
  %3310 = vst.msk [vmem:[%s7 + $0x188] sm:$0xff] %vm1724, %v3050
  %3311 = vst.msk [vmem:[%s7 + $0x190] sm:$0xff] %vm1724, %v3065
  %3312 = vst.msk [vmem:[%s7 + $0x198] sm:$0xff] %vm1724, %v3080
  %3313 = vst.msk [vmem:[%s7 + $0x1a0] sm:$0xff] %vm1724, %v3095
  %3314 = vst.msk [vmem:[%s7 + $0x1a8] sm:$0xff] %vm1724, %v3110
  %3315 = vst.msk [vmem:[%s7 + $0x1b0] sm:$0xff] %vm1724, %v3125
  %3316 = vst.msk [vmem:[%s7 + $0x1b8] sm:$0xff] %vm1724, %v3140
  %3317 = vst.msk [vmem:[%s7 + $0x1c0] sm:$0xff] %vm1724, %v3155
  %3318 = vst.msk [vmem:[%s7 + $0x1c8] sm:$0xff] %vm1724, %v3170
  %3319 = vst.msk [vmem:[%s7 + $0x1d0] sm:$0xff] %vm1724, %v3185
  %3320 = vst.msk [vmem:[%s7 + $0x1d8] sm:$0xff] %vm1724, %v3200
  %3321 = vst.msk [vmem:[%s7 + $0x1e0] sm:$0xff] %vm1724, %v3215
  %3322 = vst.msk [vmem:[%s7 + $0x1e8] sm:$0xff] %vm1724, %v3230
  %3323 = vst.msk [vmem:[%s7 + $0x1f0] sm:$0xff] %vm1724, %v3245
  %3324 = vst.msk [vmem:[%s7 + $0x1f8] sm:$0xff] %vm1724, %v3260
  // Predicated region
  $region30: #{_actor_forward_impl.1} parent=0 // pred_check
    _
  $region31: #{_actor_forward_impl.1} parent=0 // pred_check_branch
    %3326 = sbr.rel (0) target = $region33
  $region32: #{_actor_forward_impl.1} parent=0 // pred_region
    _
  $region33: #{_actor_forward_impl.1} parent=0 // pred_fallthru
    _
  // Predicated region
  $region34: #{_actor_forward_impl.1} parent=0 // pred_check
    _
  $region35: #{_actor_forward_impl.1} parent=0 // pred_check_branch
    %3328 = sbr.rel (0) target = $region37
  $region36: #{_actor_forward_impl.1} parent=0 // pred_region
    _
  $region37: #{_actor_forward_impl.1} parent=0 // pred_fallthru
    _

</llo_original>
